<compile_context>
chip_gen: v7x
topology: tpu7x:2x2x1
jax: 0.10.0
libtpu: 0.0.40
codegen_flags: <defaults>
</compile_context>

<pallas_src>
import functools

import jax
import jax.numpy as jnp
from jax import lax
from jax.experimental import pallas as pl
from jax.experimental.pallas import tpu as pltpu


def _default_vmem_limit_bytes():
    # v5e/v6e: 128 MiB physical VMEM (default scoped limit 16/32 MiB) -> raise the budget.
    # v7x / unknown: keep 32 MiB (v7x has only 64 MiB physical).
    try:
        kind = jax.devices()[0].device_kind.lower()
    except Exception:
        kind = ""
    if "v5" in kind or "v6" in kind:
        return 64 * 1024 * 1024
    return 32 * 1024 * 1024


# ----------------------------------------------------------------------------
# Fused kernel: multi-layer LSTM + online-softmax attention + final Linear.
# Grid = (batch blocks [parallel], time blocks [sequential]).
# x rows inside a batch-block slab are time-major: row (t*B_BLK + bb).
# ----------------------------------------------------------------------------
def _fused_attention_lstm_kernel(*refs, num_layers, t_blk, b_blk, hidden,
                                 seq_len_true, mxu_dtype):
    H = hidden
    it = iter(refs)
    x_ref = next(it)                                              # (t_blk*b_blk, I) mxu_dtype
    layers = [(next(it), next(it), next(it)) for _ in range(num_layers)]
    aw_ref, ab_ref, fw_ref, fb_ref = next(it), next(it), next(it), next(it)
    out_ref = next(it)                                            # (b_blk, O) f32
    hc = [(next(it), next(it)) for _ in range(num_layers)]        # per-layer h/c carries
    gx_scr = next(it)                                             # (t_blk*b_blk, 4H) f32
    act_scr = next(it)                                            # (t_blk*b_blk, H) f32
    m_scr = next(it)                                              # (b_blk, 1) running max
    l_scr = next(it)                                              # (b_blk, 1) running sum
    ctx_scr = next(it)                                            # (b_blk, H) context acc

    tb = pl.program_id(1)
    n_tb = pl.num_programs(1)

    @pl.when(tb == 0)
    def _init():
        for h_scr, c_scr in hc:
            h_scr[...] = jnp.zeros_like(h_scr)
            c_scr[...] = jnp.zeros_like(c_scr)
        m_scr[...] = jnp.full(m_scr.shape, -jnp.inf, dtype=m_scr.dtype)
        l_scr[...] = jnp.zeros_like(l_scr)
        ctx_scr[...] = jnp.zeros_like(ctx_scr)

    # ---------------- fused multi-layer LSTM over one time block -----------------------
    for li, (w_ih_ref, w_hh_ref, b_ref) in enumerate(layers):
        h_scr, c_scr = hc[li]
        # Hoisted input projection (one big MXU matmul, bias folded), staged in VMEM so
        # only one timestep's gates are live inside the sequential recurrence.
        x_in = x_ref[...] if li == 0 else act_scr[...].astype(mxu_dtype)
        gx_scr[...] = jnp.dot(x_in, w_ih_ref[...],
                              preferred_element_type=jnp.float32) + b_ref[...]
        w_hh = w_hh_ref[...]                       # mxu_dtype (pre-cast), loaded once/block

        def step(t, carry, w_hh=w_hh):
            h, c = carry
            row = pl.multiple_of(t * b_blk, b_blk)
            gates = gx_scr[pl.ds(row, b_blk), :] + jnp.dot(
                h.astype(mxu_dtype), w_hh, preferred_element_type=jnp.float32)
            sig = jax.nn.sigmoid(gates[:, :3 * H])            # [i | f | o] one EUP pass
            i_g = sig[:, 0 * H:1 * H]
            f_g = sig[:, 1 * H:2 * H]
            o_g = sig[:, 2 * H:3 * H]
            g_g = jnp.tanh(gates[:, 3 * H:4 * H])
            c = f_g * c + i_g * g_g
            h = o_g * jnp.tanh(c)
            act_scr[pl.ds(row, b_blk), :] = h                 # block activations stay in VMEM
            return (h, c)

        h_fin, c_fin = lax.fori_loop(0, t_blk, step, (h_scr[...], c_scr[...]),
                                     unroll=True)
        h_scr[...] = h_fin
        c_scr[...] = c_fin

    # ---------------- online-softmax attention, fused in the same pass -----------------
    y = act_scr[...]                                              # (R, H) f32, last layer
    s = jnp.sum(y * aw_ref[...], axis=-1, keepdims=True) + ab_ref[0, 0]     # (R, 1)
    s3 = s.reshape(t_blk, b_blk, 1)                               # leading-dim split: free
    y3 = y.reshape(t_blk, b_blk, H)
    # mask timesteps that are pure padding (T padded to a multiple of t_blk in wrapper)
    t_idx = tb * t_blk + lax.broadcasted_iota(jnp.int32, (t_blk, b_blk, 1), 0)
    s3 = jnp.where(t_idx < seq_len_true, s3, -1e30)

    m_prev = m_scr[...]                                           # (b_blk, 1)
    m_new = jnp.maximum(m_prev, jnp.max(s3, axis=0))              # (b_blk, 1)
    alpha = jnp.exp(m_prev - m_new)
    p = jnp.exp(s3 - m_new[None, :, :])                           # (t_blk, b_blk, 1)
    l_scr[...] = alpha * l_scr[...] + jnp.sum(p, axis=0)
    m_scr[...] = m_new
    ctx_scr[...] = alpha * ctx_scr[...] + jnp.sum(p * y3, axis=0)  # (b_blk, H)

    # ---------------- finalize: normalize context + output Linear ----------------------
    @pl.when(tb == n_tb - 1)
    def _finalize():
        inv_l = pl.reciprocal(l_scr[...], approx=True)            # EUP reciprocal
        ctx = ctx_scr[...] * inv_l
        out_ref[...] = (jnp.dot(ctx.astype(mxu_dtype), fw_ref[...],
                                preferred_element_type=jnp.float32) + fb_ref[...])


# ----------------------------------------------------------------------------
# Wrapper: layout, padding, casts, specs.
# ----------------------------------------------------------------------------
def attention_lstm_forward(x_btI, lstm_params, attn_w_row, attn_b, fc_w, fc_b,
                           *, t_block=None, batch_block=None, mxu_dtype=jnp.float32,
                           vmem_limit_bytes=None):
    """x_btI: (B, T, input_size) like PyTorch batch_first=True.  Returns (B, output_size)."""
    B, T, in_size = x_btI.shape
    num_layers = len(lstm_params)
    H = lstm_params[-1][1].shape[0]
    O = fc_w.shape[1]

    b_blk = B if batch_block is None else batch_block
    assert B % b_blk == 0 and b_blk % 8 == 0, "batch block must divide B and be 8-aligned"
    nb = B // b_blk

    if t_block is None:
        t_block = 32            # v5e/v6e-friendly default; lower on v7x if VMEM-bound
    t_blk = max(1, min(t_block, T))
    n_tb = -(-T // t_blk)       # cdiv; T is padded up (padded steps masked in-kernel)
    T_pad = n_tb * t_blk

    # ---- wrapper-side casts & layout (free relative to the kernel) ----
    x = jnp.transpose(x_btI.astype(mxu_dtype), (1, 0, 2))              # (T, B, I)
    if T_pad != T:
        x = jnp.pad(x, ((0, T_pad - T), (0, 0), (0, 0)))
    # batch-block-major, time-major-within-block rows: x[b, t*b_blk + bb, :]
    x = x.reshape(T_pad, nb, b_blk, in_size).transpose(1, 0, 2, 3)
    x = x.reshape(nb, T_pad * b_blk, in_size)

    inputs = [x]
    for (w_ih, w_hh, b) in lstm_params:
        inputs += [w_ih.astype(mxu_dtype), w_hh.astype(mxu_dtype), b]  # bias stays f32
    inputs += [attn_w_row, attn_b, fc_w.astype(mxu_dtype), fc_b]

    def invariant(shape):
        # Grid-invariant operand: single-buffered VMEM resident (no double buffering).
        return pl.BlockSpec(shape, lambda b, t: (0, 0),
                            pipeline_mode=pl.Buffered(buffer_count=1))

    in_specs = [pl.BlockSpec((None, t_blk * b_blk, in_size), lambda b, t: (b, t, 0))]
    dims = [in_size] + [H] * (num_layers - 1)
    for l in range(num_layers):
        in_specs += [invariant((dims[l], 4 * H)),        # W_ih
                     invariant((H, 4 * H)),              # W_hh
                     invariant((1, 4 * H))]              # bias (b_ih + b_hh), f32
    in_specs += [invariant((1, H)), invariant((1, 1)),   # attention weight / bias
                 invariant((H, O)), invariant((1, O))]   # FC weight / bias

    scratch = []
    for _ in range(num_layers):
        scratch += [pltpu.VMEM((b_blk, H), jnp.float32),            # h carry (f32 always)
                    pltpu.VMEM((b_blk, H), jnp.float32)]            # c carry
    scratch += [pltpu.VMEM((t_blk * b_blk, 4 * H), jnp.float32),    # gx staging
                pltpu.VMEM((t_blk * b_blk, H), jnp.float32),        # block activations
                pltpu.VMEM((b_blk, 1), jnp.float32),                # softmax running max
                pltpu.VMEM((b_blk, 1), jnp.float32),                # softmax running sum
                pltpu.VMEM((b_blk, H), jnp.float32)]                # context accumulator

    kernel = functools.partial(
        _fused_attention_lstm_kernel, num_layers=num_layers, t_blk=t_blk,
        b_blk=b_blk, hidden=H, seq_len_true=T, mxu_dtype=mxu_dtype)

    limit = _default_vmem_limit_bytes() if vmem_limit_bytes is None else vmem_limit_bytes

    return pl.pallas_call(
        kernel,
        out_shape=jax.ShapeDtypeStruct((B, O), jnp.float32),
        grid_spec=pltpu.PrefetchScalarGridSpec(
            num_scalar_prefetch=0,
            grid=(nb, n_tb),
            in_specs=in_specs,
            out_specs=pl.BlockSpec((b_blk, O), lambda b, t: (b, 0)),
            scratch_shapes=scratch,
        ),
        compiler_params=pltpu.CompilerParams(
            # batch blocks independent ("parallel": v7x megacore); time carries h/c and
            # the online-softmax state so it must stay sequential ("arbitrary").
            dimension_semantics=("parallel", "arbitrary"),
            vmem_limit_bytes=limit,
        ),
    )(*inputs)


# ----------------------------------------------------------------------------
# Pure-JAX reference (same math, same MXU-cast points) for correctness checking.
# ----------------------------------------------------------------------------
def reference_forward(x_btI, lstm_params, attn_w_row, attn_b, fc_w, fc_b,
                      mxu_dtype=jnp.float32):
    B, T, _ = x_btI.shape
    h_seq = jnp.transpose(x_btI, (1, 0, 2)).astype(jnp.float32)        # (T, B, I)
    for (w_ih, w_hh, b) in lstm_params:
        H = w_hh.shape[0]
        in_dim = h_seq.shape[-1]
        gx = jnp.dot(h_seq.reshape(T * B, in_dim).astype(mxu_dtype),
                     w_ih.astype(mxu_dtype),
                     preferred_element_type=jnp.float32) + b
        gx = gx.reshape(T, B, 4 * H)

        def step(carry, gx_t, w_hh=w_hh, H=H):
            h, c = carry
            g = gx_t + jnp.dot(h.astype(mxu_dtype), w_hh.astype(mxu_dtype),
                               preferred_element_type=jnp.float32)
            # gate layout [i | f | o | g]
            i = jax.nn.sigmoid(g[:, 0 * H:1 * H])
            f = jax.nn.sigmoid(g[:, 1 * H:2 * H])
            o = jax.nn.sigmoid(g[:, 2 * H:3 * H])
            gg = jnp.tanh(g[:, 3 * H:4 * H])
            c = f * c + i * gg
            h = o * jnp.tanh(c)
            return (h, c), h

        init = (jnp.zeros((B, H), jnp.float32), jnp.zeros((B, H), jnp.float32))
        _, h_seq = lax.scan(step, init, gx)

    scores = jnp.sum(h_seq * attn_w_row[None, :, :], axis=-1) + attn_b[0, 0]  # (T, B)
    w = jax.nn.softmax(scores, axis=0)
    ctx = jnp.sum(w[:, :, None] * h_seq, axis=0)                               # (B, H)
    return jnp.dot(ctx.astype(mxu_dtype), fc_w.astype(mxu_dtype),
                   preferred_element_type=jnp.float32) + fc_b


# ----------------------------------------------------------------------------
# Deterministic parameter init.
# Weights are stored pre-transposed ((in,4H)/(H,4H)) with gate blocks [i | f | o | g].
# TODO(synk): porting real nn.LSTM weights ((4H,in)/(4H,H), gate order [i,f,g,o]) needs a
#             transpose, a gate-block permutation, and summing b_ih + b_hh.
# ----------------------------------------------------------------------------
def init_params(key, input_size, hidden_size, num_layers, output_size):
    scale = 1.0 / jnp.sqrt(hidden_size)
    keys = jax.random.split(key, 4 * num_layers + 4)
    ki = iter(range(len(keys)))

    lstm_params = []
    in_dim = input_size
    for _ in range(num_layers):
        w_ih = jax.random.uniform(keys[next(ki)], (in_dim, 4 * hidden_size),
                                  jnp.float32, -scale, scale)
        w_hh = jax.random.uniform(keys[next(ki)], (hidden_size, 4 * hidden_size),
                                  jnp.float32, -scale, scale)
        b_ih = jax.random.uniform(keys[next(ki)], (1, 4 * hidden_size),
                                  jnp.float32, -scale, scale)
        b_hh = jax.random.uniform(keys[next(ki)], (1, 4 * hidden_size),
                                  jnp.float32, -scale, scale)
        lstm_params.append((w_ih, w_hh, b_ih + b_hh))
        in_dim = hidden_size

    attn_w_row = jax.random.uniform(keys[next(ki)], (1, hidden_size),
                                    jnp.float32, -scale, scale)
    attn_b = jax.random.uniform(keys[next(ki)], (1, 1), jnp.float32, -scale, scale)
    fc_w = jax.random.uniform(keys[next(ki)], (hidden_size, output_size),
                              jnp.float32, -scale, scale)
    fc_b = jax.random.uniform(keys[next(ki)], (1, output_size),
                              jnp.float32, -scale, scale)
    return lstm_params, attn_w_row, attn_b, fc_w, fc_b


if __name__ == "__main__":
    # H=128 keeps gate slices/stores lane-aligned; B=16 with batch_block=8 exercises the
    # "parallel" batch-block axis; t_block=8 over T=16 exercises the carried h/c and the
    # online-softmax state across time blocks.
    B, T = 16, 16
    input_size, hidden_size, num_layers, output_size = 8, 128, 2, 3

    key = jax.random.PRNGKey(0)
    k_x, k_p, k_x2 = jax.random.split(key, 3)
    x = jax.random.normal(k_x, (B, T, input_size), jnp.float32)
    params = init_params(k_p, input_size, hidden_size, num_layers, output_size)

    # f32 MXU path.  Tolerance is slightly loosened because the kernel normalizes the
    # softmax with the EUP approximate reciprocal (pl.reciprocal(..., approx=True)).
    fwd_f32 = jax.jit(functools.partial(attention_lstm_forward, t_block=8,
                                        batch_block=8, mxu_dtype=jnp.float32))
    out = jax.block_until_ready(fwd_f32(x, *params))
    ref = jax.block_until_ready(reference_forward(x, *params, mxu_dtype=jnp.float32))
    assert out.shape == (B, output_size)
    assert jnp.allclose(out, ref, atol=3e-3, rtol=3e-3), (out, ref)

    # bf16-at-the-MXU path (f32 accumulation, f32 carries / gate math), looser check
    # against a reference that casts at the same points.
    fwd_bf16 = jax.jit(functools.partial(attention_lstm_forward, t_block=8,
                                         batch_block=8, mxu_dtype=jnp.bfloat16))
    out_bf = jax.block_until_ready(fwd_bf16(x, *params))
    ref_bf = jax.block_until_ready(reference_forward(x, *params, mxu_dtype=jnp.bfloat16))
    assert out_bf.shape == (B, output_size)
    assert jnp.allclose(out_bf, ref_bf, atol=2e-2, rtol=2e-2), (out_bf, ref_bf)

    # Ragged T (not a multiple of the time block): wrapper pads T 13 -> 16 and the kernel
    # masks the padded timesteps out of the softmax.
    x_odd = jax.random.normal(k_x2, (B, 13, input_size), jnp.float32)
    out_odd = jax.block_until_ready(fwd_f32(x_odd, *params))
    ref_odd = jax.block_until_ready(reference_forward(x_odd, *params,
                                                      mxu_dtype=jnp.float32))
    assert jnp.allclose(out_odd, ref_odd, atol=3e-3, rtol=3e-3), (out_odd, ref_odd)

    print("KERNEL_OK")
</pallas_src>

<mosaic_0001>
module attributes {stable_mosaic.version = 11 : i64} {
  func.func @_fused_attention_lstm_kernel(%arg0: i32, %arg1: i32, %arg2: memref<1x64x8xf32, #tpu.memory_space<vmem>>, %arg3: memref<8x512xf32, #tpu.memory_space<vmem>>, %arg4: memref<128x512xf32, #tpu.memory_space<vmem>>, %arg5: memref<1x512xf32, #tpu.memory_space<vmem>>, %arg6: memref<128x512xf32, #tpu.memory_space<vmem>>, %arg7: memref<128x512xf32, #tpu.memory_space<vmem>>, %arg8: memref<1x512xf32, #tpu.memory_space<vmem>>, %arg9: memref<1x128xf32, #tpu.memory_space<vmem>>, %arg10: memref<1x1xf32, #tpu.memory_space<vmem>>, %arg11: memref<128x3xf32, #tpu.memory_space<vmem>>, %arg12: memref<1x3xf32, #tpu.memory_space<vmem>>, %arg13: memref<8x3xf32, #tpu.memory_space<vmem>>, %arg14: memref<8x128xf32, #tpu.memory_space<vmem>>, %arg15: memref<8x128xf32, #tpu.memory_space<vmem>>, %arg16: memref<8x128xf32, #tpu.memory_space<vmem>>, %arg17: memref<8x128xf32, #tpu.memory_space<vmem>>, %arg18: memref<64x512xf32, #tpu.memory_space<vmem>>, %arg19: memref<64x128xf32, #tpu.memory_space<vmem>>, %arg20: memref<8x1xf32, #tpu.memory_space<vmem>>, %arg21: memref<8x1xf32, #tpu.memory_space<vmem>>, %arg22: memref<8x128xf32, #tpu.memory_space<vmem>>) attributes {dimension_semantics = [#tpu.dimension_semantics<parallel>, #tpu.dimension_semantics<arbitrary>], iteration_bounds = array<i64: 2, 2>, scalar_prefetch = 0 : i64, scratch_operands = 9 : i64, tpu.core_type = #tpu.core_type<tc>, window_params = [{transform_indices = @transform_0, window_bounds = array<i64: 1, 64, 8>}, {pipeline_mode = #tpu.pipeline_mode<synchronous>, transform_indices = @transform_1, window_bounds = array<i64: 8, 512>}, {pipeline_mode = #tpu.pipeline_mode<synchronous>, transform_indices = @transform_2, window_bounds = array<i64: 128, 512>}, {pipeline_mode = #tpu.pipeline_mode<synchronous>, transform_indices = @transform_3, window_bounds = array<i64: 1, 512>}, {pipeline_mode = #tpu.pipeline_mode<synchronous>, transform_indices = @transform_4, window_bounds = array<i64: 128, 512>}, {pipeline_mode = #tpu.pipeline_mode<synchronous>, transform_indices = @transform_5, window_bounds = array<i64: 128, 512>}, {pipeline_mode = #tpu.pipeline_mode<synchronous>, transform_indices = @transform_6, window_bounds = array<i64: 1, 512>}, {pipeline_mode = #tpu.pipeline_mode<synchronous>, transform_indices = @transform_7, window_bounds = array<i64: 1, 128>}, {pipeline_mode = #tpu.pipeline_mode<synchronous>, transform_indices = @transform_8, window_bounds = array<i64: 1, 1>}, {pipeline_mode = #tpu.pipeline_mode<synchronous>, transform_indices = @transform_9, window_bounds = array<i64: 128, 3>}, {pipeline_mode = #tpu.pipeline_mode<synchronous>, transform_indices = @transform_10, window_bounds = array<i64: 1, 3>}, {transform_indices = @transform_11, window_bounds = array<i64: 8, 3>}]} {
    %c0_i32 = arith.constant 0 : i32
    %0 = arith.cmpi eq, %arg1, %c0_i32 : i32
    %1 = arith.extui %0 : i1 to i32
    %c0_i32_0 = arith.constant 0 : i32
    %2 = arith.cmpi ne, %1, %c0_i32_0 : i32
    scf.if %2 {
      %cst_154 = arith.constant 0.000000e+00 : f32
      %458 = vector.broadcast %cst_154 : f32 to vector<8x128xf32>
      %c0_155 = arith.constant 0 : index
      %c0_156 = arith.constant 0 : index
      %459 = vector.load %arg14[%c0_155, %c0_156] : memref<8x128xf32, #tpu.memory_space<vmem>>, vector<8x128xf32>
      tpu.vector_store %arg14[%c0_155, %c0_156], %458 {strides = array<i32>} : memref<8x128xf32, #tpu.memory_space<vmem>>, vector<8x128xf32>,
      %cst_157 = arith.constant 0.000000e+00 : f32
      %460 = vector.broadcast %cst_157 : f32 to vector<8x128xf32>
      %c0_158 = arith.constant 0 : index
      %c0_159 = arith.constant 0 : index
      %461 = vector.load %arg15[%c0_158, %c0_159] : memref<8x128xf32, #tpu.memory_space<vmem>>, vector<8x128xf32>
      tpu.vector_store %arg15[%c0_158, %c0_159], %460 {strides = array<i32>} : memref<8x128xf32, #tpu.memory_space<vmem>>, vector<8x128xf32>,
      %cst_160 = arith.constant 0.000000e+00 : f32
      %462 = vector.broadcast %cst_160 : f32 to vector<8x128xf32>
      %c0_161 = arith.constant 0 : index
      %c0_162 = arith.constant 0 : index
      %463 = vector.load %arg16[%c0_161, %c0_162] : memref<8x128xf32, #tpu.memory_space<vmem>>, vector<8x128xf32>
      tpu.vector_store %arg16[%c0_161, %c0_162], %462 {strides = array<i32>} : memref<8x128xf32, #tpu.memory_space<vmem>>, vector<8x128xf32>,
      %cst_163 = arith.constant 0.000000e+00 : f32
      %464 = vector.broadcast %cst_163 : f32 to vector<8x128xf32>
      %c0_164 = arith.constant 0 : index
      %c0_165 = arith.constant 0 : index
      %465 = vector.load %arg17[%c0_164, %c0_165] : memref<8x128xf32, #tpu.memory_space<vmem>>, vector<8x128xf32>
      tpu.vector_store %arg17[%c0_164, %c0_165], %464 {strides = array<i32>} : memref<8x128xf32, #tpu.memory_space<vmem>>, vector<8x128xf32>,
      %cst_166 = arith.constant 0xFF800000 : f32
      %466 = vector.broadcast %cst_166 : f32 to vector<8x1xf32>
      %c0_167 = arith.constant 0 : index
      %c0_168 = arith.constant 0 : index
      %467 = vector.load %arg20[%c0_167, %c0_168] : memref<8x1xf32, #tpu.memory_space<vmem>>, vector<8x1xf32>
      tpu.vector_store %arg20[%c0_167, %c0_168], %466 {strides = array<i32>} : memref<8x1xf32, #tpu.memory_space<vmem>>, vector<8x1xf32>,
      %cst_169 = arith.constant 0.000000e+00 : f32
      %468 = vector.broadcast %cst_169 : f32 to vector<8x1xf32>
      %c0_170 = arith.constant 0 : index
      %c0_171 = arith.constant 0 : index
      %469 = vector.load %arg21[%c0_170, %c0_171] : memref<8x1xf32, #tpu.memory_space<vmem>>, vector<8x1xf32>
      tpu.vector_store %arg21[%c0_170, %c0_171], %468 {strides = array<i32>} : memref<8x1xf32, #tpu.memory_space<vmem>>, vector<8x1xf32>,
      %cst_172 = arith.constant 0.000000e+00 : f32
      %470 = vector.broadcast %cst_172 : f32 to vector<8x128xf32>
      %c0_173 = arith.constant 0 : index
      %c0_174 = arith.constant 0 : index
      %471 = vector.load %arg22[%c0_173, %c0_174] : memref<8x128xf32, #tpu.memory_space<vmem>>, vector<8x128xf32>
      tpu.vector_store %arg22[%c0_173, %c0_174], %470 {strides = array<i32>} : memref<8x128xf32, #tpu.memory_space<vmem>>, vector<8x128xf32>,
    } else {
    }
    %c0 = arith.constant 0 : index
    %c0_1 = arith.constant 0 : index
    %c0_2 = arith.constant 0 : index
    %3 = vector.load %arg2[%c0, %c0_1, %c0_2] : memref<1x64x8xf32, #tpu.memory_space<vmem>>, vector<1x64x8xf32>
    %4 = vector.shape_cast %3 : vector<1x64x8xf32> to vector<64x8xf32>
    %c0_3 = arith.constant 0 : index
    %c0_4 = arith.constant 0 : index
    %5 = vector.load %arg3[%c0_3, %c0_4] : memref<8x512xf32, #tpu.memory_space<vmem>>, vector<8x512xf32>
    %cst = arith.constant dense<0.000000e+00> : vector<64x512xf32>
    %6 = tpu.matmul %4, %5, %cst {dimension_numbers = #tpu.dot_dimension_numbers<[1], [0], [0], [1], [0, 0, 1, 1], [], []>} : vector<64x8xf32>, vector<8x512xf32>, vector<64x512xf32> -> vector<64x512xf32>
    %c0_5 = arith.constant 0 : index
    %c0_6 = arith.constant 0 : index
    %7 = vector.load %arg5[%c0_5, %c0_6] : memref<1x512xf32, #tpu.memory_space<vmem>>, vector<1x512xf32>
    %8 = vector.broadcast %7 : vector<1x512xf32> to vector<64x512xf32>
    %9 = arith.addf %6, %8 : vector<64x512xf32>
    %c0_7 = arith.constant 0 : index
    %c0_8 = arith.constant 0 : index
    %10 = vector.load %arg18[%c0_7, %c0_8] : memref<64x512xf32, #tpu.memory_space<vmem>>, vector<64x512xf32>
    tpu.vector_store %arg18[%c0_7, %c0_8], %9 {strides = array<i32>} : memref<64x512xf32, #tpu.memory_space<vmem>>, vector<64x512xf32>,
    %c0_9 = arith.constant 0 : index
    %c0_10 = arith.constant 0 : index
    %11 = vector.load %arg4[%c0_9, %c0_10] : memref<128x512xf32, #tpu.memory_space<vmem>>, vector<128x512xf32>
    %c0_11 = arith.constant 0 : index
    %c0_12 = arith.constant 0 : index
    %12 = vector.load %arg14[%c0_11, %c0_12] : memref<8x128xf32, #tpu.memory_space<vmem>>, vector<8x128xf32>
    %c0_13 = arith.constant 0 : index
    %c0_14 = arith.constant 0 : index
    %13 = vector.load %arg15[%c0_13, %c0_14] : memref<8x128xf32, #tpu.memory_space<vmem>>, vector<8x128xf32>
    %c0_i32_15 = arith.constant 0 : i32
    %c8_i32 = arith.constant 8 : i32
    %14 = arith.muli %c0_i32_15, %c8_i32 : i32
    %15 = tpu.assume_multiple %14, 8 : i32
    %16 = arith.index_cast %15 : i32 to index
    %c0_16 = arith.constant 0 : index
    %17 = vector.load %arg18[%16, %c0_16] : memref<64x512xf32, #tpu.memory_space<vmem>>, vector<8x512xf32>
    %cst_17 = arith.constant dense<0.000000e+00> : vector<8x512xf32>
    %18 = tpu.matmul %12, %11, %cst_17 {dimension_numbers = #tpu.dot_dimension_numbers<[1], [0], [0], [1], [0, 0, 1, 1], [], []>} : vector<8x128xf32>, vector<128x512xf32>, vector<8x512xf32> -> vector<8x512xf32>
    %19 = arith.addf %17, %18 : vector<8x512xf32>
    %20 = vector.extract_strided_slice %19 {offsets = [0, 0], sizes = [8, 384], strides = [1, 1]} : vector<8x512xf32> to vector<8x384xf32>
    %21 = arith.negf %20 : vector<8x384xf32>
    %22 = math.exp %21 : vector<8x384xf32>
    %cst_18 = arith.constant 1.000000e+00 : f32
    %23 = vector.broadcast %cst_18 : f32 to vector<8x384xf32>
    %24 = arith.addf %23, %22 : vector<8x384xf32>
    %25 = arith.divf %23, %24 : vector<8x384xf32>
    %26 = vector.extract_strided_slice %25 {offsets = [0, 0], sizes = [8, 128], strides = [1, 1]} : vector<8x384xf32> to vector<8x128xf32>
    %27 = vector.extract_strided_slice %25 {offsets = [0, 128], sizes = [8, 128], strides = [1, 1]} : vector<8x384xf32> to vector<8x128xf32>
    %28 = vector.extract_strided_slice %25 {offsets = [0, 256], sizes = [8, 128], strides = [1, 1]} : vector<8x384xf32> to vector<8x128xf32>
    %29 = vector.extract_strided_slice %19 {offsets = [0, 384], sizes = [8, 128], strides = [1, 1]} : vector<8x512xf32> to vector<8x128xf32>
    %30 = math.tanh %29 : vector<8x128xf32>
    %31 = arith.mulf %27, %13 : vector<8x128xf32>
    %32 = arith.mulf %26, %30 : vector<8x128xf32>
    %33 = arith.addf %31, %32 : vector<8x128xf32>
    %34 = math.tanh %33 : vector<8x128xf32>
    %35 = arith.mulf %28, %34 : vector<8x128xf32>
    %36 = arith.index_cast %15 : i32 to index
    %c0_19 = arith.constant 0 : index
    %37 = vector.load %arg19[%36, %c0_19] : memref<64x128xf32, #tpu.memory_space<vmem>>, vector<8x128xf32>
    tpu.vector_store %arg19[%36, %c0_19], %35 {strides = array<i32>} : memref<64x128xf32, #tpu.memory_space<vmem>>, vector<8x128xf32>,
    %c1_i32 = arith.constant 1 : i32
    %c8_i32_20 = arith.constant 8 : i32
    %38 = arith.muli %c1_i32, %c8_i32_20 : i32
    %39 = tpu.assume_multiple %38, 8 : i32
    %40 = arith.index_cast %39 : i32 to index
    %c0_21 = arith.constant 0 : index
    %41 = vector.load %arg18[%40, %c0_21] : memref<64x512xf32, #tpu.memory_space<vmem>>, vector<8x512xf32>
    %cst_22 = arith.constant dense<0.000000e+00> : vector<8x512xf32>
    %42 = tpu.matmul %35, %11, %cst_22 {dimension_numbers = #tpu.dot_dimension_numbers<[1], [0], [0], [1], [0, 0, 1, 1], [], []>} : vector<8x128xf32>, vector<128x512xf32>, vector<8x512xf32> -> vector<8x512xf32>
    %43 = arith.addf %41, %42 : vector<8x512xf32>
    %44 = vector.extract_strided_slice %43 {offsets = [0, 0], sizes = [8, 384], strides = [1, 1]} : vector<8x512xf32> to vector<8x384xf32>
    %45 = arith.negf %44 : vector<8x384xf32>
    %46 = math.exp %45 : vector<8x384xf32>
    %cst_23 = arith.constant 1.000000e+00 : f32
    %47 = vector.broadcast %cst_23 : f32 to vector<8x384xf32>
    %48 = arith.addf %47, %46 : vector<8x384xf32>
    %49 = arith.divf %47, %48 : vector<8x384xf32>
    %50 = vector.extract_strided_slice %49 {offsets = [0, 0], sizes = [8, 128], strides = [1, 1]} : vector<8x384xf32> to vector<8x128xf32>
    %51 = vector.extract_strided_slice %49 {offsets = [0, 128], sizes = [8, 128], strides = [1, 1]} : vector<8x384xf32> to vector<8x128xf32>
    %52 = vector.extract_strided_slice %49 {offsets = [0, 256], sizes = [8, 128], strides = [1, 1]} : vector<8x384xf32> to vector<8x128xf32>
    %53 = vector.extract_strided_slice %43 {offsets = [0, 384], sizes = [8, 128], strides = [1, 1]} : vector<8x512xf32> to vector<8x128xf32>
    %54 = math.tanh %53 : vector<8x128xf32>
    %55 = arith.mulf %51, %33 : vector<8x128xf32>
    %56 = arith.mulf %50, %54 : vector<8x128xf32>
    %57 = arith.addf %55, %56 : vector<8x128xf32>
    %58 = math.tanh %57 : vector<8x128xf32>
    %59 = arith.mulf %52, %58 : vector<8x128xf32>
    %60 = arith.index_cast %39 : i32 to index
    %c0_24 = arith.constant 0 : index
    %61 = vector.load %arg19[%60, %c0_24] : memref<64x128xf32, #tpu.memory_space<vmem>>, vector<8x128xf32>
    tpu.vector_store %arg19[%60, %c0_24], %59 {strides = array<i32>} : memref<64x128xf32, #tpu.memory_space<vmem>>, vector<8x128xf32>,
    %c2_i32 = arith.constant 2 : i32
    %c8_i32_25 = arith.constant 8 : i32
    %62 = arith.muli %c2_i32, %c8_i32_25 : i32
    %63 = tpu.assume_multiple %62, 8 : i32
    %64 = arith.index_cast %63 : i32 to index
    %c0_26 = arith.constant 0 : index
    %65 = vector.load %arg18[%64, %c0_26] : memref<64x512xf32, #tpu.memory_space<vmem>>, vector<8x512xf32>
    %cst_27 = arith.constant dense<0.000000e+00> : vector<8x512xf32>
    %66 = tpu.matmul %59, %11, %cst_27 {dimension_numbers = #tpu.dot_dimension_numbers<[1], [0], [0], [1], [0, 0, 1, 1], [], []>} : vector<8x128xf32>, vector<128x512xf32>, vector<8x512xf32> -> vector<8x512xf32>
    %67 = arith.addf %65, %66 : vector<8x512xf32>
    %68 = vector.extract_strided_slice %67 {offsets = [0, 0], sizes = [8, 384], strides = [1, 1]} : vector<8x512xf32> to vector<8x384xf32>
    %69 = arith.negf %68 : vector<8x384xf32>
    %70 = math.exp %69 : vector<8x384xf32>
    %cst_28 = arith.constant 1.000000e+00 : f32
    %71 = vector.broadcast %cst_28 : f32 to vector<8x384xf32>
    %72 = arith.addf %71, %70 : vector<8x384xf32>
    %73 = arith.divf %71, %72 : vector<8x384xf32>
    %74 = vector.extract_strided_slice %73 {offsets = [0, 0], sizes = [8, 128], strides = [1, 1]} : vector<8x384xf32> to vector<8x128xf32>
    %75 = vector.extract_strided_slice %73 {offsets = [0, 128], sizes = [8, 128], strides = [1, 1]} : vector<8x384xf32> to vector<8x128xf32>
    %76 = vector.extract_strided_slice %73 {offsets = [0, 256], sizes = [8, 128], strides = [1, 1]} : vector<8x384xf32> to vector<8x128xf32>
    %77 = vector.extract_strided_slice %67 {offsets = [0, 384], sizes = [8, 128], strides = [1, 1]} : vector<8x512xf32> to vector<8x128xf32>
    %78 = math.tanh %77 : vector<8x128xf32>
    %79 = arith.mulf %75, %57 : vector<8x128xf32>
    %80 = arith.mulf %74, %78 : vector<8x128xf32>
    %81 = arith.addf %79, %80 : vector<8x128xf32>
    %82 = math.tanh %81 : vector<8x128xf32>
    %83 = arith.mulf %76, %82 : vector<8x128xf32>
    %84 = arith.index_cast %63 : i32 to index
    %c0_29 = arith.constant 0 : index
    %85 = vector.load %arg19[%84, %c0_29] : memref<64x128xf32, #tpu.memory_space<vmem>>, vector<8x128xf32>
    tpu.vector_store %arg19[%84, %c0_29], %83 {strides = array<i32>} : memref<64x128xf32, #tpu.memory_space<vmem>>, vector<8x128xf32>,
    %c3_i32 = arith.constant 3 : i32
    %c8_i32_30 = arith.constant 8 : i32
    %86 = arith.muli %c3_i32, %c8_i32_30 : i32
    %87 = tpu.assume_multiple %86, 8 : i32
    %88 = arith.index_cast %87 : i32 to index
    %c0_31 = arith.constant 0 : index
    %89 = vector.load %arg18[%88, %c0_31] : memref<64x512xf32, #tpu.memory_space<vmem>>, vector<8x512xf32>
    %cst_32 = arith.constant dense<0.000000e+00> : vector<8x512xf32>
    %90 = tpu.matmul %83, %11, %cst_32 {dimension_numbers = #tpu.dot_dimension_numbers<[1], [0], [0], [1], [0, 0, 1, 1], [], []>} : vector<8x128xf32>, vector<128x512xf32>, vector<8x512xf32> -> vector<8x512xf32>
    %91 = arith.addf %89, %90 : vector<8x512xf32>
    %92 = vector.extract_strided_slice %91 {offsets = [0, 0], sizes = [8, 384], strides = [1, 1]} : vector<8x512xf32> to vector<8x384xf32>
    %93 = arith.negf %92 : vector<8x384xf32>
    %94 = math.exp %93 : vector<8x384xf32>
    %cst_33 = arith.constant 1.000000e+00 : f32
    %95 = vector.broadcast %cst_33 : f32 to vector<8x384xf32>
    %96 = arith.addf %95, %94 : vector<8x384xf32>
    %97 = arith.divf %95, %96 : vector<8x384xf32>
    %98 = vector.extract_strided_slice %97 {offsets = [0, 0], sizes = [8, 128], strides = [1, 1]} : vector<8x384xf32> to vector<8x128xf32>
    %99 = vector.extract_strided_slice %97 {offsets = [0, 128], sizes = [8, 128], strides = [1, 1]} : vector<8x384xf32> to vector<8x128xf32>
    %100 = vector.extract_strided_slice %97 {offsets = [0, 256], sizes = [8, 128], strides = [1, 1]} : vector<8x384xf32> to vector<8x128xf32>
    %101 = vector.extract_strided_slice %91 {offsets = [0, 384], sizes = [8, 128], strides = [1, 1]} : vector<8x512xf32> to vector<8x128xf32>
    %102 = math.tanh %101 : vector<8x128xf32>
    %103 = arith.mulf %99, %81 : vector<8x128xf32>
    %104 = arith.mulf %98, %102 : vector<8x128xf32>
    %105 = arith.addf %103, %104 : vector<8x128xf32>
    %106 = math.tanh %105 : vector<8x128xf32>
    %107 = arith.mulf %100, %106 : vector<8x128xf32>
    %108 = arith.index_cast %87 : i32 to index
    %c0_34 = arith.constant 0 : index
    %109 = vector.load %arg19[%108, %c0_34] : memref<64x128xf32, #tpu.memory_space<vmem>>, vector<8x128xf32>
    tpu.vector_store %arg19[%108, %c0_34], %107 {strides = array<i32>} : memref<64x128xf32, #tpu.memory_space<vmem>>, vector<8x128xf32>,
    %c4_i32 = arith.constant 4 : i32
    %c8_i32_35 = arith.constant 8 : i32
    %110 = arith.muli %c4_i32, %c8_i32_35 : i32
    %111 = tpu.assume_multiple %110, 8 : i32
    %112 = arith.index_cast %111 : i32 to index
    %c0_36 = arith.constant 0 : index
    %113 = vector.load %arg18[%112, %c0_36] : memref<64x512xf32, #tpu.memory_space<vmem>>, vector<8x512xf32>
    %cst_37 = arith.constant dense<0.000000e+00> : vector<8x512xf32>
    %114 = tpu.matmul %107, %11, %cst_37 {dimension_numbers = #tpu.dot_dimension_numbers<[1], [0], [0], [1], [0, 0, 1, 1], [], []>} : vector<8x128xf32>, vector<128x512xf32>, vector<8x512xf32> -> vector<8x512xf32>
    %115 = arith.addf %113, %114 : vector<8x512xf32>
    %116 = vector.extract_strided_slice %115 {offsets = [0, 0], sizes = [8, 384], strides = [1, 1]} : vector<8x512xf32> to vector<8x384xf32>
    %117 = arith.negf %116 : vector<8x384xf32>
    %118 = math.exp %117 : vector<8x384xf32>
    %cst_38 = arith.constant 1.000000e+00 : f32
    %119 = vector.broadcast %cst_38 : f32 to vector<8x384xf32>
    %120 = arith.addf %119, %118 : vector<8x384xf32>
    %121 = arith.divf %119, %120 : vector<8x384xf32>
    %122 = vector.extract_strided_slice %121 {offsets = [0, 0], sizes = [8, 128], strides = [1, 1]} : vector<8x384xf32> to vector<8x128xf32>
    %123 = vector.extract_strided_slice %121 {offsets = [0, 128], sizes = [8, 128], strides = [1, 1]} : vector<8x384xf32> to vector<8x128xf32>
    %124 = vector.extract_strided_slice %121 {offsets = [0, 256], sizes = [8, 128], strides = [1, 1]} : vector<8x384xf32> to vector<8x128xf32>
    %125 = vector.extract_strided_slice %115 {offsets = [0, 384], sizes = [8, 128], strides = [1, 1]} : vector<8x512xf32> to vector<8x128xf32>
    %126 = math.tanh %125 : vector<8x128xf32>
    %127 = arith.mulf %123, %105 : vector<8x128xf32>
    %128 = arith.mulf %122, %126 : vector<8x128xf32>
    %129 = arith.addf %127, %128 : vector<8x128xf32>
    %130 = math.tanh %129 : vector<8x128xf32>
    %131 = arith.mulf %124, %130 : vector<8x128xf32>
    %132 = arith.index_cast %111 : i32 to index
    %c0_39 = arith.constant 0 : index
    %133 = vector.load %arg19[%132, %c0_39] : memref<64x128xf32, #tpu.memory_space<vmem>>, vector<8x128xf32>
    tpu.vector_store %arg19[%132, %c0_39], %131 {strides = array<i32>} : memref<64x128xf32, #tpu.memory_space<vmem>>, vector<8x128xf32>,
    %c5_i32 = arith.constant 5 : i32
    %c8_i32_40 = arith.constant 8 : i32
    %134 = arith.muli %c5_i32, %c8_i32_40 : i32
    %135 = tpu.assume_multiple %134, 8 : i32
    %136 = arith.index_cast %135 : i32 to index
    %c0_41 = arith.constant 0 : index
    %137 = vector.load %arg18[%136, %c0_41] : memref<64x512xf32, #tpu.memory_space<vmem>>, vector<8x512xf32>
    %cst_42 = arith.constant dense<0.000000e+00> : vector<8x512xf32>
    %138 = tpu.matmul %131, %11, %cst_42 {dimension_numbers = #tpu.dot_dimension_numbers<[1], [0], [0], [1], [0, 0, 1, 1], [], []>} : vector<8x128xf32>, vector<128x512xf32>, vector<8x512xf32> -> vector<8x512xf32>
    %139 = arith.addf %137, %138 : vector<8x512xf32>
    %140 = vector.extract_strided_slice %139 {offsets = [0, 0], sizes = [8, 384], strides = [1, 1]} : vector<8x512xf32> to vector<8x384xf32>
    %141 = arith.negf %140 : vector<8x384xf32>
    %142 = math.exp %141 : vector<8x384xf32>
    %cst_43 = arith.constant 1.000000e+00 : f32
    %143 = vector.broadcast %cst_43 : f32 to vector<8x384xf32>
    %144 = arith.addf %143, %142 : vector<8x384xf32>
    %145 = arith.divf %143, %144 : vector<8x384xf32>
    %146 = vector.extract_strided_slice %145 {offsets = [0, 0], sizes = [8, 128], strides = [1, 1]} : vector<8x384xf32> to vector<8x128xf32>
    %147 = vector.extract_strided_slice %145 {offsets = [0, 128], sizes = [8, 128], strides = [1, 1]} : vector<8x384xf32> to vector<8x128xf32>
    %148 = vector.extract_strided_slice %145 {offsets = [0, 256], sizes = [8, 128], strides = [1, 1]} : vector<8x384xf32> to vector<8x128xf32>
    %149 = vector.extract_strided_slice %139 {offsets = [0, 384], sizes = [8, 128], strides = [1, 1]} : vector<8x512xf32> to vector<8x128xf32>
    %150 = math.tanh %149 : vector<8x128xf32>
    %151 = arith.mulf %147, %129 : vector<8x128xf32>
    %152 = arith.mulf %146, %150 : vector<8x128xf32>
    %153 = arith.addf %151, %152 : vector<8x128xf32>
    %154 = math.tanh %153 : vector<8x128xf32>
    %155 = arith.mulf %148, %154 : vector<8x128xf32>
    %156 = arith.index_cast %135 : i32 to index
    %c0_44 = arith.constant 0 : index
    %157 = vector.load %arg19[%156, %c0_44] : memref<64x128xf32, #tpu.memory_space<vmem>>, vector<8x128xf32>
    tpu.vector_store %arg19[%156, %c0_44], %155 {strides = array<i32>} : memref<64x128xf32, #tpu.memory_space<vmem>>, vector<8x128xf32>,
    %c6_i32 = arith.constant 6 : i32
    %c8_i32_45 = arith.constant 8 : i32
    %158 = arith.muli %c6_i32, %c8_i32_45 : i32
    %159 = tpu.assume_multiple %158, 8 : i32
    %160 = arith.index_cast %159 : i32 to index
    %c0_46 = arith.constant 0 : index
    %161 = vector.load %arg18[%160, %c0_46] : memref<64x512xf32, #tpu.memory_space<vmem>>, vector<8x512xf32>
    %cst_47 = arith.constant dense<0.000000e+00> : vector<8x512xf32>
    %162 = tpu.matmul %155, %11, %cst_47 {dimension_numbers = #tpu.dot_dimension_numbers<[1], [0], [0], [1], [0, 0, 1, 1], [], []>} : vector<8x128xf32>, vector<128x512xf32>, vector<8x512xf32> -> vector<8x512xf32>
    %163 = arith.addf %161, %162 : vector<8x512xf32>
    %164 = vector.extract_strided_slice %163 {offsets = [0, 0], sizes = [8, 384], strides = [1, 1]} : vector<8x512xf32> to vector<8x384xf32>
    %165 = arith.negf %164 : vector<8x384xf32>
    %166 = math.exp %165 : vector<8x384xf32>
    %cst_48 = arith.constant 1.000000e+00 : f32
    %167 = vector.broadcast %cst_48 : f32 to vector<8x384xf32>
    %168 = arith.addf %167, %166 : vector<8x384xf32>
    %169 = arith.divf %167, %168 : vector<8x384xf32>
    %170 = vector.extract_strided_slice %169 {offsets = [0, 0], sizes = [8, 128], strides = [1, 1]} : vector<8x384xf32> to vector<8x128xf32>
    %171 = vector.extract_strided_slice %169 {offsets = [0, 128], sizes = [8, 128], strides = [1, 1]} : vector<8x384xf32> to vector<8x128xf32>
    %172 = vector.extract_strided_slice %169 {offsets = [0, 256], sizes = [8, 128], strides = [1, 1]} : vector<8x384xf32> to vector<8x128xf32>
    %173 = vector.extract_strided_slice %163 {offsets = [0, 384], sizes = [8, 128], strides = [1, 1]} : vector<8x512xf32> to vector<8x128xf32>
    %174 = math.tanh %173 : vector<8x128xf32>
    %175 = arith.mulf %171, %153 : vector<8x128xf32>
    %176 = arith.mulf %170, %174 : vector<8x128xf32>
    %177 = arith.addf %175, %176 : vector<8x128xf32>
    %178 = math.tanh %177 : vector<8x128xf32>
    %179 = arith.mulf %172, %178 : vector<8x128xf32>
    %180 = arith.index_cast %159 : i32 to index
    %c0_49 = arith.constant 0 : index
    %181 = vector.load %arg19[%180, %c0_49] : memref<64x128xf32, #tpu.memory_space<vmem>>, vector<8x128xf32>
    tpu.vector_store %arg19[%180, %c0_49], %179 {strides = array<i32>} : memref<64x128xf32, #tpu.memory_space<vmem>>, vector<8x128xf32>,
    %c7_i32 = arith.constant 7 : i32
    %c8_i32_50 = arith.constant 8 : i32
    %182 = arith.muli %c7_i32, %c8_i32_50 : i32
    %183 = tpu.assume_multiple %182, 8 : i32
    %184 = arith.index_cast %183 : i32 to index
    %c0_51 = arith.constant 0 : index
    %185 = vector.load %arg18[%184, %c0_51] : memref<64x512xf32, #tpu.memory_space<vmem>>, vector<8x512xf32>
    %cst_52 = arith.constant dense<0.000000e+00> : vector<8x512xf32>
    %186 = tpu.matmul %179, %11, %cst_52 {dimension_numbers = #tpu.dot_dimension_numbers<[1], [0], [0], [1], [0, 0, 1, 1], [], []>} : vector<8x128xf32>, vector<128x512xf32>, vector<8x512xf32> -> vector<8x512xf32>
    %187 = arith.addf %185, %186 : vector<8x512xf32>
    %188 = vector.extract_strided_slice %187 {offsets = [0, 0], sizes = [8, 384], strides = [1, 1]} : vector<8x512xf32> to vector<8x384xf32>
    %189 = arith.negf %188 : vector<8x384xf32>
    %190 = math.exp %189 : vector<8x384xf32>
    %cst_53 = arith.constant 1.000000e+00 : f32
    %191 = vector.broadcast %cst_53 : f32 to vector<8x384xf32>
    %192 = arith.addf %191, %190 : vector<8x384xf32>
    %193 = arith.divf %191, %192 : vector<8x384xf32>
    %194 = vector.extract_strided_slice %193 {offsets = [0, 0], sizes = [8, 128], strides = [1, 1]} : vector<8x384xf32> to vector<8x128xf32>
    %195 = vector.extract_strided_slice %193 {offsets = [0, 128], sizes = [8, 128], strides = [1, 1]} : vector<8x384xf32> to vector<8x128xf32>
    %196 = vector.extract_strided_slice %193 {offsets = [0, 256], sizes = [8, 128], strides = [1, 1]} : vector<8x384xf32> to vector<8x128xf32>
    %197 = vector.extract_strided_slice %187 {offsets = [0, 384], sizes = [8, 128], strides = [1, 1]} : vector<8x512xf32> to vector<8x128xf32>
    %198 = math.tanh %197 : vector<8x128xf32>
    %199 = arith.mulf %195, %177 : vector<8x128xf32>
    %200 = arith.mulf %194, %198 : vector<8x128xf32>
    %201 = arith.addf %199, %200 : vector<8x128xf32>
    %202 = math.tanh %201 : vector<8x128xf32>
    %203 = arith.mulf %196, %202 : vector<8x128xf32>
    %204 = arith.index_cast %183 : i32 to index
    %c0_54 = arith.constant 0 : index
    %205 = vector.load %arg19[%204, %c0_54] : memref<64x128xf32, #tpu.memory_space<vmem>>, vector<8x128xf32>
    tpu.vector_store %arg19[%204, %c0_54], %203 {strides = array<i32>} : memref<64x128xf32, #tpu.memory_space<vmem>>, vector<8x128xf32>,
    %c8_i32_55 = arith.constant 8 : i32
    %c0_56 = arith.constant 0 : index
    %c0_57 = arith.constant 0 : index
    %206 = vector.load %arg14[%c0_56, %c0_57] : memref<8x128xf32, #tpu.memory_space<vmem>>, vector<8x128xf32>
    tpu.vector_store %arg14[%c0_56, %c0_57], %203 {strides = array<i32>} : memref<8x128xf32, #tpu.memory_space<vmem>>, vector<8x128xf32>,
    %c0_58 = arith.constant 0 : index
    %c0_59 = arith.constant 0 : index
    %207 = vector.load %arg15[%c0_58, %c0_59] : memref<8x128xf32, #tpu.memory_space<vmem>>, vector<8x128xf32>
    tpu.vector_store %arg15[%c0_58, %c0_59], %201 {strides = array<i32>} : memref<8x128xf32, #tpu.memory_space<vmem>>, vector<8x128xf32>,
    %c0_60 = arith.constant 0 : index
    %c0_61 = arith.constant 0 : index
    %208 = vector.load %arg19[%c0_60, %c0_61] : memref<64x128xf32, #tpu.memory_space<vmem>>, vector<64x128xf32>
    %c0_62 = arith.constant 0 : index
    %c0_63 = arith.constant 0 : index
    %209 = vector.load %arg6[%c0_62, %c0_63] : memref<128x512xf32, #tpu.memory_space<vmem>>, vector<128x512xf32>
    %cst_64 = arith.constant dense<0.000000e+00> : vector<64x512xf32>
    %210 = tpu.matmul %208, %209, %cst_64 {dimension_numbers = #tpu.dot_dimension_numbers<[1], [0], [0], [1], [0, 0, 1, 1], [], []>} : vector<64x128xf32>, vector<128x512xf32>, vector<64x512xf32> -> vector<64x512xf32>
    %c0_65 = arith.constant 0 : index
    %c0_66 = arith.constant 0 : index
    %211 = vector.load %arg8[%c0_65, %c0_66] : memref<1x512xf32, #tpu.memory_space<vmem>>, vector<1x512xf32>
    %212 = vector.broadcast %211 : vector<1x512xf32> to vector<64x512xf32>
    %213 = arith.addf %210, %212 : vector<64x512xf32>
    %c0_67 = arith.constant 0 : index
    %c0_68 = arith.constant 0 : index
    %214 = vector.load %arg18[%c0_67, %c0_68] : memref<64x512xf32, #tpu.memory_space<vmem>>, vector<64x512xf32>
    tpu.vector_store %arg18[%c0_67, %c0_68], %213 {strides = array<i32>} : memref<64x512xf32, #tpu.memory_space<vmem>>, vector<64x512xf32>,
    %c0_69 = arith.constant 0 : index
    %c0_70 = arith.constant 0 : index
    %215 = vector.load %arg7[%c0_69, %c0_70] : memref<128x512xf32, #tpu.memory_space<vmem>>, vector<128x512xf32>
    %c0_71 = arith.constant 0 : index
    %c0_72 = arith.constant 0 : index
    %216 = vector.load %arg16[%c0_71, %c0_72] : memref<8x128xf32, #tpu.memory_space<vmem>>, vector<8x128xf32>
    %c0_73 = arith.constant 0 : index
    %c0_74 = arith.constant 0 : index
    %217 = vector.load %arg17[%c0_73, %c0_74] : memref<8x128xf32, #tpu.memory_space<vmem>>, vector<8x128xf32>
    %c0_i32_75 = arith.constant 0 : i32
    %c8_i32_76 = arith.constant 8 : i32
    %218 = arith.muli %c0_i32_75, %c8_i32_76 : i32
    %219 = tpu.assume_multiple %218, 8 : i32
    %220 = arith.index_cast %219 : i32 to index
    %c0_77 = arith.constant 0 : index
    %221 = vector.load %arg18[%220, %c0_77] : memref<64x512xf32, #tpu.memory_space<vmem>>, vector<8x512xf32>
    %cst_78 = arith.constant dense<0.000000e+00> : vector<8x512xf32>
    %222 = tpu.matmul %216, %215, %cst_78 {dimension_numbers = #tpu.dot_dimension_numbers<[1], [0], [0], [1], [0, 0, 1, 1], [], []>} : vector<8x128xf32>, vector<128x512xf32>, vector<8x512xf32> -> vector<8x512xf32>
    %223 = arith.addf %221, %222 : vector<8x512xf32>
    %224 = vector.extract_strided_slice %223 {offsets = [0, 0], sizes = [8, 384], strides = [1, 1]} : vector<8x512xf32> to vector<8x384xf32>
    %225 = arith.negf %224 : vector<8x384xf32>
    %226 = math.exp %225 : vector<8x384xf32>
    %cst_79 = arith.constant 1.000000e+00 : f32
    %227 = vector.broadcast %cst_79 : f32 to vector<8x384xf32>
    %228 = arith.addf %227, %226 : vector<8x384xf32>
    %229 = arith.divf %227, %228 : vector<8x384xf32>
    %230 = vector.extract_strided_slice %229 {offsets = [0, 0], sizes = [8, 128], strides = [1, 1]} : vector<8x384xf32> to vector<8x128xf32>
    %231 = vector.extract_strided_slice %229 {offsets = [0, 128], sizes = [8, 128], strides = [1, 1]} : vector<8x384xf32> to vector<8x128xf32>
    %232 = vector.extract_strided_slice %229 {offsets = [0, 256], sizes = [8, 128], strides = [1, 1]} : vector<8x384xf32> to vector<8x128xf32>
    %233 = vector.extract_strided_slice %223 {offsets = [0, 384], sizes = [8, 128], strides = [1, 1]} : vector<8x512xf32> to vector<8x128xf32>
    %234 = math.tanh %233 : vector<8x128xf32>
    %235 = arith.mulf %231, %217 : vector<8x128xf32>
    %236 = arith.mulf %230, %234 : vector<8x128xf32>
    %237 = arith.addf %235, %236 : vector<8x128xf32>
    %238 = math.tanh %237 : vector<8x128xf32>
    %239 = arith.mulf %232, %238 : vector<8x128xf32>
    %240 = arith.index_cast %219 : i32 to index
    %c0_80 = arith.constant 0 : index
    %241 = vector.load %arg19[%240, %c0_80] : memref<64x128xf32, #tpu.memory_space<vmem>>, vector<8x128xf32>
    tpu.vector_store %arg19[%240, %c0_80], %239 {strides = array<i32>} : memref<64x128xf32, #tpu.memory_space<vmem>>, vector<8x128xf32>,
    %c1_i32_81 = arith.constant 1 : i32
    %c8_i32_82 = arith.constant 8 : i32
    %242 = arith.muli %c1_i32_81, %c8_i32_82 : i32
    %243 = tpu.assume_multiple %242, 8 : i32
    %244 = arith.index_cast %243 : i32 to index
    %c0_83 = arith.constant 0 : index
    %245 = vector.load %arg18[%244, %c0_83] : memref<64x512xf32, #tpu.memory_space<vmem>>, vector<8x512xf32>
    %cst_84 = arith.constant dense<0.000000e+00> : vector<8x512xf32>
    %246 = tpu.matmul %239, %215, %cst_84 {dimension_numbers = #tpu.dot_dimension_numbers<[1], [0], [0], [1], [0, 0, 1, 1], [], []>} : vector<8x128xf32>, vector<128x512xf32>, vector<8x512xf32> -> vector<8x512xf32>
    %247 = arith.addf %245, %246 : vector<8x512xf32>
    %248 = vector.extract_strided_slice %247 {offsets = [0, 0], sizes = [8, 384], strides = [1, 1]} : vector<8x512xf32> to vector<8x384xf32>
    %249 = arith.negf %248 : vector<8x384xf32>
    %250 = math.exp %249 : vector<8x384xf32>
    %cst_85 = arith.constant 1.000000e+00 : f32
    %251 = vector.broadcast %cst_85 : f32 to vector<8x384xf32>
    %252 = arith.addf %251, %250 : vector<8x384xf32>
    %253 = arith.divf %251, %252 : vector<8x384xf32>
    %254 = vector.extract_strided_slice %253 {offsets = [0, 0], sizes = [8, 128], strides = [1, 1]} : vector<8x384xf32> to vector<8x128xf32>
    %255 = vector.extract_strided_slice %253 {offsets = [0, 128], sizes = [8, 128], strides = [1, 1]} : vector<8x384xf32> to vector<8x128xf32>
    %256 = vector.extract_strided_slice %253 {offsets = [0, 256], sizes = [8, 128], strides = [1, 1]} : vector<8x384xf32> to vector<8x128xf32>
    %257 = vector.extract_strided_slice %247 {offsets = [0, 384], sizes = [8, 128], strides = [1, 1]} : vector<8x512xf32> to vector<8x128xf32>
    %258 = math.tanh %257 : vector<8x128xf32>
    %259 = arith.mulf %255, %237 : vector<8x128xf32>
    %260 = arith.mulf %254, %258 : vector<8x128xf32>
    %261 = arith.addf %259, %260 : vector<8x128xf32>
    %262 = math.tanh %261 : vector<8x128xf32>
    %263 = arith.mulf %256, %262 : vector<8x128xf32>
    %264 = arith.index_cast %243 : i32 to index
    %c0_86 = arith.constant 0 : index
    %265 = vector.load %arg19[%264, %c0_86] : memref<64x128xf32, #tpu.memory_space<vmem>>, vector<8x128xf32>
    tpu.vector_store %arg19[%264, %c0_86], %263 {strides = array<i32>} : memref<64x128xf32, #tpu.memory_space<vmem>>, vector<8x128xf32>,
    %c2_i32_87 = arith.constant 2 : i32
    %c8_i32_88 = arith.constant 8 : i32
    %266 = arith.muli %c2_i32_87, %c8_i32_88 : i32
    %267 = tpu.assume_multiple %266, 8 : i32
    %268 = arith.index_cast %267 : i32 to index
    %c0_89 = arith.constant 0 : index
    %269 = vector.load %arg18[%268, %c0_89] : memref<64x512xf32, #tpu.memory_space<vmem>>, vector<8x512xf32>
    %cst_90 = arith.constant dense<0.000000e+00> : vector<8x512xf32>
    %270 = tpu.matmul %263, %215, %cst_90 {dimension_numbers = #tpu.dot_dimension_numbers<[1], [0], [0], [1], [0, 0, 1, 1], [], []>} : vector<8x128xf32>, vector<128x512xf32>, vector<8x512xf32> -> vector<8x512xf32>
    %271 = arith.addf %269, %270 : vector<8x512xf32>
    %272 = vector.extract_strided_slice %271 {offsets = [0, 0], sizes = [8, 384], strides = [1, 1]} : vector<8x512xf32> to vector<8x384xf32>
    %273 = arith.negf %272 : vector<8x384xf32>
    %274 = math.exp %273 : vector<8x384xf32>
    %cst_91 = arith.constant 1.000000e+00 : f32
    %275 = vector.broadcast %cst_91 : f32 to vector<8x384xf32>
    %276 = arith.addf %275, %274 : vector<8x384xf32>
    %277 = arith.divf %275, %276 : vector<8x384xf32>
    %278 = vector.extract_strided_slice %277 {offsets = [0, 0], sizes = [8, 128], strides = [1, 1]} : vector<8x384xf32> to vector<8x128xf32>
    %279 = vector.extract_strided_slice %277 {offsets = [0, 128], sizes = [8, 128], strides = [1, 1]} : vector<8x384xf32> to vector<8x128xf32>
    %280 = vector.extract_strided_slice %277 {offsets = [0, 256], sizes = [8, 128], strides = [1, 1]} : vector<8x384xf32> to vector<8x128xf32>
    %281 = vector.extract_strided_slice %271 {offsets = [0, 384], sizes = [8, 128], strides = [1, 1]} : vector<8x512xf32> to vector<8x128xf32>
    %282 = math.tanh %281 : vector<8x128xf32>
    %283 = arith.mulf %279, %261 : vector<8x128xf32>
    %284 = arith.mulf %278, %282 : vector<8x128xf32>
    %285 = arith.addf %283, %284 : vector<8x128xf32>
    %286 = math.tanh %285 : vector<8x128xf32>
    %287 = arith.mulf %280, %286 : vector<8x128xf32>
    %288 = arith.index_cast %267 : i32 to index
    %c0_92 = arith.constant 0 : index
    %289 = vector.load %arg19[%288, %c0_92] : memref<64x128xf32, #tpu.memory_space<vmem>>, vector<8x128xf32>
    tpu.vector_store %arg19[%288, %c0_92], %287 {strides = array<i32>} : memref<64x128xf32, #tpu.memory_space<vmem>>, vector<8x128xf32>,
    %c3_i32_93 = arith.constant 3 : i32
    %c8_i32_94 = arith.constant 8 : i32
    %290 = arith.muli %c3_i32_93, %c8_i32_94 : i32
    %291 = tpu.assume_multiple %290, 8 : i32
    %292 = arith.index_cast %291 : i32 to index
    %c0_95 = arith.constant 0 : index
    %293 = vector.load %arg18[%292, %c0_95] : memref<64x512xf32, #tpu.memory_space<vmem>>, vector<8x512xf32>
    %cst_96 = arith.constant dense<0.000000e+00> : vector<8x512xf32>
    %294 = tpu.matmul %287, %215, %cst_96 {dimension_numbers = #tpu.dot_dimension_numbers<[1], [0], [0], [1], [0, 0, 1, 1], [], []>} : vector<8x128xf32>, vector<128x512xf32>, vector<8x512xf32> -> vector<8x512xf32>
    %295 = arith.addf %293, %294 : vector<8x512xf32>
    %296 = vector.extract_strided_slice %295 {offsets = [0, 0], sizes = [8, 384], strides = [1, 1]} : vector<8x512xf32> to vector<8x384xf32>
    %297 = arith.negf %296 : vector<8x384xf32>
    %298 = math.exp %297 : vector<8x384xf32>
    %cst_97 = arith.constant 1.000000e+00 : f32
    %299 = vector.broadcast %cst_97 : f32 to vector<8x384xf32>
    %300 = arith.addf %299, %298 : vector<8x384xf32>
    %301 = arith.divf %299, %300 : vector<8x384xf32>
    %302 = vector.extract_strided_slice %301 {offsets = [0, 0], sizes = [8, 128], strides = [1, 1]} : vector<8x384xf32> to vector<8x128xf32>
    %303 = vector.extract_strided_slice %301 {offsets = [0, 128], sizes = [8, 128], strides = [1, 1]} : vector<8x384xf32> to vector<8x128xf32>
    %304 = vector.extract_strided_slice %301 {offsets = [0, 256], sizes = [8, 128], strides = [1, 1]} : vector<8x384xf32> to vector<8x128xf32>
    %305 = vector.extract_strided_slice %295 {offsets = [0, 384], sizes = [8, 128], strides = [1, 1]} : vector<8x512xf32> to vector<8x128xf32>
    %306 = math.tanh %305 : vector<8x128xf32>
    %307 = arith.mulf %303, %285 : vector<8x128xf32>
    %308 = arith.mulf %302, %306 : vector<8x128xf32>
    %309 = arith.addf %307, %308 : vector<8x128xf32>
    %310 = math.tanh %309 : vector<8x128xf32>
    %311 = arith.mulf %304, %310 : vector<8x128xf32>
    %312 = arith.index_cast %291 : i32 to index
    %c0_98 = arith.constant 0 : index
    %313 = vector.load %arg19[%312, %c0_98] : memref<64x128xf32, #tpu.memory_space<vmem>>, vector<8x128xf32>
    tpu.vector_store %arg19[%312, %c0_98], %311 {strides = array<i32>} : memref<64x128xf32, #tpu.memory_space<vmem>>, vector<8x128xf32>,
    %c4_i32_99 = arith.constant 4 : i32
    %c8_i32_100 = arith.constant 8 : i32
    %314 = arith.muli %c4_i32_99, %c8_i32_100 : i32
    %315 = tpu.assume_multiple %314, 8 : i32
    %316 = arith.index_cast %315 : i32 to index
    %c0_101 = arith.constant 0 : index
    %317 = vector.load %arg18[%316, %c0_101] : memref<64x512xf32, #tpu.memory_space<vmem>>, vector<8x512xf32>
    %cst_102 = arith.constant dense<0.000000e+00> : vector<8x512xf32>
    %318 = tpu.matmul %311, %215, %cst_102 {dimension_numbers = #tpu.dot_dimension_numbers<[1], [0], [0], [1], [0, 0, 1, 1], [], []>} : vector<8x128xf32>, vector<128x512xf32>, vector<8x512xf32> -> vector<8x512xf32>
    %319 = arith.addf %317, %318 : vector<8x512xf32>
    %320 = vector.extract_strided_slice %319 {offsets = [0, 0], sizes = [8, 384], strides = [1, 1]} : vector<8x512xf32> to vector<8x384xf32>
    %321 = arith.negf %320 : vector<8x384xf32>
    %322 = math.exp %321 : vector<8x384xf32>
    %cst_103 = arith.constant 1.000000e+00 : f32
    %323 = vector.broadcast %cst_103 : f32 to vector<8x384xf32>
    %324 = arith.addf %323, %322 : vector<8x384xf32>
    %325 = arith.divf %323, %324 : vector<8x384xf32>
    %326 = vector.extract_strided_slice %325 {offsets = [0, 0], sizes = [8, 128], strides = [1, 1]} : vector<8x384xf32> to vector<8x128xf32>
    %327 = vector.extract_strided_slice %325 {offsets = [0, 128], sizes = [8, 128], strides = [1, 1]} : vector<8x384xf32> to vector<8x128xf32>
    %328 = vector.extract_strided_slice %325 {offsets = [0, 256], sizes = [8, 128], strides = [1, 1]} : vector<8x384xf32> to vector<8x128xf32>
    %329 = vector.extract_strided_slice %319 {offsets = [0, 384], sizes = [8, 128], strides = [1, 1]} : vector<8x512xf32> to vector<8x128xf32>
    %330 = math.tanh %329 : vector<8x128xf32>
    %331 = arith.mulf %327, %309 : vector<8x128xf32>
    %332 = arith.mulf %326, %330 : vector<8x128xf32>
    %333 = arith.addf %331, %332 : vector<8x128xf32>
    %334 = math.tanh %333 : vector<8x128xf32>
    %335 = arith.mulf %328, %334 : vector<8x128xf32>
    %336 = arith.index_cast %315 : i32 to index
    %c0_104 = arith.constant 0 : index
    %337 = vector.load %arg19[%336, %c0_104] : memref<64x128xf32, #tpu.memory_space<vmem>>, vector<8x128xf32>
    tpu.vector_store %arg19[%336, %c0_104], %335 {strides = array<i32>} : memref<64x128xf32, #tpu.memory_space<vmem>>, vector<8x128xf32>,
    %c5_i32_105 = arith.constant 5 : i32
    %c8_i32_106 = arith.constant 8 : i32
    %338 = arith.muli %c5_i32_105, %c8_i32_106 : i32
    %339 = tpu.assume_multiple %338, 8 : i32
    %340 = arith.index_cast %339 : i32 to index
    %c0_107 = arith.constant 0 : index
    %341 = vector.load %arg18[%340, %c0_107] : memref<64x512xf32, #tpu.memory_space<vmem>>, vector<8x512xf32>
    %cst_108 = arith.constant dense<0.000000e+00> : vector<8x512xf32>
    %342 = tpu.matmul %335, %215, %cst_108 {dimension_numbers = #tpu.dot_dimension_numbers<[1], [0], [0], [1], [0, 0, 1, 1], [], []>} : vector<8x128xf32>, vector<128x512xf32>, vector<8x512xf32> -> vector<8x512xf32>
    %343 = arith.addf %341, %342 : vector<8x512xf32>
    %344 = vector.extract_strided_slice %343 {offsets = [0, 0], sizes = [8, 384], strides = [1, 1]} : vector<8x512xf32> to vector<8x384xf32>
    %345 = arith.negf %344 : vector<8x384xf32>
    %346 = math.exp %345 : vector<8x384xf32>
    %cst_109 = arith.constant 1.000000e+00 : f32
    %347 = vector.broadcast %cst_109 : f32 to vector<8x384xf32>
    %348 = arith.addf %347, %346 : vector<8x384xf32>
    %349 = arith.divf %347, %348 : vector<8x384xf32>
    %350 = vector.extract_strided_slice %349 {offsets = [0, 0], sizes = [8, 128], strides = [1, 1]} : vector<8x384xf32> to vector<8x128xf32>
    %351 = vector.extract_strided_slice %349 {offsets = [0, 128], sizes = [8, 128], strides = [1, 1]} : vector<8x384xf32> to vector<8x128xf32>
    %352 = vector.extract_strided_slice %349 {offsets = [0, 256], sizes = [8, 128], strides = [1, 1]} : vector<8x384xf32> to vector<8x128xf32>
    %353 = vector.extract_strided_slice %343 {offsets = [0, 384], sizes = [8, 128], strides = [1, 1]} : vector<8x512xf32> to vector<8x128xf32>
    %354 = math.tanh %353 : vector<8x128xf32>
    %355 = arith.mulf %351, %333 : vector<8x128xf32>
    %356 = arith.mulf %350, %354 : vector<8x128xf32>
    %357 = arith.addf %355, %356 : vector<8x128xf32>
    %358 = math.tanh %357 : vector<8x128xf32>
    %359 = arith.mulf %352, %358 : vector<8x128xf32>
    %360 = arith.index_cast %339 : i32 to index
    %c0_110 = arith.constant 0 : index
    %361 = vector.load %arg19[%360, %c0_110] : memref<64x128xf32, #tpu.memory_space<vmem>>, vector<8x128xf32>
    tpu.vector_store %arg19[%360, %c0_110], %359 {strides = array<i32>} : memref<64x128xf32, #tpu.memory_space<vmem>>, vector<8x128xf32>,
    %c6_i32_111 = arith.constant 6 : i32
    %c8_i32_112 = arith.constant 8 : i32
    %362 = arith.muli %c6_i32_111, %c8_i32_112 : i32
    %363 = tpu.assume_multiple %362, 8 : i32
    %364 = arith.index_cast %363 : i32 to index
    %c0_113 = arith.constant 0 : index
    %365 = vector.load %arg18[%364, %c0_113] : memref<64x512xf32, #tpu.memory_space<vmem>>, vector<8x512xf32>
    %cst_114 = arith.constant dense<0.000000e+00> : vector<8x512xf32>
    %366 = tpu.matmul %359, %215, %cst_114 {dimension_numbers = #tpu.dot_dimension_numbers<[1], [0], [0], [1], [0, 0, 1, 1], [], []>} : vector<8x128xf32>, vector<128x512xf32>, vector<8x512xf32> -> vector<8x512xf32>
    %367 = arith.addf %365, %366 : vector<8x512xf32>
    %368 = vector.extract_strided_slice %367 {offsets = [0, 0], sizes = [8, 384], strides = [1, 1]} : vector<8x512xf32> to vector<8x384xf32>
    %369 = arith.negf %368 : vector<8x384xf32>
    %370 = math.exp %369 : vector<8x384xf32>
    %cst_115 = arith.constant 1.000000e+00 : f32
    %371 = vector.broadcast %cst_115 : f32 to vector<8x384xf32>
    %372 = arith.addf %371, %370 : vector<8x384xf32>
    %373 = arith.divf %371, %372 : vector<8x384xf32>
    %374 = vector.extract_strided_slice %373 {offsets = [0, 0], sizes = [8, 128], strides = [1, 1]} : vector<8x384xf32> to vector<8x128xf32>
    %375 = vector.extract_strided_slice %373 {offsets = [0, 128], sizes = [8, 128], strides = [1, 1]} : vector<8x384xf32> to vector<8x128xf32>
    %376 = vector.extract_strided_slice %373 {offsets = [0, 256], sizes = [8, 128], strides = [1, 1]} : vector<8x384xf32> to vector<8x128xf32>
    %377 = vector.extract_strided_slice %367 {offsets = [0, 384], sizes = [8, 128], strides = [1, 1]} : vector<8x512xf32> to vector<8x128xf32>
    %378 = math.tanh %377 : vector<8x128xf32>
    %379 = arith.mulf %375, %357 : vector<8x128xf32>
    %380 = arith.mulf %374, %378 : vector<8x128xf32>
    %381 = arith.addf %379, %380 : vector<8x128xf32>
    %382 = math.tanh %381 : vector<8x128xf32>
    %383 = arith.mulf %376, %382 : vector<8x128xf32>
    %384 = arith.index_cast %363 : i32 to index
    %c0_116 = arith.constant 0 : index
    %385 = vector.load %arg19[%384, %c0_116] : memref<64x128xf32, #tpu.memory_space<vmem>>, vector<8x128xf32>
    tpu.vector_store %arg19[%384, %c0_116], %383 {strides = array<i32>} : memref<64x128xf32, #tpu.memory_space<vmem>>, vector<8x128xf32>,
    %c7_i32_117 = arith.constant 7 : i32
    %c8_i32_118 = arith.constant 8 : i32
    %386 = arith.muli %c7_i32_117, %c8_i32_118 : i32
    %387 = tpu.assume_multiple %386, 8 : i32
    %388 = arith.index_cast %387 : i32 to index
    %c0_119 = arith.constant 0 : index
    %389 = vector.load %arg18[%388, %c0_119] : memref<64x512xf32, #tpu.memory_space<vmem>>, vector<8x512xf32>
    %cst_120 = arith.constant dense<0.000000e+00> : vector<8x512xf32>
    %390 = tpu.matmul %383, %215, %cst_120 {dimension_numbers = #tpu.dot_dimension_numbers<[1], [0], [0], [1], [0, 0, 1, 1], [], []>} : vector<8x128xf32>, vector<128x512xf32>, vector<8x512xf32> -> vector<8x512xf32>
    %391 = arith.addf %389, %390 : vector<8x512xf32>
    %392 = vector.extract_strided_slice %391 {offsets = [0, 0], sizes = [8, 384], strides = [1, 1]} : vector<8x512xf32> to vector<8x384xf32>
    %393 = arith.negf %392 : vector<8x384xf32>
    %394 = math.exp %393 : vector<8x384xf32>
    %cst_121 = arith.constant 1.000000e+00 : f32
    %395 = vector.broadcast %cst_121 : f32 to vector<8x384xf32>
    %396 = arith.addf %395, %394 : vector<8x384xf32>
    %397 = arith.divf %395, %396 : vector<8x384xf32>
    %398 = vector.extract_strided_slice %397 {offsets = [0, 0], sizes = [8, 128], strides = [1, 1]} : vector<8x384xf32> to vector<8x128xf32>
    %399 = vector.extract_strided_slice %397 {offsets = [0, 128], sizes = [8, 128], strides = [1, 1]} : vector<8x384xf32> to vector<8x128xf32>
    %400 = vector.extract_strided_slice %397 {offsets = [0, 256], sizes = [8, 128], strides = [1, 1]} : vector<8x384xf32> to vector<8x128xf32>
    %401 = vector.extract_strided_slice %391 {offsets = [0, 384], sizes = [8, 128], strides = [1, 1]} : vector<8x512xf32> to vector<8x128xf32>
    %402 = math.tanh %401 : vector<8x128xf32>
    %403 = arith.mulf %399, %381 : vector<8x128xf32>
    %404 = arith.mulf %398, %402 : vector<8x128xf32>
    %405 = arith.addf %403, %404 : vector<8x128xf32>
    %406 = math.tanh %405 : vector<8x128xf32>
    %407 = arith.mulf %400, %406 : vector<8x128xf32>
    %408 = arith.index_cast %387 : i32 to index
    %c0_122 = arith.constant 0 : index
    %409 = vector.load %arg19[%408, %c0_122] : memref<64x128xf32, #tpu.memory_space<vmem>>, vector<8x128xf32>
    tpu.vector_store %arg19[%408, %c0_122], %407 {strides = array<i32>} : memref<64x128xf32, #tpu.memory_space<vmem>>, vector<8x128xf32>,
    %c8_i32_123 = arith.constant 8 : i32
    %c0_124 = arith.constant 0 : index
    %c0_125 = arith.constant 0 : index
    %410 = vector.load %arg16[%c0_124, %c0_125] : memref<8x128xf32, #tpu.memory_space<vmem>>, vector<8x128xf32>
    tpu.vector_store %arg16[%c0_124, %c0_125], %407 {strides = array<i32>} : memref<8x128xf32, #tpu.memory_space<vmem>>, vector<8x128xf32>,
    %c0_126 = arith.constant 0 : index
    %c0_127 = arith.constant 0 : index
    %411 = vector.load %arg17[%c0_126, %c0_127] : memref<8x128xf32, #tpu.memory_space<vmem>>, vector<8x128xf32>
    tpu.vector_store %arg17[%c0_126, %c0_127], %405 {strides = array<i32>} : memref<8x128xf32, #tpu.memory_space<vmem>>, vector<8x128xf32>,
    %c0_128 = arith.constant 0 : index
    %c0_129 = arith.constant 0 : index
    %412 = vector.load %arg19[%c0_128, %c0_129] : memref<64x128xf32, #tpu.memory_space<vmem>>, vector<64x128xf32>
    %c0_130 = arith.constant 0 : index
    %c0_131 = arith.constant 0 : index
    %413 = vector.load %arg9[%c0_130, %c0_131] : memref<1x128xf32, #tpu.memory_space<vmem>>, vector<1x128xf32>
    %414 = vector.broadcast %413 : vector<1x128xf32> to vector<64x128xf32>
    %415 = arith.mulf %412, %414 : vector<64x128xf32>
    %cst_132 = arith.constant dense<0.000000e+00> : vector<64xf32>
    %416 = vector.multi_reduction <add>, %415, %cst_132 [1] : vector<64x128xf32> to vector<64xf32>
    %417 = vector.shape_cast %416 : vector<64xf32> to vector<64x1xf32>
    %c0_133 = arith.constant 0 : index
    %c0_134 = arith.constant 0 : index
    %418 = vector.load %arg10[%c0_133, %c0_134] : memref<1x1xf32, #tpu.memory_space<vmem>>, vector<1x1xf32>
    %419 = vector.extract %418[0, 0] : f32 from vector<1x1xf32>
    %420 = vector.broadcast %419 : f32 to vector<64x1xf32>
    %421 = arith.addf %417, %420 : vector<64x1xf32>
    %422 = vector.shape_cast %421 : vector<64x1xf32> to vector<8x8x1xf32>
    %423 = vector.shape_cast %412 : vector<64x128xf32> to vector<8x8x128xf32>
    %c8_i32_135 = arith.constant 8 : i32
    %424 = arith.muli %arg1, %c8_i32_135 : i32
    %425 = tpu.iota {dimensions = array<i32: 0>} : vector<8x8x1xi32>
    %426 = vector.broadcast %424 : i32 to vector<8x8x1xi32>
    %427 = arith.addi %426, %425 : vector<8x8x1xi32>
    %c16_i32 = arith.constant 16 : i32
    %428 = vector.broadcast %c16_i32 : i32 to vector<8x8x1xi32>
    %429 = arith.cmpi slt, %427, %428 : vector<8x8x1xi32>
    %cst_136 = arith.constant -1.000000e+30 : f32
    %430 = vector.broadcast %cst_136 : f32 to vector<8x8x1xf32>
    %431 = arith.select %429, %422, %430 : vector<8x8x1xi1>, vector<8x8x1xf32>
    %c0_137 = arith.constant 0 : index
    %c0_138 = arith.constant 0 : index
    %432 = vector.load %arg20[%c0_137, %c0_138] : memref<8x1xf32, #tpu.memory_space<vmem>>, vector<8x1xf32>
    %cst_139 = arith.constant dense<0xFF800000> : vector<8x1xf32>
    %433 = vector.multi_reduction <maximumf>, %431, %cst_139 [0] : vector<8x8x1xf32> to vector<8x1xf32>
    %434 = arith.maximumf %432, %433 : vector<8x1xf32>
    %435 = arith.subf %432, %434 : vector<8x1xf32>
    %436 = math.exp %435 : vector<8x1xf32>
    %437 = vector.shape_cast %434 : vector<8x1xf32> to vector<1x8x1xf32>
    %438 = vector.broadcast %437 : vector<1x8x1xf32> to vector<8x8x1xf32>
    %439 = arith.subf %431, %438 : vector<8x8x1xf32>
    %440 = math.exp %439 : vector<8x8x1xf32>
    %c0_140 = arith.constant 0 : index
    %c0_141 = arith.constant 0 : index
    %441 = vector.load %arg21[%c0_140, %c0_141] : memref<8x1xf32, #tpu.memory_space<vmem>>, vector<8x1xf32>
    %442 = arith.mulf %436, %441 : vector<8x1xf32>
    %cst_142 = arith.constant dense<0.000000e+00> : vector<8x1xf32>
    %443 = vector.multi_reduction <add>, %440, %cst_142 [0] : vector<8x8x1xf32> to vector<8x1xf32>
    %444 = arith.addf %442, %443 : vector<8x1xf32>
    %c0_143 = arith.constant 0 : index
    %c0_144 = arith.constant 0 : index
    %445 = vector.load %arg21[%c0_143, %c0_144] : memref<8x1xf32, #tpu.memory_space<vmem>>, vector<8x1xf32>
    tpu.vector_store %arg21[%c0_143, %c0_144], %444 {strides = array<i32>} : memref<8x1xf32, #tpu.memory_space<vmem>>, vector<8x1xf32>,
    %c0_145 = arith.constant 0 : index
    %c0_146 = arith.constant 0 : index
    %446 = vector.load %arg20[%c0_145, %c0_146] : memref<8x1xf32, #tpu.memory_space<vmem>>, vector<8x1xf32>
    tpu.vector_store %arg20[%c0_145, %c0_146], %434 {strides = array<i32>} : memref<8x1xf32, #tpu.memory_space<vmem>>, vector<8x1xf32>,
    %c0_147 = arith.constant 0 : index
    %c0_148 = arith.constant 0 : index
    %447 = vector.load %arg22[%c0_147, %c0_148] : memref<8x128xf32, #tpu.memory_space<vmem>>, vector<8x128xf32>
    %448 = vector.broadcast %436 : vector<8x1xf32> to vector<8x128xf32>
    %449 = arith.mulf %448, %447 : vector<8x128xf32>
    %450 = vector.broadcast %440 : vector<8x8x1xf32> to vector<8x8x128xf32>
    %451 = arith.mulf %450, %423 : vector<8x8x128xf32>
    %cst_149 = arith.constant dense<0.000000e+00> : vector<8x128xf32>
    %452 = vector.multi_reduction <add>, %451, %cst_149 [0] : vector<8x8x128xf32> to vector<8x128xf32>
    %453 = arith.addf %449, %452 : vector<8x128xf32>
    %c0_150 = arith.constant 0 : index
    %c0_151 = arith.constant 0 : index
    %454 = vector.load %arg22[%c0_150, %c0_151] : memref<8x128xf32, #tpu.memory_space<vmem>>, vector<8x128xf32>
    tpu.vector_store %arg22[%c0_150, %c0_151], %453 {strides = array<i32>} : memref<8x128xf32, #tpu.memory_space<vmem>>, vector<8x128xf32>,
    %c1_i32_152 = arith.constant 1 : i32
    %455 = arith.cmpi eq, %arg1, %c1_i32_152 : i32
    %456 = arith.extui %455 : i1 to i32
    %c0_i32_153 = arith.constant 0 : i32
    %457 = arith.cmpi ne, %456, %c0_i32_153 : i32
    scf.if %457 {
      %c0_154 = arith.constant 0 : index
      %c0_155 = arith.constant 0 : index
      %458 = vector.load %arg21[%c0_154, %c0_155] : memref<8x1xf32, #tpu.memory_space<vmem>>, vector<8x1xf32>
      %459 = tpu.reciprocal %458 {approx = true} : vector<8x1xf32> -> vector<8x1xf32>
      %c0_156 = arith.constant 0 : index
      %c0_157 = arith.constant 0 : index
      %460 = vector.load %arg22[%c0_156, %c0_157] : memref<8x128xf32, #tpu.memory_space<vmem>>, vector<8x128xf32>
      %461 = vector.broadcast %459 : vector<8x1xf32> to vector<8x128xf32>
      %462 = arith.mulf %460, %461 : vector<8x128xf32>
      %c0_158 = arith.constant 0 : index
      %c0_159 = arith.constant 0 : index
      %463 = vector.load %arg11[%c0_158, %c0_159] : memref<128x3xf32, #tpu.memory_space<vmem>>, vector<128x3xf32>
      %cst_160 = arith.constant dense<0.000000e+00> : vector<8x3xf32>
      %464 = tpu.matmul %462, %463, %cst_160 {dimension_numbers = #tpu.dot_dimension_numbers<[1], [0], [0], [1], [0, 0, 1, 1], [], []>} : vector<8x128xf32>, vector<128x3xf32>, vector<8x3xf32> -> vector<8x3xf32>
      %c0_161 = arith.constant 0 : index
      %c0_162 = arith.constant 0 : index
      %465 = vector.load %arg12[%c0_161, %c0_162] : memref<1x3xf32, #tpu.memory_space<vmem>>, vector<1x3xf32>
      %466 = vector.broadcast %465 : vector<1x3xf32> to vector<8x3xf32>
      %467 = arith.addf %464, %466 : vector<8x3xf32>
      %c0_163 = arith.constant 0 : index
      %c0_164 = arith.constant 0 : index
      %468 = vector.load %arg13[%c0_163, %c0_164] : memref<8x3xf32, #tpu.memory_space<vmem>>, vector<8x3xf32>
      tpu.vector_store %arg13[%c0_163, %c0_164], %467 {strides = array<i32>} : memref<8x3xf32, #tpu.memory_space<vmem>>, vector<8x3xf32>,
    } else {
    }
    return
  }
  func.func @transform_0(%arg0: i32, %arg1: i32) -> (i32, i32, i32) {
    %c0_i32 = arith.constant 0 : i32
    %c0_i32_0 = arith.constant 0 : i32
    return %arg0, %arg1, %c0_i32 : i32, i32, i32
  }
  func.func @transform_1(%arg0: i32, %arg1: i32) -> (i32, i32) {
    %c0_i32 = arith.constant 0 : i32
    %c0_i32_0 = arith.constant 0 : i32
    %c0_i32_1 = arith.constant 0 : i32
    return %c0_i32, %c0_i32_0 : i32, i32
  }
  func.func @transform_2(%arg0: i32, %arg1: i32) -> (i32, i32) {
    %c0_i32 = arith.constant 0 : i32
    %c0_i32_0 = arith.constant 0 : i32
    %c0_i32_1 = arith.constant 0 : i32
    return %c0_i32, %c0_i32_0 : i32, i32
  }
  func.func @transform_3(%arg0: i32, %arg1: i32) -> (i32, i32) {
    %c0_i32 = arith.constant 0 : i32
    %c0_i32_0 = arith.constant 0 : i32
    %c0_i32_1 = arith.constant 0 : i32
    return %c0_i32, %c0_i32_0 : i32, i32
  }
  func.func @transform_4(%arg0: i32, %arg1: i32) -> (i32, i32) {
    %c0_i32 = arith.constant 0 : i32
    %c0_i32_0 = arith.constant 0 : i32
    %c0_i32_1 = arith.constant 0 : i32
    return %c0_i32, %c0_i32_0 : i32, i32
  }
  func.func @transform_5(%arg0: i32, %arg1: i32) -> (i32, i32) {
    %c0_i32 = arith.constant 0 : i32
    %c0_i32_0 = arith.constant 0 : i32
    %c0_i32_1 = arith.constant 0 : i32
    return %c0_i32, %c0_i32_0 : i32, i32
  }
  func.func @transform_6(%arg0: i32, %arg1: i32) -> (i32, i32) {
    %c0_i32 = arith.constant 0 : i32
    %c0_i32_0 = arith.constant 0 : i32
    %c0_i32_1 = arith.constant 0 : i32
    return %c0_i32, %c0_i32_0 : i32, i32
  }
  func.func @transform_7(%arg0: i32, %arg1: i32) -> (i32, i32) {
    %c0_i32 = arith.constant 0 : i32
    %c0_i32_0 = arith.constant 0 : i32
    %c0_i32_1 = arith.constant 0 : i32
    return %c0_i32, %c0_i32_0 : i32, i32
  }
  func.func @transform_8(%arg0: i32, %arg1: i32) -> (i32, i32) {
    %c0_i32 = arith.constant 0 : i32
    %c0_i32_0 = arith.constant 0 : i32
    %c0_i32_1 = arith.constant 0 : i32
    return %c0_i32, %c0_i32_0 : i32, i32
  }
  func.func @transform_9(%arg0: i32, %arg1: i32) -> (i32, i32) {
    %c0_i32 = arith.constant 0 : i32
    %c0_i32_0 = arith.constant 0 : i32
    %c0_i32_1 = arith.constant 0 : i32
    return %c0_i32, %c0_i32_0 : i32, i32
  }
  func.func @transform_10(%arg0: i32, %arg1: i32) -> (i32, i32) {
    %c0_i32 = arith.constant 0 : i32
    %c0_i32_0 = arith.constant 0 : i32
    %c0_i32_1 = arith.constant 0 : i32
    return %c0_i32, %c0_i32_0 : i32, i32
  }
  func.func @transform_11(%arg0: i32, %arg1: i32) -> (i32, i32) {
    %c0_i32 = arith.constant 0 : i32
    %c0_i32_0 = arith.constant 0 : i32
    return %arg0, %c0_i32 : i32, i32
  }
}

</mosaic_0001>

<llo_original>
// kernel: attention_lstm_forward.1
$region0: #{attention_lstm_forward.1}
  #allocation0 [shape = 'u32[]', space=smem, size = 0x4, offset = 0x4, fixed_abs, tag = 'smem constant byte address 0x4 - core index']
  #allocation1 [shape = 'u32[144,128]{1,0:T(1,128)}', space=vmem, size = 0x12000, scoped, tag = 'internal scratch']
  #allocation2 [shape = 'f32[8,128]{1,0:T(8,128)}', space=vmem, size = 0x1000, scoped, tag = 'scratch operand']
  #allocation3 [shape = 'f32[8,128]{1,0:T(8,128)}', space=vmem, size = 0x1000, scoped, tag = 'scratch operand']
  #allocation4 [shape = 'f32[8,128]{1,0:T(8,128)}', space=vmem, size = 0x1000, scoped, tag = 'scratch operand']
  #allocation5 [shape = 'f32[8,128]{1,0:T(8,128)}', space=vmem, size = 0x1000, scoped, tag = 'scratch operand']
  #allocation6 [shape = 'f32[64,512]{1,0:T(8,128)}', space=vmem, size = 0x20000, scoped, tag = 'scratch operand']
  #allocation7 [shape = 'f32[64,128]{1,0:T(8,128)}', space=vmem, size = 0x8000, scoped, tag = 'scratch operand']
  #allocation8 [shape = 'f32[8,1]{1,0:T(8,128)}', space=vmem, size = 0x1000, scoped, tag = 'scratch operand']
  #allocation9 [shape = 'f32[8,1]{1,0:T(8,128)}', space=vmem, size = 0x1000, scoped, tag = 'scratch operand']
  #allocation10 [shape = 'f32[8,128]{1,0:T(8,128)}', space=vmem, size = 0x1000, scoped, tag = 'scratch operand']
  #allocation11 [shape = 'f32[1,1]{1,0:T(1,128)S(1)}', space=vmem, size = 0x200, scoped, tag = 'scoped memory for attention_lstm_forward.1']
  %s0 = inlined_call_operand.vmem [shape: f32[2,128,8], index: 0, kind: input, shape index: {}]
  %s1 = inlined_call_operand.hbm [shape: f32[8,512], index: 1, kind: input, shape index: {}]
  %s2 = inlined_call_operand.vmem [shape: f32[128,512], index: 2, kind: input, shape index: {}]
  %s3 = inlined_call_operand.vmem [shape: f32[1,512], index: 3, kind: input, shape index: {}]
  %s4 = inlined_call_operand.hbm [shape: f32[128,512], index: 4, kind: input, shape index: {}]
  %s5 = inlined_call_operand.hbm [shape: f32[128,512], index: 5, kind: input, shape index: {}]
  %s6 = inlined_call_operand.vmem [shape: f32[1,512], index: 6, kind: input, shape index: {}]
  %s7 = inlined_call_operand.vmem [shape: f32[1,128], index: 7, kind: input, shape index: {}]
  %s8 = inlined_call_operand.<no memory space> [shape: f32[1,1], index: 8, kind: input, shape index: {}]
  %s9 = inlined_call_operand.vmem [shape: f32[128,3], index: 9, kind: input, shape index: {}]
  %s10 = inlined_call_operand.vmem [shape: f32[1,3], index: 10, kind: input, shape index: {}]
  %s11 = inlined_call_operand.vmem [shape: f32[16,3], index: 11, kind: output, shape index: {}]
  %s12 = sld [smem:[#allocation0]]
  $region97: #{attention_lstm_forward.1} parent=0
    _
  %s14 = ssub.s32 1, %s12
  %s15 = scalar_select 0, %s14, %s12
  %v16 = vstv %s8
  %17 = vst [vmem:[#allocation11] sm:$0x1] %v16
  $region1: #{attention_lstm_forward.1} parent=0
    #allocation12 [shape = 'u8[16384]{0}', space=vmem, size = 0x4000, scoped, tag = 'input window, operand 1, single buffered']
    #allocation13 [shape = 's32[2]{0}', space=sflag, size = 0x8, scoped, tag = 'scoped memory for attention_lstm_forward.1']
    #allocation14 [shape = 'u8[262144]{0}', space=vmem, size = 0x40000, scoped, tag = 'input window, operand 4, single buffered']
    #allocation15 [shape = 's32[1]{0}', space=sflag, size = 0x4, scoped, tag = 'scoped memory for attention_lstm_forward.1']
    #allocation16 [shape = 'u8[262144]{0}', space=vmem, size = 0x40000, scoped, tag = 'input window, operand 5, single buffered']
    %18 = vsyncpa [#allocation13], 0
    %19 = vsyncpa [#allocation15], 0
    loop: start=0, step=1, limit=6
    $region2: #{attention_lstm_forward.1} parent=1 // loop_pre_header
      _
    $region3: #{attention_lstm_forward.1} parent=1 // loop_header
      %s21 = sphi 0, %s25
      %p22 = scmp.ge.s32.totalorder %s21, 6
      %s28 = sphi 0, %s40
      %s29 = sphi 0, %s36
      %s30 = sphi 0, %s28
      %s31 = sphi 0, %s29
      %s32 = sphi 0, %s30
      %s33 = sphi 0, %s31
      %s45 = sphi 0, %s47
      %s48 = sphi 0, %s45
      %s49 = sphi 0, %s48
      %s65 = sphi 0, %s49
      %s69 = sphi 0, %s69
      %s71 = sphi 0, %s69
      %s72 = sphi 0, %s71
      %s86 = sphi 0, %s72
      %s90 = sphi 0, %s90
      %s92 = sphi 0, %s90
      %s93 = sphi 0, %s92
      %s107 = sphi 0, %s93
      %s111 = sphi 0, %s111
      %s113 = sphi 0, %s111
      %s114 = sphi 0, %s113
      %s128 = sphi 0, %s114
      %s132 = sphi 0, %s132
      %s134 = sphi 0, %s132
      %s135 = sphi 0, %s134
      %s149 = sphi 0, %s135
      %s153 = sphi 0, %s153
      %s155 = sphi 0, %s153
      %s156 = sphi 0, %s155
      %s170 = sphi 0, %s156
      %s174 = sphi 0, %s174
      %s176 = sphi 0, %s174
      %s177 = sphi 0, %s176
      %s191 = sphi 0, %s177
      %s195 = sphi 0, %s195
      %s197 = sphi 0, %s195
      %s198 = sphi 0, %s197
      %s212 = sphi 0, %s198
      %s216 = sphi 0, %s216
      %s218 = sphi 0, %s216
      %s219 = sphi 0, %s218
      %s233 = sphi 0, %s219
      %s237 = sphi 0, %s237
      %s239 = sphi 0, %s237
      %s240 = sphi 0, %s239
      %s254 = sphi 0, %s240
      %s258 = sphi 0, %s258
      %s260 = sphi 0, %s258
      %s261 = sphi 0, %s260
      %s275 = sphi 0, %s261
      %s281 = sphi 0, %s283
      %s284 = sphi 0, %s281
      %s285 = sphi 0, %s284
      %s301 = sphi 0, %s285
    $region4: #{attention_lstm_forward.1} parent=1 // loop_header_branch
      %24 = sbr.rel (%p22) target = $region8
    $region5: #{attention_lstm_forward.1} parent=1 // loop_body
      %s26 = ssub.s32 %s21, 1
      %s27 = ssub.s32 %s21, 2
      %s34 = sadd.s32 1, %s29
      %p35 = scmp.ge.s32.totalorder %s34, 2
      %s36 = scalar_select %p35, 0, %s34
      %s37 = sadd.s32 1, %s28
      %s38 = scalar_select %p35, %s37, %s28
      %p39 = scmp.ge.s32.totalorder %s38, 2
      %s40 = scalar_select %p39, 0, %s38
      %s41 = ssub.s32 %s28, %s40
      %s42 = ssub.s32 %s29, %s36
      %s43 = sor.u32 %s41, %s42
      %p44 = scmp.eq.s32.totalorder %s43, 0
      %s46 = sadd.s32 %s45, 1
      %s47 = scalar_select %p44, %s45, %s46
      %p50 = pneg %p44
      %p51 = scmp.eq.s32.totalorder %s21, 3
      %p52 = por %p50, %p51
      %p53 = scmp.ne.s32.totalorder %s45, %s48
      %p54 = scmp.eq.s32.totalorder %s21, 0
      %p55 = por %p53, %p54
      %p56 = scmp.ne.s32.totalorder %s45, %s48
      %p57 = scmp.eq.s32.totalorder %s26, 3
      %p58 = por %p56, %p57
      %p59 = scmp.ne.s32.totalorder %s48, %s49
      %p60 = scmp.eq.s32.totalorder %s26, 0
      %p61 = por %p59, %p60
      %p62 = scmp.ne.s32.totalorder %s48, %s49
      %p63 = scmp.eq.s32.totalorder %s27, 3
      %p64 = por %p62, %p63
      %p66 = scmp.ne.s32.totalorder %s49, %s65
      %p67 = scmp.eq.s32.totalorder %s27, 0
      %p68 = por %p66, %p67
      %s70 = sadd.s32 %s69, 1
      %p73 = scmp.eq.s32.totalorder %s21, 3
      %p74 = scmp.ne.s32.totalorder %s69, %s71
      %p75 = scmp.eq.s32.totalorder %s21, 0
      %p76 = por %p74, %p75
      %p77 = scmp.ne.s32.totalorder %s69, %s71
      %p78 = scmp.eq.s32.totalorder %s26, 3
      %p79 = por %p77, %p78
      %p80 = scmp.ne.s32.totalorder %s71, %s72
      %p81 = scmp.eq.s32.totalorder %s26, 0
      %p82 = por %p80, %p81
      %p83 = scmp.ne.s32.totalorder %s71, %s72
      %p84 = scmp.eq.s32.totalorder %s27, 3
      %p85 = por %p83, %p84
      %p87 = scmp.ne.s32.totalorder %s72, %s86
      %p88 = scmp.eq.s32.totalorder %s27, 0
      %p89 = por %p87, %p88
      %s91 = sadd.s32 %s90, 1
      %p94 = scmp.eq.s32.totalorder %s21, 3
      %p95 = scmp.ne.s32.totalorder %s90, %s92
      %p96 = scmp.eq.s32.totalorder %s21, 0
      %p97 = por %p95, %p96
      %p98 = scmp.ne.s32.totalorder %s90, %s92
      %p99 = scmp.eq.s32.totalorder %s26, 3
      %p100 = por %p98, %p99
      %p101 = scmp.ne.s32.totalorder %s92, %s93
      %p102 = scmp.eq.s32.totalorder %s26, 0
      %p103 = por %p101, %p102
      %p104 = scmp.ne.s32.totalorder %s92, %s93
      %p105 = scmp.eq.s32.totalorder %s27, 3
      %p106 = por %p104, %p105
      %p108 = scmp.ne.s32.totalorder %s93, %s107
      %p109 = scmp.eq.s32.totalorder %s27, 0
      %p110 = por %p108, %p109
      %s112 = sadd.s32 %s111, 1
      %p115 = scmp.eq.s32.totalorder %s21, 3
      %p116 = scmp.ne.s32.totalorder %s111, %s113
      %p117 = scmp.eq.s32.totalorder %s21, 0
      %p118 = por %p116, %p117
      %p119 = scmp.ne.s32.totalorder %s111, %s113
      %p120 = scmp.eq.s32.totalorder %s26, 3
      %p121 = por %p119, %p120
      %p122 = scmp.ne.s32.totalorder %s113, %s114
      %p123 = scmp.eq.s32.totalorder %s26, 0
      %p124 = por %p122, %p123
      %p125 = scmp.ne.s32.totalorder %s113, %s114
      %p126 = scmp.eq.s32.totalorder %s27, 3
      %p127 = por %p125, %p126
      %p129 = scmp.ne.s32.totalorder %s114, %s128
      %p130 = scmp.eq.s32.totalorder %s27, 0
      %p131 = por %p129, %p130
      %s133 = sadd.s32 %s132, 1
      %p136 = scmp.eq.s32.totalorder %s21, 3
      %p137 = scmp.ne.s32.totalorder %s132, %s134
      %p138 = scmp.eq.s32.totalorder %s21, 0
      %p139 = por %p137, %p138
      %p140 = scmp.ne.s32.totalorder %s132, %s134
      %p141 = scmp.eq.s32.totalorder %s26, 3
      %p142 = por %p140, %p141
      %p143 = scmp.ne.s32.totalorder %s134, %s135
      %p144 = scmp.eq.s32.totalorder %s26, 0
      %p145 = por %p143, %p144
      %p146 = scmp.ne.s32.totalorder %s134, %s135
      %p147 = scmp.eq.s32.totalorder %s27, 3
      %p148 = por %p146, %p147
      %p150 = scmp.ne.s32.totalorder %s135, %s149
      %p151 = scmp.eq.s32.totalorder %s27, 0
      %p152 = por %p150, %p151
      %s154 = sadd.s32 %s153, 1
      %p157 = scmp.eq.s32.totalorder %s21, 3
      %p158 = scmp.ne.s32.totalorder %s153, %s155
      %p159 = scmp.eq.s32.totalorder %s21, 0
      %p160 = por %p158, %p159
      %p161 = scmp.ne.s32.totalorder %s153, %s155
      %p162 = scmp.eq.s32.totalorder %s26, 3
      %p163 = por %p161, %p162
      %p164 = scmp.ne.s32.totalorder %s155, %s156
      %p165 = scmp.eq.s32.totalorder %s26, 0
      %p166 = por %p164, %p165
      %p167 = scmp.ne.s32.totalorder %s155, %s156
      %p168 = scmp.eq.s32.totalorder %s27, 3
      %p169 = por %p167, %p168
      %p171 = scmp.ne.s32.totalorder %s156, %s170
      %p172 = scmp.eq.s32.totalorder %s27, 0
      %p173 = por %p171, %p172
      %s175 = sadd.s32 %s174, 1
      %p178 = scmp.eq.s32.totalorder %s21, 3
      %p179 = scmp.ne.s32.totalorder %s174, %s176
      %p180 = scmp.eq.s32.totalorder %s21, 0
      %p181 = por %p179, %p180
      %p182 = scmp.ne.s32.totalorder %s174, %s176
      %p183 = scmp.eq.s32.totalorder %s26, 3
      %p184 = por %p182, %p183
      %p185 = scmp.ne.s32.totalorder %s176, %s177
      %p186 = scmp.eq.s32.totalorder %s26, 0
      %p187 = por %p185, %p186
      %p188 = scmp.ne.s32.totalorder %s176, %s177
      %p189 = scmp.eq.s32.totalorder %s27, 3
      %p190 = por %p188, %p189
      %p192 = scmp.ne.s32.totalorder %s177, %s191
      %p193 = scmp.eq.s32.totalorder %s27, 0
      %p194 = por %p192, %p193
      %s196 = sadd.s32 %s195, 1
      %p199 = scmp.eq.s32.totalorder %s21, 3
      %p200 = scmp.ne.s32.totalorder %s195, %s197
      %p201 = scmp.eq.s32.totalorder %s21, 0
      %p202 = por %p200, %p201
      %p203 = scmp.ne.s32.totalorder %s195, %s197
      %p204 = scmp.eq.s32.totalorder %s26, 3
      %p205 = por %p203, %p204
      %p206 = scmp.ne.s32.totalorder %s197, %s198
      %p207 = scmp.eq.s32.totalorder %s26, 0
      %p208 = por %p206, %p207
      %p209 = scmp.ne.s32.totalorder %s197, %s198
      %p210 = scmp.eq.s32.totalorder %s27, 3
      %p211 = por %p209, %p210
      %p213 = scmp.ne.s32.totalorder %s198, %s212
      %p214 = scmp.eq.s32.totalorder %s27, 0
      %p215 = por %p213, %p214
      %s217 = sadd.s32 %s216, 1
      %p220 = scmp.eq.s32.totalorder %s21, 3
      %p221 = scmp.ne.s32.totalorder %s216, %s218
      %p222 = scmp.eq.s32.totalorder %s21, 0
      %p223 = por %p221, %p222
      %p224 = scmp.ne.s32.totalorder %s216, %s218
      %p225 = scmp.eq.s32.totalorder %s26, 3
      %p226 = por %p224, %p225
      %p227 = scmp.ne.s32.totalorder %s218, %s219
      %p228 = scmp.eq.s32.totalorder %s26, 0
      %p229 = por %p227, %p228
      %p230 = scmp.ne.s32.totalorder %s218, %s219
      %p231 = scmp.eq.s32.totalorder %s27, 3
      %p232 = por %p230, %p231
      %p234 = scmp.ne.s32.totalorder %s219, %s233
      %p235 = scmp.eq.s32.totalorder %s27, 0
      %p236 = por %p234, %p235
      %s238 = sadd.s32 %s237, 1
      %p241 = scmp.eq.s32.totalorder %s21, 3
      %p242 = scmp.ne.s32.totalorder %s237, %s239
      %p243 = scmp.eq.s32.totalorder %s21, 0
      %p244 = por %p242, %p243
      %p245 = scmp.ne.s32.totalorder %s237, %s239
      %p246 = scmp.eq.s32.totalorder %s26, 3
      %p247 = por %p245, %p246
      %p248 = scmp.ne.s32.totalorder %s239, %s240
      %p249 = scmp.eq.s32.totalorder %s26, 0
      %p250 = por %p248, %p249
      %p251 = scmp.ne.s32.totalorder %s239, %s240
      %p252 = scmp.eq.s32.totalorder %s27, 3
      %p253 = por %p251, %p252
      %p255 = scmp.ne.s32.totalorder %s240, %s254
      %p256 = scmp.eq.s32.totalorder %s27, 0
      %p257 = por %p255, %p256
      %s259 = sadd.s32 %s258, 1
      %p262 = scmp.eq.s32.totalorder %s21, 3
      %p263 = scmp.ne.s32.totalorder %s258, %s260
      %p264 = scmp.eq.s32.totalorder %s21, 0
      %p265 = por %p263, %p264
      %p266 = scmp.ne.s32.totalorder %s258, %s260
      %p267 = scmp.eq.s32.totalorder %s26, 3
      %p268 = por %p266, %p267
      %p269 = scmp.ne.s32.totalorder %s260, %s261
      %p270 = scmp.eq.s32.totalorder %s26, 0
      %p271 = por %p269, %p270
      %p272 = scmp.ne.s32.totalorder %s260, %s261
      %p273 = scmp.eq.s32.totalorder %s27, 3
      %p274 = por %p272, %p273
      %p276 = scmp.ne.s32.totalorder %s261, %s275
      %p277 = scmp.eq.s32.totalorder %s27, 0
      %p278 = por %p276, %p277
      %s279 = ssub.s32 %s28, %s40
      %p280 = scmp.eq.s32.totalorder %s279, 0
      %s282 = sadd.s32 %s281, 1
      %s283 = scalar_select %p280, %s281, %s282
      %p286 = pneg %p280
      %p287 = scmp.eq.s32.totalorder %s21, 3
      %p288 = por %p286, %p287
      %p289 = scmp.ne.s32.totalorder %s281, %s284
      %p290 = scmp.eq.s32.totalorder %s21, 0
      %p291 = por %p289, %p290
      %p292 = scmp.ne.s32.totalorder %s281, %s284
      %p293 = scmp.eq.s32.totalorder %s26, 3
      %p294 = por %p292, %p293
      %p295 = scmp.ne.s32.totalorder %s284, %s285
      %p296 = scmp.eq.s32.totalorder %s26, 0
      %p297 = por %p295, %p296
      %p298 = scmp.ne.s32.totalorder %s284, %s285
      %p299 = scmp.eq.s32.totalorder %s27, 3
      %p300 = por %p298, %p299
      %p302 = scmp.ne.s32.totalorder %s285, %s301
      %p303 = scmp.eq.s32.totalorder %s27, 0
      %p304 = por %p302, %p303
      %p305 = scmp.le.s32.totalorder 1, %s21
      %p306 = scmp.lt.s32.totalorder %s21, 5
      %p307 = pnand %p305, %p306
      %p308 = pneg %p307
      // Predicated region
      $region9: #{attention_lstm_forward.1} parent=5 // pred_check
        _
      $region10: #{attention_lstm_forward.1} parent=5 // pred_check_branch
        %310 = sbr.rel (%p307) target = $region12
      $region11: #{attention_lstm_forward.1} parent=5 // pred_region
        %s311 = ssub.s32 %s21, 1
        // Predicated region
        $region13: #{attention_lstm_forward.1} parent=11 // pred_check
          %p312 = pneg %p82
        $region14: #{attention_lstm_forward.1} parent=11 // pred_check_branch
          %314 = sbr.rel (%p312) target = $region16
        $region15: #{attention_lstm_forward.1} parent=11 // pred_region
          %s316 = ssub.s32 512, 512
          %317 = vsyncadd [#allocation13], %s316
          %s319 = sshll.u32 [#allocation12], 4
          %s320 = int_to_ptr.vmem [resolvable:$true] %s319
          %322 = dma.hbm_to_vmem [thread:$0]  %s1, 512, %s320, [#allocation13]
        $region16: #{attention_lstm_forward.1} parent=11 // pred_fallthru
          _
        // Predicated region
        $region17: #{attention_lstm_forward.1} parent=11 // pred_check
          %p323 = pneg %p103
        $region18: #{attention_lstm_forward.1} parent=11 // pred_check_branch
          %325 = sbr.rel (%p323) target = $region20
        $region19: #{attention_lstm_forward.1} parent=11 // pred_region
          _
        $region20: #{attention_lstm_forward.1} parent=11 // pred_fallthru
          _
        // Predicated region
        $region21: #{attention_lstm_forward.1} parent=11 // pred_check
          %p326 = pneg %p124
        $region22: #{attention_lstm_forward.1} parent=11 // pred_check_branch
          %328 = sbr.rel (%p326) target = $region24
        $region23: #{attention_lstm_forward.1} parent=11 // pred_region
          _
        $region24: #{attention_lstm_forward.1} parent=11 // pred_fallthru
          _
        // Predicated region
        $region25: #{attention_lstm_forward.1} parent=11 // pred_check
          %p329 = pneg %p145
        $region26: #{attention_lstm_forward.1} parent=11 // pred_check_branch
          %331 = sbr.rel (%p329) target = $region28
        $region27: #{attention_lstm_forward.1} parent=11 // pred_region
          %s333 = ssub.s32 8192, 8192
          %334 = vsyncadd [#allocation15], %s333
          %s335 = sshll.u32 [#allocation14], 4
          %s336 = int_to_ptr.vmem [resolvable:$true] %s335
          %341 = dma.hbm_to_vmem [thread:$0]  %s4, 8192, %s336, [#allocation15], 512, 512, 32
        $region28: #{attention_lstm_forward.1} parent=11 // pred_fallthru
          _
        // Predicated region
        $region29: #{attention_lstm_forward.1} parent=11 // pred_check
          %p342 = pneg %p166
        $region30: #{attention_lstm_forward.1} parent=11 // pred_check_branch
          %344 = sbr.rel (%p342) target = $region32
        $region31: #{attention_lstm_forward.1} parent=11 // pred_region
          %s346 = ssub.s32 8192, 8192
          %347 = vsyncadd [#allocation15], %s346
          %s348 = sshll.u32 [#allocation16], 4
          %s349 = int_to_ptr.vmem [resolvable:$true] %s348
          %354 = dma.hbm_to_vmem [thread:$0]  %s5, 8192, %s349, [#allocation15], 512, 512, 32
        $region32: #{attention_lstm_forward.1} parent=11 // pred_fallthru
          _
        // Predicated region
        $region33: #{attention_lstm_forward.1} parent=11 // pred_check
          %p355 = pneg %p187
        $region34: #{attention_lstm_forward.1} parent=11 // pred_check_branch
          %357 = sbr.rel (%p355) target = $region36
        $region35: #{attention_lstm_forward.1} parent=11 // pred_region
          _
        $region36: #{attention_lstm_forward.1} parent=11 // pred_fallthru
          _
        // Predicated region
        $region37: #{attention_lstm_forward.1} parent=11 // pred_check
          %p358 = pneg %p208
        $region38: #{attention_lstm_forward.1} parent=11 // pred_check_branch
          %360 = sbr.rel (%p358) target = $region40
        $region39: #{attention_lstm_forward.1} parent=11 // pred_region
          _
        $region40: #{attention_lstm_forward.1} parent=11 // pred_fallthru
          _
        // Predicated region
        $region41: #{attention_lstm_forward.1} parent=11 // pred_check
          %p361 = pneg %p229
        $region42: #{attention_lstm_forward.1} parent=11 // pred_check_branch
          %363 = sbr.rel (%p361) target = $region44
        $region43: #{attention_lstm_forward.1} parent=11 // pred_region
          _
        $region44: #{attention_lstm_forward.1} parent=11 // pred_fallthru
          _
        // Predicated region
        $region45: #{attention_lstm_forward.1} parent=11 // pred_check
          %p364 = pneg %p250
        $region46: #{attention_lstm_forward.1} parent=11 // pred_check_branch
          %366 = sbr.rel (%p364) target = $region48
        $region47: #{attention_lstm_forward.1} parent=11 // pred_region
          _
        $region48: #{attention_lstm_forward.1} parent=11 // pred_fallthru
          _
        // Predicated region
        $region49: #{attention_lstm_forward.1} parent=11 // pred_check
          %p367 = pneg %p271
        $region50: #{attention_lstm_forward.1} parent=11 // pred_check_branch
          %369 = sbr.rel (%p367) target = $region52
        $region51: #{attention_lstm_forward.1} parent=11 // pred_region
          _
        $region52: #{attention_lstm_forward.1} parent=11 // pred_fallthru
          _
      $region12: #{attention_lstm_forward.1} parent=5 // pred_fallthru
        _
      %p370 = scmp.lt.s32.totalorder %s21, 4
      // Predicated region
      $region53: #{attention_lstm_forward.1} parent=5 // pred_check
        %p371 = pneg %p370
      $region54: #{attention_lstm_forward.1} parent=5 // pred_check_branch
        %373 = sbr.rel (%p371) target = $region56
      $region55: #{attention_lstm_forward.1} parent=5 // pred_region
        // Predicated region
        $region57: #{attention_lstm_forward.1} parent=55 // pred_check
          %p374 = pneg %p55
        $region58: #{attention_lstm_forward.1} parent=55 // pred_check_branch
          %376 = sbr.rel (%p374) target = $region60
        $region59: #{attention_lstm_forward.1} parent=55 // pred_region
          %s377 = smul.u32 8, %s29
          %p378 = scmp.lt.s32.totalorder %s28, 1
          %s379 = scalar_select %p378, %s28, 1
          %p380 = scmp.lt.s32.totalorder %s377, 15
          %s381 = scalar_select %p380, %s377, 15
          %s382 = smul.addr %s379, 16
          %s383 = sadd.s32 %s381, %s382
          %s384 = smul.addr %s383, 8
          %s385 = scalar_lea.vmem %s0, %s384
          %s386 = smul.u32 8, %s29
        $region60: #{attention_lstm_forward.1} parent=55 // pred_fallthru
          _
      $region56: #{attention_lstm_forward.1} parent=5 // pred_fallthru
        _
      %p387 = scmp.le.s32.totalorder 1, %s21
      %p388 = scmp.lt.s32.totalorder %s21, 5
      %p389 = pnand %p387, %p388
      %p390 = pneg %p389
      // Predicated region
      $region61: #{attention_lstm_forward.1} parent=5 // pred_check
        _
      $region62: #{attention_lstm_forward.1} parent=5 // pred_check_branch
        %392 = sbr.rel (%p389) target = $region64
      $region63: #{attention_lstm_forward.1} parent=5 // pred_region
        %s393 = ssub.s32 %s21, 1
        // Predicated region
        $region65: #{attention_lstm_forward.1} parent=63 // pred_check
          %p394 = pneg %p82
        $region66: #{attention_lstm_forward.1} parent=63 // pred_check_branch
          %396 = sbr.rel (%p394) target = $region68
        $region67: #{attention_lstm_forward.1} parent=63 // pred_region
          %397 = dma.done [#allocation13], 512
        $region68: #{attention_lstm_forward.1} parent=63 // pred_fallthru
          _
        // Predicated region
        $region69: #{attention_lstm_forward.1} parent=63 // pred_check
          %p398 = pneg %p145
        $region70: #{attention_lstm_forward.1} parent=63 // pred_check_branch
          %400 = sbr.rel (%p398) target = $region72
        $region71: #{attention_lstm_forward.1} parent=63 // pred_region
          %401 = dma.done [#allocation15], 8192
        $region72: #{attention_lstm_forward.1} parent=63 // pred_fallthru
          _
        // Predicated region
        $region73: #{attention_lstm_forward.1} parent=63 // pred_check
          %p402 = pneg %p166
        $region74: #{attention_lstm_forward.1} parent=63 // pred_check_branch
          %404 = sbr.rel (%p402) target = $region76
        $region75: #{attention_lstm_forward.1} parent=63 // pred_region
          %405 = dma.done [#allocation15], 8192
        $region76: #{attention_lstm_forward.1} parent=63 // pred_fallthru
          _
        %s406 = smul.u32 8, %s31
        %p407 = scmp.lt.s32.totalorder %s30, 1
        %s408 = scalar_select %p407, %s30, 1
        %p409 = scmp.lt.s32.totalorder %s406, 15
        %s410 = scalar_select %p409, %s406, 15
        %s411 = smul.addr %s408, 16
        %s412 = sadd.s32 %s410, %s411
        %s413 = smul.addr %s412, 8
        %s414 = scalar_lea.vmem %s0, %s413
        %p415 = pneg %p61
        %p416 = pneg %p58
        %p417 = pneg %p82
        %p418 = pneg %p79
        %p419 = pneg %p103
        %p420 = pneg %p100
        %p421 = pneg %p124
        %p422 = pneg %p121
        %p423 = pneg %p145
        %p424 = pneg %p142
        %p425 = pneg %p166
        %p426 = pneg %p163
        %p427 = pneg %p187
        %p428 = pneg %p184
        %p429 = pneg %p208
        %p430 = pneg %p205
        %p431 = pneg %p229
        %p432 = pneg %p226
        %p433 = pneg %p250
        %p434 = pneg %p247
        %p435 = pneg %p271
        %p436 = pneg %p268
        %p437 = pneg %p297
        %p438 = pneg %p294
        %p439 = scmp.lt.s32.totalorder %s30, 1
        %s440 = scalar_select %p439, %s30, 1
        %s441 = smul.addr %s440, 8
        %s442 = scalar_lea.vmem %s11, %s441
        %s443 = smul.u32 8, %s31
        %p444 = scmp.lt.s32.totalorder %s30, 1
        %s445 = scalar_select %p444, %s30, 1
        %p446 = scmp.lt.s32.totalorder %s443, 15
        %s447 = scalar_select %p446, %s443, 15
        %s448 = smul.addr %s445, 16
        %s449 = sadd.s32 %s447, %s448
        %s450 = smul.addr %s449, 8
        %s451 = scalar_lea.vmem %s0, %s450
        %s452 = smul.u32 8, %s31
        %p453 = scmp.lt.s32.totalorder %s30, 1
        %s454 = scalar_select %p453, %s30, 1
        %s455 = smul.addr %s454, 8
        %s456 = scalar_lea.vmem %s11, %s455
        %p457 = scmp.eq.s32.totalorder %s31, 0
        // Predicated region
        $region77: #{attention_lstm_forward.1} parent=63 // pred_check
          %p458 = pneg %p457
        $region78: #{attention_lstm_forward.1} parent=63 // pred_check_branch
          %460 = sbr.rel (%p458) target = $region80
        $region79: #{attention_lstm_forward.1} parent=63 // pred_region
          %461 = vst [vmem:[#allocation2] sm:$0xff] 0.0
          %462 = vst [vmem:[#allocation3] sm:$0xff] 0.0
          %463 = vst [vmem:[#allocation4] sm:$0xff] 0.0
          %464 = vst [vmem:[#allocation5] sm:$0xff] 0.0
          %vm465 = vcmask 7168
          %466 = vst.msk [vmem:[#allocation8] sm:$0xff] %vm465, -inf
          %467 = vst.msk [vmem:[#allocation9] sm:$0xff] %vm465, 0.0
          %468 = vst [vmem:[#allocation10] sm:$0xff] 0.0
        $region80: #{attention_lstm_forward.1} parent=63 // pred_fallthru
          _
        %v469 = vld [vmem:[%s451] sm:$0xff]
        %v470 = vld [vmem:[%s451 + $0x8] sm:$0xff]
        %v471 = vld [vmem:[%s451 + $0x10] sm:$0xff]
        %v472 = vld [vmem:[%s451 + $0x18] sm:$0xff]
        %v473 = vld [vmem:[%s451 + $0x20] sm:$0xff]
        %v474 = vld [vmem:[%s451 + $0x28] sm:$0xff]
        %v475 = vld [vmem:[%s451 + $0x30] sm:$0xff]
        %v476 = vld [vmem:[%s451 + $0x38] sm:$0xff]
        %v477 = vld [vmem:[#allocation12] sm:$0xff]
        %v478 = vld [vmem:[#allocation12 + $0x8] sm:$0xff]
        %v479 = vld [vmem:[#allocation12 + $0x10] sm:$0xff]
        %v480 = vld [vmem:[#allocation12 + $0x18] sm:$0xff]
        %v481 = vld [vmem:[%s3] sm:$0xf]
        %v483 = vlaneseq
        %v484 = vshrl.u32 %v483, 7
        %v485 = vsub.s32 0, %v484
        %v486 = vrot.slane %v481, %v485
        %v487 = vlaneseq
        %v488 = vshrl.u32 %v487, 7
        %v489 = vsub.s32 1, %v488
        %v490 = vrot.slane %v481, %v489
        %v491 = vlaneseq
        %v492 = vshrl.u32 %v491, 7
        %v493 = vsub.s32 2, %v492
        %v494 = vrot.slane %v481, %v493
        %v495 = vlaneseq
        %v496 = vshrl.u32 %v495, 7
        %v497 = vsub.s32 3, %v496
        %v498 = vrot.slane %v481, %v497
        %vm503 = vcmask 64512
        %v505 = vsel %vm503, %v469, 0
        %v508 = vsel %vm503, %v470, 0
        %v511 = vsel %vm503, %v471, 0
        %v514 = vsel %vm503, %v472, 0
        %v517 = vsel %vm503, %v473, 0
        %v520 = vsel %vm503, %v474, 0
        %v523 = vsel %vm503, %v475, 0
        %v526 = vsel %vm503, %v476, 0
        %528 = vmatprep.subr.mxu0 %v478
        %529 = vmatpush1.msra.mxu0 %v477
        %530 = vmatprep.subr.mxu0 0.0
        %531 = vmatpush1.msra.mxu0 0.0
        %532 = vmatprep.subr.mxu0 0.0
        %533 = vmatpush1.msra.mxu0 0.0
        %534 = vmatprep.subr.mxu0 0.0
        %535 = vmatpush1.msra.mxu0 0.0
        %536 = vmatprep.subr.mxu0 0.0
        %537 = vmatpush1.msra.mxu0 0.0
        %538 = vmatprep.subr.mxu0 0.0
        %539 = vmatpush1.msra.mxu0 0.0
        %540 = vmatprep.subr.mxu0 0.0
        %541 = vmatpush1.msra.mxu0 0.0
        %542 = vmatprep.subr.mxu0 0.0
        %543 = vmatpush1.msra.mxu0 0.0
        %544 = vmatprep.subr.mxu0 0.0
        %545 = vmatpush1.msra.mxu0 0.0
        %546 = vmatprep.subr.mxu0 0.0
        %547 = vmatpush1.msra.mxu0 0.0
        %548 = vmatprep.subr.mxu0 0.0
        %549 = vmatpush1.msra.mxu0 0.0
        %550 = vmatprep.subr.mxu0 0.0
        %551 = vmatpush1.msra.mxu0 0.0
        %552 = vmatprep.subr.mxu0 0.0
        %553 = vmatpush1.msra.mxu0 0.0
        %554 = vmatprep.subr.mxu0 0.0
        %555 = vmatpush1.msra.mxu0 0.0
        %556 = vmatprep.subr.mxu0 0.0
        %557 = vmatpush1.msra.mxu0 0.0
        %558 = vmatprep.subr.mxu0 0.0
        %559 = vmatpush1.msra.mxu0 0.0
        %560 = vmatprep.subr.mxu0 0.0
        %561 = vmatpush1.msra.mxu0 0.0
        %562 = vmatprep.subr.mxu0 0.0
        %563 = vmatpush1.msra.mxu0 0.0
        %564 = vmatprep.subr.mxu0 0.0
        %565 = vmatpush1.msra.mxu0 0.0
        %566 = vmatprep.subr.mxu0 0.0
        %567 = vmatpush1.msra.mxu0 0.0
        %568 = vmatprep.subr.mxu0 0.0
        %569 = vmatpush1.msra.mxu0 0.0
        %570 = vmatprep.subr.mxu0 0.0
        %571 = vmatpush1.msra.mxu0 0.0
        %572 = vmatprep.subr.mxu0 0.0
        %573 = vmatpush1.msra.mxu0 0.0
        %574 = vmatprep.subr.mxu0 0.0
        %575 = vmatpush1.msra.mxu0 0.0
        %576 = vmatprep.subr.mxu0 0.0
        %577 = vmatpush1.msra.mxu0 0.0
        %578 = vmatprep.subr.mxu0 0.0
        %579 = vmatpush1.msra.mxu0 0.0
        %580 = vmatprep.subr.mxu0 0.0
        %581 = vmatpush1.msra.mxu0 0.0
        %582 = vmatprep.subr.mxu0 0.0
        %583 = vmatpush1.msra.mxu0 0.0
        %584 = vmatprep.subr.mxu0 0.0
        %585 = vmatpush1.msra.mxu0 0.0
        %586 = vmatprep.subr.mxu0 0.0
        %587 = vmatpush1.msra.mxu0 0.0
        %588 = vmatprep.subr.mxu0 0.0
        %589 = vmatpush1.msra.mxu0 0.0
        %590 = vmatprep.subr.mxu0 0.0
        %591 = vmatpush1.msra.mxu0 0.0
        %592 = vmatprep.mubr.f32.mxu0 0.0
        %593 = vmatmul.mubr.f32.gmra.mrb[0].mxu0 %v505
        %v594 = vpop.f32.mrb[0].mxu0
        %v595 = vadd.f32 %v486, %v594
        %v596 = vpop.f32.mrb[0].mxu0
        %v597 = vadd.f32 %v490, %v596
        %598 = vmatprep.mubr.f32.mxu0 0.0
        %599 = vmatmul.mubr.f32.gmra.mrb[0].mxu0 %v508
        %v600 = vpop.f32.mrb[0].mxu0
        %v601 = vadd.f32 %v486, %v600
        %v602 = vpop.f32.mrb[0].mxu0
        %v603 = vadd.f32 %v490, %v602
        %604 = vmatprep.mubr.f32.mxu0 0.0
        %605 = vmatmul.mubr.f32.gmra.mrb[0].mxu0 %v511
        %v606 = vpop.f32.mrb[0].mxu0
        %v607 = vadd.f32 %v486, %v606
        %v608 = vpop.f32.mrb[0].mxu0
        %v609 = vadd.f32 %v490, %v608
        %610 = vmatprep.mubr.f32.mxu0 0.0
        %611 = vmatmul.mubr.f32.gmra.mrb[0].mxu0 %v514
        %v612 = vpop.f32.mrb[0].mxu0
        %v613 = vadd.f32 %v486, %v612
        %v614 = vpop.f32.mrb[0].mxu0
        %v615 = vadd.f32 %v490, %v614
        %616 = vmatprep.mubr.f32.mxu0 0.0
        %617 = vmatmul.mubr.f32.gmra.mrb[0].mxu0 %v517
        %v618 = vpop.f32.mrb[0].mxu0
        %v619 = vadd.f32 %v486, %v618
        %v620 = vpop.f32.mrb[0].mxu0
        %v621 = vadd.f32 %v490, %v620
        %622 = vmatprep.mubr.f32.mxu0 0.0
        %623 = vmatmul.mubr.f32.gmra.mrb[0].mxu0 %v520
        %v624 = vpop.f32.mrb[0].mxu0
        %v625 = vadd.f32 %v486, %v624
        %v626 = vpop.f32.mrb[0].mxu0
        %v627 = vadd.f32 %v490, %v626
        %628 = vmatprep.mubr.f32.mxu0 0.0
        %629 = vmatmul.mubr.f32.gmra.mrb[0].mxu0 %v523
        %v630 = vpop.f32.mrb[0].mxu0
        %v631 = vadd.f32 %v486, %v630
        %v632 = vpop.f32.mrb[0].mxu0
        %v633 = vadd.f32 %v490, %v632
        %634 = vmatprep.mubr.f32.mxu0 0.0
        %635 = vmatmul.mubr.f32.gmra.mrb[0].mxu0 %v526
        %v636 = vpop.f32.mrb[0].mxu0
        %v637 = vadd.f32 %v486, %v636
        %v638 = vpop.f32.mrb[0].mxu0
        %v639 = vadd.f32 %v490, %v638
        %640 = vdwg.mxu0
        %641 = vmatprep.subr.mxu0 %v480
        %642 = vmatpush1.msra.mxu0 %v479
        %643 = vmatprep.subr.mxu0 0.0
        %644 = vmatpush1.msra.mxu0 0.0
        %645 = vmatprep.subr.mxu0 0.0
        %646 = vmatpush1.msra.mxu0 0.0
        %647 = vmatprep.subr.mxu0 0.0
        %648 = vmatpush1.msra.mxu0 0.0
        %649 = vmatprep.subr.mxu0 0.0
        %650 = vmatpush1.msra.mxu0 0.0
        %651 = vmatprep.subr.mxu0 0.0
        %652 = vmatpush1.msra.mxu0 0.0
        %653 = vmatprep.subr.mxu0 0.0
        %654 = vmatpush1.msra.mxu0 0.0
        %655 = vmatprep.subr.mxu0 0.0
        %656 = vmatpush1.msra.mxu0 0.0
        %657 = vmatprep.subr.mxu0 0.0
        %658 = vmatpush1.msra.mxu0 0.0
        %659 = vmatprep.subr.mxu0 0.0
        %660 = vmatpush1.msra.mxu0 0.0
        %661 = vmatprep.subr.mxu0 0.0
        %662 = vmatpush1.msra.mxu0 0.0
        %663 = vmatprep.subr.mxu0 0.0
        %664 = vmatpush1.msra.mxu0 0.0
        %665 = vmatprep.subr.mxu0 0.0
        %666 = vmatpush1.msra.mxu0 0.0
        %667 = vmatprep.subr.mxu0 0.0
        %668 = vmatpush1.msra.mxu0 0.0
        %669 = vmatprep.subr.mxu0 0.0
        %670 = vmatpush1.msra.mxu0 0.0
        %671 = vmatprep.subr.mxu0 0.0
        %672 = vmatpush1.msra.mxu0 0.0
        %673 = vmatprep.subr.mxu0 0.0
        %674 = vmatpush1.msra.mxu0 0.0
        %675 = vmatprep.subr.mxu0 0.0
        %676 = vmatpush1.msra.mxu0 0.0
        %677 = vmatprep.subr.mxu0 0.0
        %678 = vmatpush1.msra.mxu0 0.0
        %679 = vmatprep.subr.mxu0 0.0
        %680 = vmatpush1.msra.mxu0 0.0
        %681 = vmatprep.subr.mxu0 0.0
        %682 = vmatpush1.msra.mxu0 0.0
        %683 = vmatprep.subr.mxu0 0.0
        %684 = vmatpush1.msra.mxu0 0.0
        %685 = vmatprep.subr.mxu0 0.0
        %686 = vmatpush1.msra.mxu0 0.0
        %687 = vmatprep.subr.mxu0 0.0
        %688 = vmatpush1.msra.mxu0 0.0
        %689 = vmatprep.subr.mxu0 0.0
        %690 = vmatpush1.msra.mxu0 0.0
        %691 = vmatprep.subr.mxu0 0.0
        %692 = vmatpush1.msra.mxu0 0.0
        %693 = vmatprep.subr.mxu0 0.0
        %694 = vmatpush1.msra.mxu0 0.0
        %695 = vmatprep.subr.mxu0 0.0
        %696 = vmatpush1.msra.mxu0 0.0
        %697 = vmatprep.subr.mxu0 0.0
        %698 = vmatpush1.msra.mxu0 0.0
        %699 = vmatprep.subr.mxu0 0.0
        %700 = vmatpush1.msra.mxu0 0.0
        %701 = vmatprep.subr.mxu0 0.0
        %702 = vmatpush1.msra.mxu0 0.0
        %703 = vmatprep.subr.mxu0 0.0
        %704 = vmatpush1.msra.mxu0 0.0
        %705 = vmatprep.mubr.f32.mxu0 0.0
        %706 = vmatmul.mubr.f32.gmra.mrb[0].mxu0 %v505
        %v707 = vpop.f32.mrb[0].mxu0
        %v708 = vadd.f32 %v494, %v707
        %v709 = vpop.f32.mrb[0].mxu0
        %v710 = vadd.f32 %v498, %v709
        %711 = vmatprep.mubr.f32.mxu0 0.0
        %712 = vmatmul.mubr.f32.gmra.mrb[0].mxu0 %v508
        %v713 = vpop.f32.mrb[0].mxu0
        %v714 = vadd.f32 %v494, %v713
        %v715 = vpop.f32.mrb[0].mxu0
        %v716 = vadd.f32 %v498, %v715
        %717 = vmatprep.mubr.f32.mxu0 0.0
        %718 = vmatmul.mubr.f32.gmra.mrb[0].mxu0 %v511
        %v719 = vpop.f32.mrb[0].mxu0
        %v720 = vadd.f32 %v494, %v719
        %v721 = vpop.f32.mrb[0].mxu0
        %v722 = vadd.f32 %v498, %v721
        %723 = vmatprep.mubr.f32.mxu0 0.0
        %724 = vmatmul.mubr.f32.gmra.mrb[0].mxu0 %v514
        %v725 = vpop.f32.mrb[0].mxu0
        %v726 = vadd.f32 %v494, %v725
        %v727 = vpop.f32.mrb[0].mxu0
        %v728 = vadd.f32 %v498, %v727
        %729 = vmatprep.mubr.f32.mxu0 0.0
        %730 = vmatmul.mubr.f32.gmra.mrb[0].mxu0 %v517
        %v731 = vpop.f32.mrb[0].mxu0
        %v732 = vadd.f32 %v494, %v731
        %v733 = vpop.f32.mrb[0].mxu0
        %v734 = vadd.f32 %v498, %v733
        %735 = vmatprep.mubr.f32.mxu0 0.0
        %736 = vmatmul.mubr.f32.gmra.mrb[0].mxu0 %v520
        %v737 = vpop.f32.mrb[0].mxu0
        %v738 = vadd.f32 %v494, %v737
        %v739 = vpop.f32.mrb[0].mxu0
        %v740 = vadd.f32 %v498, %v739
        %741 = vmatprep.mubr.f32.mxu0 0.0
        %742 = vmatmul.mubr.f32.gmra.mrb[0].mxu0 %v523
        %v743 = vpop.f32.mrb[0].mxu0
        %v744 = vadd.f32 %v494, %v743
        %v745 = vpop.f32.mrb[0].mxu0
        %v746 = vadd.f32 %v498, %v745
        %747 = vmatprep.mubr.f32.mxu0 0.0
        %748 = vmatmul.mubr.f32.gmra.mrb[0].mxu0 %v526
        %v749 = vpop.f32.mrb[0].mxu0
        %v750 = vadd.f32 %v494, %v749
        %v751 = vpop.f32.mrb[0].mxu0
        %v752 = vadd.f32 %v498, %v751
        %753 = vdwg.mxu0
        %754 = vst [vmem:[#allocation6] sm:$0xff] %v595
        %755 = vst [vmem:[#allocation6 + $0x8] sm:$0xff] %v597
        %756 = vst [vmem:[#allocation6 + $0x10] sm:$0xff] %v708
        %757 = vst [vmem:[#allocation6 + $0x18] sm:$0xff] %v710
        %758 = vst [vmem:[#allocation6 + $0x20] sm:$0xff] %v601
        %759 = vst [vmem:[#allocation6 + $0x28] sm:$0xff] %v603
        %760 = vst [vmem:[#allocation6 + $0x30] sm:$0xff] %v714
        %761 = vst [vmem:[#allocation6 + $0x38] sm:$0xff] %v716
        %762 = vst [vmem:[#allocation6 + $0x40] sm:$0xff] %v607
        %763 = vst [vmem:[#allocation6 + $0x48] sm:$0xff] %v609
        %764 = vst [vmem:[#allocation6 + $0x50] sm:$0xff] %v720
        %765 = vst [vmem:[#allocation6 + $0x58] sm:$0xff] %v722
        %766 = vst [vmem:[#allocation6 + $0x60] sm:$0xff] %v613
        %767 = vst [vmem:[#allocation6 + $0x68] sm:$0xff] %v615
        %768 = vst [vmem:[#allocation6 + $0x70] sm:$0xff] %v726
        %769 = vst [vmem:[#allocation6 + $0x78] sm:$0xff] %v728
        %770 = vst [vmem:[#allocation6 + $0x80] sm:$0xff] %v619
        %771 = vst [vmem:[#allocation6 + $0x88] sm:$0xff] %v621
        %772 = vst [vmem:[#allocation6 + $0x90] sm:$0xff] %v732
        %773 = vst [vmem:[#allocation6 + $0x98] sm:$0xff] %v734
        %774 = vst [vmem:[#allocation6 + $0xa0] sm:$0xff] %v625
        %775 = vst [vmem:[#allocation6 + $0xa8] sm:$0xff] %v627
        %776 = vst [vmem:[#allocation6 + $0xb0] sm:$0xff] %v738
        %777 = vst [vmem:[#allocation6 + $0xb8] sm:$0xff] %v740
        %778 = vst [vmem:[#allocation6 + $0xc0] sm:$0xff] %v631
        %779 = vst [vmem:[#allocation6 + $0xc8] sm:$0xff] %v633
        %780 = vst [vmem:[#allocation6 + $0xd0] sm:$0xff] %v744
        %781 = vst [vmem:[#allocation6 + $0xd8] sm:$0xff] %v746
        %782 = vst [vmem:[#allocation6 + $0xe0] sm:$0xff] %v637
        %783 = vst [vmem:[#allocation6 + $0xe8] sm:$0xff] %v639
        %784 = vst [vmem:[#allocation6 + $0xf0] sm:$0xff] %v750
        %785 = vst [vmem:[#allocation6 + $0xf8] sm:$0xff] %v752
        %v786 = vld [vmem:[%s2] sm:$0xff]
        %v787 = vld [vmem:[%s2 + $0x8] sm:$0xff]
        %v788 = vld [vmem:[%s2 + $0x10] sm:$0xff]
        %v789 = vld [vmem:[%s2 + $0x18] sm:$0xff]
        %v790 = vld [vmem:[%s2 + $0x20] sm:$0xff]
        %v791 = vld [vmem:[%s2 + $0x28] sm:$0xff]
        %v792 = vld [vmem:[%s2 + $0x30] sm:$0xff]
        %v793 = vld [vmem:[%s2 + $0x38] sm:$0xff]
        %v794 = vld [vmem:[%s2 + $0x40] sm:$0xff]
        %v795 = vld [vmem:[%s2 + $0x48] sm:$0xff]
        %v796 = vld [vmem:[%s2 + $0x50] sm:$0xff]
        %v797 = vld [vmem:[%s2 + $0x58] sm:$0xff]
        %v798 = vld [vmem:[%s2 + $0x60] sm:$0xff]
        %v799 = vld [vmem:[%s2 + $0x68] sm:$0xff]
        %v800 = vld [vmem:[%s2 + $0x70] sm:$0xff]
        %v801 = vld [vmem:[%s2 + $0x78] sm:$0xff]
        %v802 = vld [vmem:[%s2 + $0x80] sm:$0xff]
        %v803 = vld [vmem:[%s2 + $0x88] sm:$0xff]
        %v804 = vld [vmem:[%s2 + $0x90] sm:$0xff]
        %v805 = vld [vmem:[%s2 + $0x98] sm:$0xff]
        %v806 = vld [vmem:[%s2 + $0xa0] sm:$0xff]
        %v807 = vld [vmem:[%s2 + $0xa8] sm:$0xff]
        %v808 = vld [vmem:[%s2 + $0xb0] sm:$0xff]
        %v809 = vld [vmem:[%s2 + $0xb8] sm:$0xff]
        %v810 = vld [vmem:[%s2 + $0xc0] sm:$0xff]
        %v811 = vld [vmem:[%s2 + $0xc8] sm:$0xff]
        %v812 = vld [vmem:[%s2 + $0xd0] sm:$0xff]
        %v813 = vld [vmem:[%s2 + $0xd8] sm:$0xff]
        %v814 = vld [vmem:[%s2 + $0xe0] sm:$0xff]
        %v815 = vld [vmem:[%s2 + $0xe8] sm:$0xff]
        %v816 = vld [vmem:[%s2 + $0xf0] sm:$0xff]
        %v817 = vld [vmem:[%s2 + $0xf8] sm:$0xff]
        %v818 = vld [vmem:[%s2 + $0x100] sm:$0xff]
        %v819 = vld [vmem:[%s2 + $0x108] sm:$0xff]
        %v820 = vld [vmem:[%s2 + $0x110] sm:$0xff]
        %v821 = vld [vmem:[%s2 + $0x118] sm:$0xff]
        %v822 = vld [vmem:[%s2 + $0x120] sm:$0xff]
        %v823 = vld [vmem:[%s2 + $0x128] sm:$0xff]
        %v824 = vld [vmem:[%s2 + $0x130] sm:$0xff]
        %v825 = vld [vmem:[%s2 + $0x138] sm:$0xff]
        %v826 = vld [vmem:[%s2 + $0x140] sm:$0xff]
        %v827 = vld [vmem:[%s2 + $0x148] sm:$0xff]
        %v828 = vld [vmem:[%s2 + $0x150] sm:$0xff]
        %v829 = vld [vmem:[%s2 + $0x158] sm:$0xff]
        %v830 = vld [vmem:[%s2 + $0x160] sm:$0xff]
        %v831 = vld [vmem:[%s2 + $0x168] sm:$0xff]
        %v832 = vld [vmem:[%s2 + $0x170] sm:$0xff]
        %v833 = vld [vmem:[%s2 + $0x178] sm:$0xff]
        %v834 = vld [vmem:[%s2 + $0x180] sm:$0xff]
        %v835 = vld [vmem:[%s2 + $0x188] sm:$0xff]
        %v836 = vld [vmem:[%s2 + $0x190] sm:$0xff]
        %v837 = vld [vmem:[%s2 + $0x198] sm:$0xff]
        %v838 = vld [vmem:[%s2 + $0x1a0] sm:$0xff]
        %v839 = vld [vmem:[%s2 + $0x1a8] sm:$0xff]
        %v840 = vld [vmem:[%s2 + $0x1b0] sm:$0xff]
        %v841 = vld [vmem:[%s2 + $0x1b8] sm:$0xff]
        %v842 = vld [vmem:[%s2 + $0x1c0] sm:$0xff]
        %v843 = vld [vmem:[%s2 + $0x1c8] sm:$0xff]
        %v844 = vld [vmem:[%s2 + $0x1d0] sm:$0xff]
        %v845 = vld [vmem:[%s2 + $0x1d8] sm:$0xff]
        %v846 = vld [vmem:[%s2 + $0x1e0] sm:$0xff]
        %v847 = vld [vmem:[%s2 + $0x1e8] sm:$0xff]
        %v848 = vld [vmem:[%s2 + $0x1f0] sm:$0xff]
        %v849 = vld [vmem:[%s2 + $0x1f8] sm:$0xff]
        %v850 = vld [vmem:[#allocation2] sm:$0xff]
        %v851 = vld [vmem:[#allocation3] sm:$0xff]
        %s852 = smul.u32 0, 4
        %s853 = smul.addr %s852, 8
        %s854 = scalar_lea.vmem [#allocation6], %s853
        %v855 = vld [vmem:[%s854] sm:$0xff]
        %v856 = vld [vmem:[%s854 + $0x8] sm:$0xff]
        %v857 = vld [vmem:[%s854 + $0x10] sm:$0xff]
        %v858 = vld [vmem:[%s854 + $0x18] sm:$0xff]
        %859 = vmatprep.subr.mxu0 %v787
        %860 = vmatpush1.msra.mxu0 %v786
        %861 = vmatprep.subr.mxu0 %v791
        %862 = vmatpush1.msra.mxu0 %v790
        %863 = vmatprep.subr.mxu0 %v795
        %864 = vmatpush1.msra.mxu0 %v794
        %865 = vmatprep.subr.mxu0 %v799
        %866 = vmatpush1.msra.mxu0 %v798
        %867 = vmatprep.subr.mxu0 %v803
        %868 = vmatpush1.msra.mxu0 %v802
        %869 = vmatprep.subr.mxu0 %v807
        %870 = vmatpush1.msra.mxu0 %v806
        %871 = vmatprep.subr.mxu0 %v811
        %872 = vmatpush1.msra.mxu0 %v810
        %873 = vmatprep.subr.mxu0 %v815
        %874 = vmatpush1.msra.mxu0 %v814
        %875 = vmatprep.subr.mxu0 %v819
        %876 = vmatpush1.msra.mxu0 %v818
        %877 = vmatprep.subr.mxu0 %v823
        %878 = vmatpush1.msra.mxu0 %v822
        %879 = vmatprep.subr.mxu0 %v827
        %880 = vmatpush1.msra.mxu0 %v826
        %881 = vmatprep.subr.mxu0 %v831
        %882 = vmatpush1.msra.mxu0 %v830
        %883 = vmatprep.subr.mxu0 %v835
        %884 = vmatpush1.msra.mxu0 %v834
        %885 = vmatprep.subr.mxu0 %v839
        %886 = vmatpush1.msra.mxu0 %v838
        %887 = vmatprep.subr.mxu0 %v843
        %888 = vmatpush1.msra.mxu0 %v842
        %889 = vmatprep.subr.mxu0 %v847
        %890 = vmatpush1.msra.mxu0 %v846
        %891 = vmatprep.subr.mxu0 0.0
        %892 = vmatpush1.msra.mxu0 0.0
        %893 = vmatprep.subr.mxu0 0.0
        %894 = vmatpush1.msra.mxu0 0.0
        %895 = vmatprep.subr.mxu0 0.0
        %896 = vmatpush1.msra.mxu0 0.0
        %897 = vmatprep.subr.mxu0 0.0
        %898 = vmatpush1.msra.mxu0 0.0
        %899 = vmatprep.subr.mxu0 0.0
        %900 = vmatpush1.msra.mxu0 0.0
        %901 = vmatprep.subr.mxu0 0.0
        %902 = vmatpush1.msra.mxu0 0.0
        %903 = vmatprep.subr.mxu0 0.0
        %904 = vmatpush1.msra.mxu0 0.0
        %905 = vmatprep.subr.mxu0 0.0
        %906 = vmatpush1.msra.mxu0 0.0
        %907 = vmatprep.subr.mxu0 0.0
        %908 = vmatpush1.msra.mxu0 0.0
        %909 = vmatprep.subr.mxu0 0.0
        %910 = vmatpush1.msra.mxu0 0.0
        %911 = vmatprep.subr.mxu0 0.0
        %912 = vmatpush1.msra.mxu0 0.0
        %913 = vmatprep.subr.mxu0 0.0
        %914 = vmatpush1.msra.mxu0 0.0
        %915 = vmatprep.subr.mxu0 0.0
        %916 = vmatpush1.msra.mxu0 0.0
        %917 = vmatprep.subr.mxu0 0.0
        %918 = vmatpush1.msra.mxu0 0.0
        %919 = vmatprep.subr.mxu0 0.0
        %920 = vmatpush1.msra.mxu0 0.0
        %921 = vmatprep.subr.mxu0 0.0
        %922 = vmatpush1.msra.mxu0 0.0
        %923 = vmatprep.mubr.f32.mxu0 0.0
        %924 = vmatmul.mubr.f32.gmra.mrb[0].mxu0 %v850
        %v925 = vpop.f32.mrb[0].mxu0
        %v926 = vadd.f32 0.0, %v925
        %v927 = vpop.f32.mrb[0].mxu0
        %v928 = vadd.f32 0.0, %v927
        %929 = vdwg.mxu0
        %930 = vmatprep.subr.mxu0 %v789
        %931 = vmatpush1.msra.mxu0 %v788
        %932 = vmatprep.subr.mxu0 %v793
        %933 = vmatpush1.msra.mxu0 %v792
        %934 = vmatprep.subr.mxu0 %v797
        %935 = vmatpush1.msra.mxu0 %v796
        %936 = vmatprep.subr.mxu0 %v801
        %937 = vmatpush1.msra.mxu0 %v800
        %938 = vmatprep.subr.mxu0 %v805
        %939 = vmatpush1.msra.mxu0 %v804
        %940 = vmatprep.subr.mxu0 %v809
        %941 = vmatpush1.msra.mxu0 %v808
        %942 = vmatprep.subr.mxu0 %v813
        %943 = vmatpush1.msra.mxu0 %v812
        %944 = vmatprep.subr.mxu0 %v817
        %945 = vmatpush1.msra.mxu0 %v816
        %946 = vmatprep.subr.mxu0 %v821
        %947 = vmatpush1.msra.mxu0 %v820
        %948 = vmatprep.subr.mxu0 %v825
        %949 = vmatpush1.msra.mxu0 %v824
        %950 = vmatprep.subr.mxu0 %v829
        %951 = vmatpush1.msra.mxu0 %v828
        %952 = vmatprep.subr.mxu0 %v833
        %953 = vmatpush1.msra.mxu0 %v832
        %954 = vmatprep.subr.mxu0 %v837
        %955 = vmatpush1.msra.mxu0 %v836
        %956 = vmatprep.subr.mxu0 %v841
        %957 = vmatpush1.msra.mxu0 %v840
        %958 = vmatprep.subr.mxu0 %v845
        %959 = vmatpush1.msra.mxu0 %v844
        %960 = vmatprep.subr.mxu0 %v849
        %961 = vmatpush1.msra.mxu0 %v848
        %962 = vmatprep.subr.mxu0 0.0
        %963 = vmatpush1.msra.mxu0 0.0
        %964 = vmatprep.subr.mxu0 0.0
        %965 = vmatpush1.msra.mxu0 0.0
        %966 = vmatprep.subr.mxu0 0.0
        %967 = vmatpush1.msra.mxu0 0.0
        %968 = vmatprep.subr.mxu0 0.0
        %969 = vmatpush1.msra.mxu0 0.0
        %970 = vmatprep.subr.mxu0 0.0
        %971 = vmatpush1.msra.mxu0 0.0
        %972 = vmatprep.subr.mxu0 0.0
        %973 = vmatpush1.msra.mxu0 0.0
        %974 = vmatprep.subr.mxu0 0.0
        %975 = vmatpush1.msra.mxu0 0.0
        %976 = vmatprep.subr.mxu0 0.0
        %977 = vmatpush1.msra.mxu0 0.0
        %978 = vmatprep.subr.mxu0 0.0
        %979 = vmatpush1.msra.mxu0 0.0
        %980 = vmatprep.subr.mxu0 0.0
        %981 = vmatpush1.msra.mxu0 0.0
        %982 = vmatprep.subr.mxu0 0.0
        %983 = vmatpush1.msra.mxu0 0.0
        %984 = vmatprep.subr.mxu0 0.0
        %985 = vmatpush1.msra.mxu0 0.0
        %986 = vmatprep.subr.mxu0 0.0
        %987 = vmatpush1.msra.mxu0 0.0
        %988 = vmatprep.subr.mxu0 0.0
        %989 = vmatpush1.msra.mxu0 0.0
        %990 = vmatprep.subr.mxu0 0.0
        %991 = vmatpush1.msra.mxu0 0.0
        %992 = vmatprep.subr.mxu0 0.0
        %993 = vmatpush1.msra.mxu0 0.0
        %994 = vmatprep.mubr.f32.mxu0 0.0
        %995 = vmatmul.mubr.f32.gmra.mrb[0].mxu0 %v850
        %v996 = vpop.f32.mrb[0].mxu0
        %v997 = vadd.f32 0.0, %v996
        %v998 = vpop.f32.mrb[0].mxu0
        %v999 = vadd.f32 0.0, %v998
        %1000 = vdwg.mxu0
        %v1001 = vadd.f32 %v855, %v926
        %v1002 = vadd.f32 %v856, %v928
        %v1003 = vadd.f32 %v857, %v997
        %v1004 = vadd.f32 %v858, %v999
        %v1005 = vxor.u32 %v1001, 2147483648
        %v1006 = vxor.u32 %v1002, 2147483648
        %v1007 = vxor.u32 %v1003, 2147483648
        %v1008 = vmul.f32 %v1005, 1.442695
        %v1009 = vpow.pop %v1008
        %v1010 = vmul.f32 %v1006, 1.442695
        %v1011 = vpow.pop %v1010
        %v1012 = vmul.f32 %v1007, 1.442695
        %v1013 = vpow.pop %v1012
        %v1014 = vadd.f32 %v1009, 1.0
        %v1015 = vadd.f32 %v1011, 1.0
        %v1016 = vadd.f32 %v1013, 1.0
        %v1017 = vrcp.pop %v1014
        %v1018 = vmul.f32 1.0, %v1017
        %v1019 = vrcp.pop %v1015
        %v1020 = vmul.f32 1.0, %v1019
        %v1021 = vrcp.pop %v1016
        %v1022 = vmul.f32 1.0, %v1021
        %v1023 = vtanh.pop %v1004
        %v1024 = vmul.f32 %v1020, %v851
        %v1025 = vmul.f32 %v1018, %v1023
        %v1026 = vadd.f32 %v1024, %v1025
        %v1027 = vtanh.pop %v1026
        %v1028 = vmul.f32 %v1022, %v1027
        %1029 = vst [vmem:[#allocation7] sm:$0xff] %v1028
        %s1030 = smul.u32 1, 4
        %s1031 = smul.addr %s1030, 8
        %s1032 = scalar_lea.vmem [#allocation6], %s1031
        %v1033 = vld [vmem:[%s1032] sm:$0xff]
        %v1034 = vld [vmem:[%s1032 + $0x8] sm:$0xff]
        %v1035 = vld [vmem:[%s1032 + $0x10] sm:$0xff]
        %v1036 = vld [vmem:[%s1032 + $0x18] sm:$0xff]
        %1037 = vmatprep.subr.mxu0 %v787
        %1038 = vmatpush1.msra.mxu0 %v786
        %1039 = vmatprep.subr.mxu0 %v791
        %1040 = vmatpush1.msra.mxu0 %v790
        %1041 = vmatprep.subr.mxu0 %v795
        %1042 = vmatpush1.msra.mxu0 %v794
        %1043 = vmatprep.subr.mxu0 %v799
        %1044 = vmatpush1.msra.mxu0 %v798
        %1045 = vmatprep.subr.mxu0 %v803
        %1046 = vmatpush1.msra.mxu0 %v802
        %1047 = vmatprep.subr.mxu0 %v807
        %1048 = vmatpush1.msra.mxu0 %v806
        %1049 = vmatprep.subr.mxu0 %v811
        %1050 = vmatpush1.msra.mxu0 %v810
        %1051 = vmatprep.subr.mxu0 %v815
        %1052 = vmatpush1.msra.mxu0 %v814
        %1053 = vmatprep.subr.mxu0 %v819
        %1054 = vmatpush1.msra.mxu0 %v818
        %1055 = vmatprep.subr.mxu0 %v823
        %1056 = vmatpush1.msra.mxu0 %v822
        %1057 = vmatprep.subr.mxu0 %v827
        %1058 = vmatpush1.msra.mxu0 %v826
        %1059 = vmatprep.subr.mxu0 %v831
        %1060 = vmatpush1.msra.mxu0 %v830
        %1061 = vmatprep.subr.mxu0 %v835
        %1062 = vmatpush1.msra.mxu0 %v834
        %1063 = vmatprep.subr.mxu0 %v839
        %1064 = vmatpush1.msra.mxu0 %v838
        %1065 = vmatprep.subr.mxu0 %v843
        %1066 = vmatpush1.msra.mxu0 %v842
        %1067 = vmatprep.subr.mxu0 %v847
        %1068 = vmatpush1.msra.mxu0 %v846
        %1069 = vmatprep.subr.mxu0 0.0
        %1070 = vmatpush1.msra.mxu0 0.0
        %1071 = vmatprep.subr.mxu0 0.0
        %1072 = vmatpush1.msra.mxu0 0.0
        %1073 = vmatprep.subr.mxu0 0.0
        %1074 = vmatpush1.msra.mxu0 0.0
        %1075 = vmatprep.subr.mxu0 0.0
        %1076 = vmatpush1.msra.mxu0 0.0
        %1077 = vmatprep.subr.mxu0 0.0
        %1078 = vmatpush1.msra.mxu0 0.0
        %1079 = vmatprep.subr.mxu0 0.0
        %1080 = vmatpush1.msra.mxu0 0.0
        %1081 = vmatprep.subr.mxu0 0.0
        %1082 = vmatpush1.msra.mxu0 0.0
        %1083 = vmatprep.subr.mxu0 0.0
        %1084 = vmatpush1.msra.mxu0 0.0
        %1085 = vmatprep.subr.mxu0 0.0
        %1086 = vmatpush1.msra.mxu0 0.0
        %1087 = vmatprep.subr.mxu0 0.0
        %1088 = vmatpush1.msra.mxu0 0.0
        %1089 = vmatprep.subr.mxu0 0.0
        %1090 = vmatpush1.msra.mxu0 0.0
        %1091 = vmatprep.subr.mxu0 0.0
        %1092 = vmatpush1.msra.mxu0 0.0
        %1093 = vmatprep.subr.mxu0 0.0
        %1094 = vmatpush1.msra.mxu0 0.0
        %1095 = vmatprep.subr.mxu0 0.0
        %1096 = vmatpush1.msra.mxu0 0.0
        %1097 = vmatprep.subr.mxu0 0.0
        %1098 = vmatpush1.msra.mxu0 0.0
        %1099 = vmatprep.subr.mxu0 0.0
        %1100 = vmatpush1.msra.mxu0 0.0
        %1101 = vmatprep.mubr.f32.mxu0 0.0
        %1102 = vmatmul.mubr.f32.gmra.mrb[0].mxu0 %v1028
        %v1103 = vpop.f32.mrb[0].mxu0
        %v1104 = vadd.f32 0.0, %v1103
        %v1105 = vpop.f32.mrb[0].mxu0
        %v1106 = vadd.f32 0.0, %v1105
        %1107 = vdwg.mxu0
        %1108 = vmatprep.subr.mxu0 %v789
        %1109 = vmatpush1.msra.mxu0 %v788
        %1110 = vmatprep.subr.mxu0 %v793
        %1111 = vmatpush1.msra.mxu0 %v792
        %1112 = vmatprep.subr.mxu0 %v797
        %1113 = vmatpush1.msra.mxu0 %v796
        %1114 = vmatprep.subr.mxu0 %v801
        %1115 = vmatpush1.msra.mxu0 %v800
        %1116 = vmatprep.subr.mxu0 %v805
        %1117 = vmatpush1.msra.mxu0 %v804
        %1118 = vmatprep.subr.mxu0 %v809
        %1119 = vmatpush1.msra.mxu0 %v808
        %1120 = vmatprep.subr.mxu0 %v813
        %1121 = vmatpush1.msra.mxu0 %v812
        %1122 = vmatprep.subr.mxu0 %v817
        %1123 = vmatpush1.msra.mxu0 %v816
        %1124 = vmatprep.subr.mxu0 %v821
        %1125 = vmatpush1.msra.mxu0 %v820
        %1126 = vmatprep.subr.mxu0 %v825
        %1127 = vmatpush1.msra.mxu0 %v824
        %1128 = vmatprep.subr.mxu0 %v829
        %1129 = vmatpush1.msra.mxu0 %v828
        %1130 = vmatprep.subr.mxu0 %v833
        %1131 = vmatpush1.msra.mxu0 %v832
        %1132 = vmatprep.subr.mxu0 %v837
        %1133 = vmatpush1.msra.mxu0 %v836
        %1134 = vmatprep.subr.mxu0 %v841
        %1135 = vmatpush1.msra.mxu0 %v840
        %1136 = vmatprep.subr.mxu0 %v845
        %1137 = vmatpush1.msra.mxu0 %v844
        %1138 = vmatprep.subr.mxu0 %v849
        %1139 = vmatpush1.msra.mxu0 %v848
        %1140 = vmatprep.subr.mxu0 0.0
        %1141 = vmatpush1.msra.mxu0 0.0
        %1142 = vmatprep.subr.mxu0 0.0
        %1143 = vmatpush1.msra.mxu0 0.0
        %1144 = vmatprep.subr.mxu0 0.0
        %1145 = vmatpush1.msra.mxu0 0.0
        %1146 = vmatprep.subr.mxu0 0.0
        %1147 = vmatpush1.msra.mxu0 0.0
        %1148 = vmatprep.subr.mxu0 0.0
        %1149 = vmatpush1.msra.mxu0 0.0
        %1150 = vmatprep.subr.mxu0 0.0
        %1151 = vmatpush1.msra.mxu0 0.0
        %1152 = vmatprep.subr.mxu0 0.0
        %1153 = vmatpush1.msra.mxu0 0.0
        %1154 = vmatprep.subr.mxu0 0.0
        %1155 = vmatpush1.msra.mxu0 0.0
        %1156 = vmatprep.subr.mxu0 0.0
        %1157 = vmatpush1.msra.mxu0 0.0
        %1158 = vmatprep.subr.mxu0 0.0
        %1159 = vmatpush1.msra.mxu0 0.0
        %1160 = vmatprep.subr.mxu0 0.0
        %1161 = vmatpush1.msra.mxu0 0.0
        %1162 = vmatprep.subr.mxu0 0.0
        %1163 = vmatpush1.msra.mxu0 0.0
        %1164 = vmatprep.subr.mxu0 0.0
        %1165 = vmatpush1.msra.mxu0 0.0
        %1166 = vmatprep.subr.mxu0 0.0
        %1167 = vmatpush1.msra.mxu0 0.0
        %1168 = vmatprep.subr.mxu0 0.0
        %1169 = vmatpush1.msra.mxu0 0.0
        %1170 = vmatprep.subr.mxu0 0.0
        %1171 = vmatpush1.msra.mxu0 0.0
        %1172 = vmatprep.mubr.f32.mxu0 0.0
        %1173 = vmatmul.mubr.f32.gmra.mrb[0].mxu0 %v1028
        %v1174 = vpop.f32.mrb[0].mxu0
        %v1175 = vadd.f32 0.0, %v1174
        %v1176 = vpop.f32.mrb[0].mxu0
        %v1177 = vadd.f32 0.0, %v1176
        %1178 = vdwg.mxu0
        %v1179 = vadd.f32 %v1033, %v1104
        %v1180 = vadd.f32 %v1034, %v1106
        %v1181 = vadd.f32 %v1035, %v1175
        %v1182 = vadd.f32 %v1036, %v1177
        %v1183 = vxor.u32 %v1179, 2147483648
        %v1184 = vxor.u32 %v1180, 2147483648
        %v1185 = vxor.u32 %v1181, 2147483648
        %v1186 = vmul.f32 %v1183, 1.442695
        %v1187 = vpow.pop %v1186
        %v1188 = vmul.f32 %v1184, 1.442695
        %v1189 = vpow.pop %v1188
        %v1190 = vmul.f32 %v1185, 1.442695
        %v1191 = vpow.pop %v1190
        %v1192 = vadd.f32 %v1187, 1.0
        %v1193 = vadd.f32 %v1189, 1.0
        %v1194 = vadd.f32 %v1191, 1.0
        %v1195 = vrcp.pop %v1192
        %v1196 = vmul.f32 1.0, %v1195
        %v1197 = vrcp.pop %v1193
        %v1198 = vmul.f32 1.0, %v1197
        %v1199 = vrcp.pop %v1194
        %v1200 = vmul.f32 1.0, %v1199
        %v1201 = vtanh.pop %v1182
        %v1202 = vmul.f32 %v1198, %v1026
        %v1203 = vmul.f32 %v1196, %v1201
        %v1204 = vadd.f32 %v1202, %v1203
        %v1205 = vtanh.pop %v1204
        %v1206 = vmul.f32 %v1200, %v1205
        %s1207 = scalar_lea.vmem [#allocation7], 8
        %1208 = vst [vmem:[%s1207] sm:$0xff] %v1206
        %s1209 = smul.u32 2, 4
        %s1210 = smul.addr %s1209, 8
        %s1211 = scalar_lea.vmem [#allocation6], %s1210
        %v1212 = vld [vmem:[%s1211] sm:$0xff]
        %v1213 = vld [vmem:[%s1211 + $0x8] sm:$0xff]
        %v1214 = vld [vmem:[%s1211 + $0x10] sm:$0xff]
        %v1215 = vld [vmem:[%s1211 + $0x18] sm:$0xff]
        %1216 = vmatprep.subr.mxu0 %v787
        %1217 = vmatpush1.msra.mxu0 %v786
        %1218 = vmatprep.subr.mxu0 %v791
        %1219 = vmatpush1.msra.mxu0 %v790
        %1220 = vmatprep.subr.mxu0 %v795
        %1221 = vmatpush1.msra.mxu0 %v794
        %1222 = vmatprep.subr.mxu0 %v799
        %1223 = vmatpush1.msra.mxu0 %v798
        %1224 = vmatprep.subr.mxu0 %v803
        %1225 = vmatpush1.msra.mxu0 %v802
        %1226 = vmatprep.subr.mxu0 %v807
        %1227 = vmatpush1.msra.mxu0 %v806
        %1228 = vmatprep.subr.mxu0 %v811
        %1229 = vmatpush1.msra.mxu0 %v810
        %1230 = vmatprep.subr.mxu0 %v815
        %1231 = vmatpush1.msra.mxu0 %v814
        %1232 = vmatprep.subr.mxu0 %v819
        %1233 = vmatpush1.msra.mxu0 %v818
        %1234 = vmatprep.subr.mxu0 %v823
        %1235 = vmatpush1.msra.mxu0 %v822
        %1236 = vmatprep.subr.mxu0 %v827
        %1237 = vmatpush1.msra.mxu0 %v826
        %1238 = vmatprep.subr.mxu0 %v831
        %1239 = vmatpush1.msra.mxu0 %v830
        %1240 = vmatprep.subr.mxu0 %v835
        %1241 = vmatpush1.msra.mxu0 %v834
        %1242 = vmatprep.subr.mxu0 %v839
        %1243 = vmatpush1.msra.mxu0 %v838
        %1244 = vmatprep.subr.mxu0 %v843
        %1245 = vmatpush1.msra.mxu0 %v842
        %1246 = vmatprep.subr.mxu0 %v847
        %1247 = vmatpush1.msra.mxu0 %v846
        %1248 = vmatprep.subr.mxu0 0.0
        %1249 = vmatpush1.msra.mxu0 0.0
        %1250 = vmatprep.subr.mxu0 0.0
        %1251 = vmatpush1.msra.mxu0 0.0
        %1252 = vmatprep.subr.mxu0 0.0
        %1253 = vmatpush1.msra.mxu0 0.0
        %1254 = vmatprep.subr.mxu0 0.0
        %1255 = vmatpush1.msra.mxu0 0.0
        %1256 = vmatprep.subr.mxu0 0.0
        %1257 = vmatpush1.msra.mxu0 0.0
        %1258 = vmatprep.subr.mxu0 0.0
        %1259 = vmatpush1.msra.mxu0 0.0
        %1260 = vmatprep.subr.mxu0 0.0
        %1261 = vmatpush1.msra.mxu0 0.0
        %1262 = vmatprep.subr.mxu0 0.0
        %1263 = vmatpush1.msra.mxu0 0.0
        %1264 = vmatprep.subr.mxu0 0.0
        %1265 = vmatpush1.msra.mxu0 0.0
        %1266 = vmatprep.subr.mxu0 0.0
        %1267 = vmatpush1.msra.mxu0 0.0
        %1268 = vmatprep.subr.mxu0 0.0
        %1269 = vmatpush1.msra.mxu0 0.0
        %1270 = vmatprep.subr.mxu0 0.0
        %1271 = vmatpush1.msra.mxu0 0.0
        %1272 = vmatprep.subr.mxu0 0.0
        %1273 = vmatpush1.msra.mxu0 0.0
        %1274 = vmatprep.subr.mxu0 0.0
        %1275 = vmatpush1.msra.mxu0 0.0
        %1276 = vmatprep.subr.mxu0 0.0
        %1277 = vmatpush1.msra.mxu0 0.0
        %1278 = vmatprep.subr.mxu0 0.0
        %1279 = vmatpush1.msra.mxu0 0.0
        %1280 = vmatprep.mubr.f32.mxu0 0.0
        %1281 = vmatmul.mubr.f32.gmra.mrb[0].mxu0 %v1206
        %v1282 = vpop.f32.mrb[0].mxu0
        %v1283 = vadd.f32 0.0, %v1282
        %v1284 = vpop.f32.mrb[0].mxu0
        %v1285 = vadd.f32 0.0, %v1284
        %1286 = vdwg.mxu0
        %1287 = vmatprep.subr.mxu0 %v789
        %1288 = vmatpush1.msra.mxu0 %v788
        %1289 = vmatprep.subr.mxu0 %v793
        %1290 = vmatpush1.msra.mxu0 %v792
        %1291 = vmatprep.subr.mxu0 %v797
        %1292 = vmatpush1.msra.mxu0 %v796
        %1293 = vmatprep.subr.mxu0 %v801
        %1294 = vmatpush1.msra.mxu0 %v800
        %1295 = vmatprep.subr.mxu0 %v805
        %1296 = vmatpush1.msra.mxu0 %v804
        %1297 = vmatprep.subr.mxu0 %v809
        %1298 = vmatpush1.msra.mxu0 %v808
        %1299 = vmatprep.subr.mxu0 %v813
        %1300 = vmatpush1.msra.mxu0 %v812
        %1301 = vmatprep.subr.mxu0 %v817
        %1302 = vmatpush1.msra.mxu0 %v816
        %1303 = vmatprep.subr.mxu0 %v821
        %1304 = vmatpush1.msra.mxu0 %v820
        %1305 = vmatprep.subr.mxu0 %v825
        %1306 = vmatpush1.msra.mxu0 %v824
        %1307 = vmatprep.subr.mxu0 %v829
        %1308 = vmatpush1.msra.mxu0 %v828
        %1309 = vmatprep.subr.mxu0 %v833
        %1310 = vmatpush1.msra.mxu0 %v832
        %1311 = vmatprep.subr.mxu0 %v837
        %1312 = vmatpush1.msra.mxu0 %v836
        %1313 = vmatprep.subr.mxu0 %v841
        %1314 = vmatpush1.msra.mxu0 %v840
        %1315 = vmatprep.subr.mxu0 %v845
        %1316 = vmatpush1.msra.mxu0 %v844
        %1317 = vmatprep.subr.mxu0 %v849
        %1318 = vmatpush1.msra.mxu0 %v848
        %1319 = vmatprep.subr.mxu0 0.0
        %1320 = vmatpush1.msra.mxu0 0.0
        %1321 = vmatprep.subr.mxu0 0.0
        %1322 = vmatpush1.msra.mxu0 0.0
        %1323 = vmatprep.subr.mxu0 0.0
        %1324 = vmatpush1.msra.mxu0 0.0
        %1325 = vmatprep.subr.mxu0 0.0
        %1326 = vmatpush1.msra.mxu0 0.0
        %1327 = vmatprep.subr.mxu0 0.0
        %1328 = vmatpush1.msra.mxu0 0.0
        %1329 = vmatprep.subr.mxu0 0.0
        %1330 = vmatpush1.msra.mxu0 0.0
        %1331 = vmatprep.subr.mxu0 0.0
        %1332 = vmatpush1.msra.mxu0 0.0
        %1333 = vmatprep.subr.mxu0 0.0
        %1334 = vmatpush1.msra.mxu0 0.0
        %1335 = vmatprep.subr.mxu0 0.0
        %1336 = vmatpush1.msra.mxu0 0.0
        %1337 = vmatprep.subr.mxu0 0.0
        %1338 = vmatpush1.msra.mxu0 0.0
        %1339 = vmatprep.subr.mxu0 0.0
        %1340 = vmatpush1.msra.mxu0 0.0
        %1341 = vmatprep.subr.mxu0 0.0
        %1342 = vmatpush1.msra.mxu0 0.0
        %1343 = vmatprep.subr.mxu0 0.0
        %1344 = vmatpush1.msra.mxu0 0.0
        %1345 = vmatprep.subr.mxu0 0.0
        %1346 = vmatpush1.msra.mxu0 0.0
        %1347 = vmatprep.subr.mxu0 0.0
        %1348 = vmatpush1.msra.mxu0 0.0
        %1349 = vmatprep.subr.mxu0 0.0
        %1350 = vmatpush1.msra.mxu0 0.0
        %1351 = vmatprep.mubr.f32.mxu0 0.0
        %1352 = vmatmul.mubr.f32.gmra.mrb[0].mxu0 %v1206
        %v1353 = vpop.f32.mrb[0].mxu0
        %v1354 = vadd.f32 0.0, %v1353
        %v1355 = vpop.f32.mrb[0].mxu0
        %v1356 = vadd.f32 0.0, %v1355
        %1357 = vdwg.mxu0
        %v1358 = vadd.f32 %v1212, %v1283
        %v1359 = vadd.f32 %v1213, %v1285
        %v1360 = vadd.f32 %v1214, %v1354
        %v1361 = vadd.f32 %v1215, %v1356
        %v1362 = vxor.u32 %v1358, 2147483648
        %v1363 = vxor.u32 %v1359, 2147483648
        %v1364 = vxor.u32 %v1360, 2147483648
        %v1365 = vmul.f32 %v1362, 1.442695
        %v1366 = vpow.pop %v1365
        %v1367 = vmul.f32 %v1363, 1.442695
        %v1368 = vpow.pop %v1367
        %v1369 = vmul.f32 %v1364, 1.442695
        %v1370 = vpow.pop %v1369
        %v1371 = vadd.f32 %v1366, 1.0
        %v1372 = vadd.f32 %v1368, 1.0
        %v1373 = vadd.f32 %v1370, 1.0
        %v1374 = vrcp.pop %v1371
        %v1375 = vmul.f32 1.0, %v1374
        %v1376 = vrcp.pop %v1372
        %v1377 = vmul.f32 1.0, %v1376
        %v1378 = vrcp.pop %v1373
        %v1379 = vmul.f32 1.0, %v1378
        %v1380 = vtanh.pop %v1361
        %v1381 = vmul.f32 %v1377, %v1204
        %v1382 = vmul.f32 %v1375, %v1380
        %v1383 = vadd.f32 %v1381, %v1382
        %v1384 = vtanh.pop %v1383
        %v1385 = vmul.f32 %v1379, %v1384
        %s1386 = scalar_lea.vmem [#allocation7], 16
        %1387 = vst [vmem:[%s1386] sm:$0xff] %v1385
        %s1388 = smul.u32 3, 4
        %s1389 = smul.addr %s1388, 8
        %s1390 = scalar_lea.vmem [#allocation6], %s1389
        %v1391 = vld [vmem:[%s1390] sm:$0xff]
        %v1392 = vld [vmem:[%s1390 + $0x8] sm:$0xff]
        %v1393 = vld [vmem:[%s1390 + $0x10] sm:$0xff]
        %v1394 = vld [vmem:[%s1390 + $0x18] sm:$0xff]
        %1395 = vmatprep.subr.mxu0 %v787
        %1396 = vmatpush1.msra.mxu0 %v786
        %1397 = vmatprep.subr.mxu0 %v791
        %1398 = vmatpush1.msra.mxu0 %v790
        %1399 = vmatprep.subr.mxu0 %v795
        %1400 = vmatpush1.msra.mxu0 %v794
        %1401 = vmatprep.subr.mxu0 %v799
        %1402 = vmatpush1.msra.mxu0 %v798
        %1403 = vmatprep.subr.mxu0 %v803
        %1404 = vmatpush1.msra.mxu0 %v802
        %1405 = vmatprep.subr.mxu0 %v807
        %1406 = vmatpush1.msra.mxu0 %v806
        %1407 = vmatprep.subr.mxu0 %v811
        %1408 = vmatpush1.msra.mxu0 %v810
        %1409 = vmatprep.subr.mxu0 %v815
        %1410 = vmatpush1.msra.mxu0 %v814
        %1411 = vmatprep.subr.mxu0 %v819
        %1412 = vmatpush1.msra.mxu0 %v818
        %1413 = vmatprep.subr.mxu0 %v823
        %1414 = vmatpush1.msra.mxu0 %v822
        %1415 = vmatprep.subr.mxu0 %v827
        %1416 = vmatpush1.msra.mxu0 %v826
        %1417 = vmatprep.subr.mxu0 %v831
        %1418 = vmatpush1.msra.mxu0 %v830
        %1419 = vmatprep.subr.mxu0 %v835
        %1420 = vmatpush1.msra.mxu0 %v834
        %1421 = vmatprep.subr.mxu0 %v839
        %1422 = vmatpush1.msra.mxu0 %v838
        %1423 = vmatprep.subr.mxu0 %v843
        %1424 = vmatpush1.msra.mxu0 %v842
        %1425 = vmatprep.subr.mxu0 %v847
        %1426 = vmatpush1.msra.mxu0 %v846
        %1427 = vmatprep.subr.mxu0 0.0
        %1428 = vmatpush1.msra.mxu0 0.0
        %1429 = vmatprep.subr.mxu0 0.0
        %1430 = vmatpush1.msra.mxu0 0.0
        %1431 = vmatprep.subr.mxu0 0.0
        %1432 = vmatpush1.msra.mxu0 0.0
        %1433 = vmatprep.subr.mxu0 0.0
        %1434 = vmatpush1.msra.mxu0 0.0
        %1435 = vmatprep.subr.mxu0 0.0
        %1436 = vmatpush1.msra.mxu0 0.0
        %1437 = vmatprep.subr.mxu0 0.0
        %1438 = vmatpush1.msra.mxu0 0.0
        %1439 = vmatprep.subr.mxu0 0.0
        %1440 = vmatpush1.msra.mxu0 0.0
        %1441 = vmatprep.subr.mxu0 0.0
        %1442 = vmatpush1.msra.mxu0 0.0
        %1443 = vmatprep.subr.mxu0 0.0
        %1444 = vmatpush1.msra.mxu0 0.0
        %1445 = vmatprep.subr.mxu0 0.0
        %1446 = vmatpush1.msra.mxu0 0.0
        %1447 = vmatprep.subr.mxu0 0.0
        %1448 = vmatpush1.msra.mxu0 0.0
        %1449 = vmatprep.subr.mxu0 0.0
        %1450 = vmatpush1.msra.mxu0 0.0
        %1451 = vmatprep.subr.mxu0 0.0
        %1452 = vmatpush1.msra.mxu0 0.0
        %1453 = vmatprep.subr.mxu0 0.0
        %1454 = vmatpush1.msra.mxu0 0.0
        %1455 = vmatprep.subr.mxu0 0.0
        %1456 = vmatpush1.msra.mxu0 0.0
        %1457 = vmatprep.subr.mxu0 0.0
        %1458 = vmatpush1.msra.mxu0 0.0
        %1459 = vmatprep.mubr.f32.mxu0 0.0
        %1460 = vmatmul.mubr.f32.gmra.mrb[0].mxu0 %v1385
        %v1461 = vpop.f32.mrb[0].mxu0
        %v1462 = vadd.f32 0.0, %v1461
        %v1463 = vpop.f32.mrb[0].mxu0
        %v1464 = vadd.f32 0.0, %v1463
        %1465 = vdwg.mxu0
        %1466 = vmatprep.subr.mxu0 %v789
        %1467 = vmatpush1.msra.mxu0 %v788
        %1468 = vmatprep.subr.mxu0 %v793
        %1469 = vmatpush1.msra.mxu0 %v792
        %1470 = vmatprep.subr.mxu0 %v797
        %1471 = vmatpush1.msra.mxu0 %v796
        %1472 = vmatprep.subr.mxu0 %v801
        %1473 = vmatpush1.msra.mxu0 %v800
        %1474 = vmatprep.subr.mxu0 %v805
        %1475 = vmatpush1.msra.mxu0 %v804
        %1476 = vmatprep.subr.mxu0 %v809
        %1477 = vmatpush1.msra.mxu0 %v808
        %1478 = vmatprep.subr.mxu0 %v813
        %1479 = vmatpush1.msra.mxu0 %v812
        %1480 = vmatprep.subr.mxu0 %v817
        %1481 = vmatpush1.msra.mxu0 %v816
        %1482 = vmatprep.subr.mxu0 %v821
        %1483 = vmatpush1.msra.mxu0 %v820
        %1484 = vmatprep.subr.mxu0 %v825
        %1485 = vmatpush1.msra.mxu0 %v824
        %1486 = vmatprep.subr.mxu0 %v829
        %1487 = vmatpush1.msra.mxu0 %v828
        %1488 = vmatprep.subr.mxu0 %v833
        %1489 = vmatpush1.msra.mxu0 %v832
        %1490 = vmatprep.subr.mxu0 %v837
        %1491 = vmatpush1.msra.mxu0 %v836
        %1492 = vmatprep.subr.mxu0 %v841
        %1493 = vmatpush1.msra.mxu0 %v840
        %1494 = vmatprep.subr.mxu0 %v845
        %1495 = vmatpush1.msra.mxu0 %v844
        %1496 = vmatprep.subr.mxu0 %v849
        %1497 = vmatpush1.msra.mxu0 %v848
        %1498 = vmatprep.subr.mxu0 0.0
        %1499 = vmatpush1.msra.mxu0 0.0
        %1500 = vmatprep.subr.mxu0 0.0
        %1501 = vmatpush1.msra.mxu0 0.0
        %1502 = vmatprep.subr.mxu0 0.0
        %1503 = vmatpush1.msra.mxu0 0.0
        %1504 = vmatprep.subr.mxu0 0.0
        %1505 = vmatpush1.msra.mxu0 0.0
        %1506 = vmatprep.subr.mxu0 0.0
        %1507 = vmatpush1.msra.mxu0 0.0
        %1508 = vmatprep.subr.mxu0 0.0
        %1509 = vmatpush1.msra.mxu0 0.0
        %1510 = vmatprep.subr.mxu0 0.0
        %1511 = vmatpush1.msra.mxu0 0.0
        %1512 = vmatprep.subr.mxu0 0.0
        %1513 = vmatpush1.msra.mxu0 0.0
        %1514 = vmatprep.subr.mxu0 0.0
        %1515 = vmatpush1.msra.mxu0 0.0
        %1516 = vmatprep.subr.mxu0 0.0
        %1517 = vmatpush1.msra.mxu0 0.0
        %1518 = vmatprep.subr.mxu0 0.0
        %1519 = vmatpush1.msra.mxu0 0.0
        %1520 = vmatprep.subr.mxu0 0.0
        %1521 = vmatpush1.msra.mxu0 0.0
        %1522 = vmatprep.subr.mxu0 0.0
        %1523 = vmatpush1.msra.mxu0 0.0
        %1524 = vmatprep.subr.mxu0 0.0
        %1525 = vmatpush1.msra.mxu0 0.0
        %1526 = vmatprep.subr.mxu0 0.0
        %1527 = vmatpush1.msra.mxu0 0.0
        %1528 = vmatprep.subr.mxu0 0.0
        %1529 = vmatpush1.msra.mxu0 0.0
        %1530 = vmatprep.mubr.f32.mxu0 0.0
        %1531 = vmatmul.mubr.f32.gmra.mrb[0].mxu0 %v1385
        %v1532 = vpop.f32.mrb[0].mxu0
        %v1533 = vadd.f32 0.0, %v1532
        %v1534 = vpop.f32.mrb[0].mxu0
        %v1535 = vadd.f32 0.0, %v1534
        %1536 = vdwg.mxu0
        %v1537 = vadd.f32 %v1391, %v1462
        %v1538 = vadd.f32 %v1392, %v1464
        %v1539 = vadd.f32 %v1393, %v1533
        %v1540 = vadd.f32 %v1394, %v1535
        %v1541 = vxor.u32 %v1537, 2147483648
        %v1542 = vxor.u32 %v1538, 2147483648
        %v1543 = vxor.u32 %v1539, 2147483648
        %v1544 = vmul.f32 %v1541, 1.442695
        %v1545 = vpow.pop %v1544
        %v1546 = vmul.f32 %v1542, 1.442695
        %v1547 = vpow.pop %v1546
        %v1548 = vmul.f32 %v1543, 1.442695
        %v1549 = vpow.pop %v1548
        %v1550 = vadd.f32 %v1545, 1.0
        %v1551 = vadd.f32 %v1547, 1.0
        %v1552 = vadd.f32 %v1549, 1.0
        %v1553 = vrcp.pop %v1550
        %v1554 = vmul.f32 1.0, %v1553
        %v1555 = vrcp.pop %v1551
        %v1556 = vmul.f32 1.0, %v1555
        %v1557 = vrcp.pop %v1552
        %v1558 = vmul.f32 1.0, %v1557
        %v1559 = vtanh.pop %v1540
        %v1560 = vmul.f32 %v1556, %v1383
        %v1561 = vmul.f32 %v1554, %v1559
        %v1562 = vadd.f32 %v1560, %v1561
        %v1563 = vtanh.pop %v1562
        %v1564 = vmul.f32 %v1558, %v1563
        %s1565 = scalar_lea.vmem [#allocation7], 24
        %1566 = vst [vmem:[%s1565] sm:$0xff] %v1564
        %s1567 = smul.u32 4, 4
        %s1568 = smul.addr %s1567, 8
        %s1569 = scalar_lea.vmem [#allocation6], %s1568
        %v1570 = vld [vmem:[%s1569] sm:$0xff]
        %v1571 = vld [vmem:[%s1569 + $0x8] sm:$0xff]
        %v1572 = vld [vmem:[%s1569 + $0x10] sm:$0xff]
        %v1573 = vld [vmem:[%s1569 + $0x18] sm:$0xff]
        %1574 = vmatprep.subr.mxu0 %v787
        %1575 = vmatpush1.msra.mxu0 %v786
        %1576 = vmatprep.subr.mxu0 %v791
        %1577 = vmatpush1.msra.mxu0 %v790
        %1578 = vmatprep.subr.mxu0 %v795
        %1579 = vmatpush1.msra.mxu0 %v794
        %1580 = vmatprep.subr.mxu0 %v799
        %1581 = vmatpush1.msra.mxu0 %v798
        %1582 = vmatprep.subr.mxu0 %v803
        %1583 = vmatpush1.msra.mxu0 %v802
        %1584 = vmatprep.subr.mxu0 %v807
        %1585 = vmatpush1.msra.mxu0 %v806
        %1586 = vmatprep.subr.mxu0 %v811
        %1587 = vmatpush1.msra.mxu0 %v810
        %1588 = vmatprep.subr.mxu0 %v815
        %1589 = vmatpush1.msra.mxu0 %v814
        %1590 = vmatprep.subr.mxu0 %v819
        %1591 = vmatpush1.msra.mxu0 %v818
        %1592 = vmatprep.subr.mxu0 %v823
        %1593 = vmatpush1.msra.mxu0 %v822
        %1594 = vmatprep.subr.mxu0 %v827
        %1595 = vmatpush1.msra.mxu0 %v826
        %1596 = vmatprep.subr.mxu0 %v831
        %1597 = vmatpush1.msra.mxu0 %v830
        %1598 = vmatprep.subr.mxu0 %v835
        %1599 = vmatpush1.msra.mxu0 %v834
        %1600 = vmatprep.subr.mxu0 %v839
        %1601 = vmatpush1.msra.mxu0 %v838
        %1602 = vmatprep.subr.mxu0 %v843
        %1603 = vmatpush1.msra.mxu0 %v842
        %1604 = vmatprep.subr.mxu0 %v847
        %1605 = vmatpush1.msra.mxu0 %v846
        %1606 = vmatprep.subr.mxu0 0.0
        %1607 = vmatpush1.msra.mxu0 0.0
        %1608 = vmatprep.subr.mxu0 0.0
        %1609 = vmatpush1.msra.mxu0 0.0
        %1610 = vmatprep.subr.mxu0 0.0
        %1611 = vmatpush1.msra.mxu0 0.0
        %1612 = vmatprep.subr.mxu0 0.0
        %1613 = vmatpush1.msra.mxu0 0.0
        %1614 = vmatprep.subr.mxu0 0.0
        %1615 = vmatpush1.msra.mxu0 0.0
        %1616 = vmatprep.subr.mxu0 0.0
        %1617 = vmatpush1.msra.mxu0 0.0
        %1618 = vmatprep.subr.mxu0 0.0
        %1619 = vmatpush1.msra.mxu0 0.0
        %1620 = vmatprep.subr.mxu0 0.0
        %1621 = vmatpush1.msra.mxu0 0.0
        %1622 = vmatprep.subr.mxu0 0.0
        %1623 = vmatpush1.msra.mxu0 0.0
        %1624 = vmatprep.subr.mxu0 0.0
        %1625 = vmatpush1.msra.mxu0 0.0
        %1626 = vmatprep.subr.mxu0 0.0
        %1627 = vmatpush1.msra.mxu0 0.0
        %1628 = vmatprep.subr.mxu0 0.0
        %1629 = vmatpush1.msra.mxu0 0.0
        %1630 = vmatprep.subr.mxu0 0.0
        %1631 = vmatpush1.msra.mxu0 0.0
        %1632 = vmatprep.subr.mxu0 0.0
        %1633 = vmatpush1.msra.mxu0 0.0
        %1634 = vmatprep.subr.mxu0 0.0
        %1635 = vmatpush1.msra.mxu0 0.0
        %1636 = vmatprep.subr.mxu0 0.0
        %1637 = vmatpush1.msra.mxu0 0.0
        %1638 = vmatprep.mubr.f32.mxu0 0.0
        %1639 = vmatmul.mubr.f32.gmra.mrb[0].mxu0 %v1564
        %v1640 = vpop.f32.mrb[0].mxu0
        %v1641 = vadd.f32 0.0, %v1640
        %v1642 = vpop.f32.mrb[0].mxu0
        %v1643 = vadd.f32 0.0, %v1642
        %1644 = vdwg.mxu0
        %1645 = vmatprep.subr.mxu0 %v789
        %1646 = vmatpush1.msra.mxu0 %v788
        %1647 = vmatprep.subr.mxu0 %v793
        %1648 = vmatpush1.msra.mxu0 %v792
        %1649 = vmatprep.subr.mxu0 %v797
        %1650 = vmatpush1.msra.mxu0 %v796
        %1651 = vmatprep.subr.mxu0 %v801
        %1652 = vmatpush1.msra.mxu0 %v800
        %1653 = vmatprep.subr.mxu0 %v805
        %1654 = vmatpush1.msra.mxu0 %v804
        %1655 = vmatprep.subr.mxu0 %v809
        %1656 = vmatpush1.msra.mxu0 %v808
        %1657 = vmatprep.subr.mxu0 %v813
        %1658 = vmatpush1.msra.mxu0 %v812
        %1659 = vmatprep.subr.mxu0 %v817
        %1660 = vmatpush1.msra.mxu0 %v816
        %1661 = vmatprep.subr.mxu0 %v821
        %1662 = vmatpush1.msra.mxu0 %v820
        %1663 = vmatprep.subr.mxu0 %v825
        %1664 = vmatpush1.msra.mxu0 %v824
        %1665 = vmatprep.subr.mxu0 %v829
        %1666 = vmatpush1.msra.mxu0 %v828
        %1667 = vmatprep.subr.mxu0 %v833
        %1668 = vmatpush1.msra.mxu0 %v832
        %1669 = vmatprep.subr.mxu0 %v837
        %1670 = vmatpush1.msra.mxu0 %v836
        %1671 = vmatprep.subr.mxu0 %v841
        %1672 = vmatpush1.msra.mxu0 %v840
        %1673 = vmatprep.subr.mxu0 %v845
        %1674 = vmatpush1.msra.mxu0 %v844
        %1675 = vmatprep.subr.mxu0 %v849
        %1676 = vmatpush1.msra.mxu0 %v848
        %1677 = vmatprep.subr.mxu0 0.0
        %1678 = vmatpush1.msra.mxu0 0.0
        %1679 = vmatprep.subr.mxu0 0.0
        %1680 = vmatpush1.msra.mxu0 0.0
        %1681 = vmatprep.subr.mxu0 0.0
        %1682 = vmatpush1.msra.mxu0 0.0
        %1683 = vmatprep.subr.mxu0 0.0
        %1684 = vmatpush1.msra.mxu0 0.0
        %1685 = vmatprep.subr.mxu0 0.0
        %1686 = vmatpush1.msra.mxu0 0.0
        %1687 = vmatprep.subr.mxu0 0.0
        %1688 = vmatpush1.msra.mxu0 0.0
        %1689 = vmatprep.subr.mxu0 0.0
        %1690 = vmatpush1.msra.mxu0 0.0
        %1691 = vmatprep.subr.mxu0 0.0
        %1692 = vmatpush1.msra.mxu0 0.0
        %1693 = vmatprep.subr.mxu0 0.0
        %1694 = vmatpush1.msra.mxu0 0.0
        %1695 = vmatprep.subr.mxu0 0.0
        %1696 = vmatpush1.msra.mxu0 0.0
        %1697 = vmatprep.subr.mxu0 0.0
        %1698 = vmatpush1.msra.mxu0 0.0
        %1699 = vmatprep.subr.mxu0 0.0
        %1700 = vmatpush1.msra.mxu0 0.0
        %1701 = vmatprep.subr.mxu0 0.0
        %1702 = vmatpush1.msra.mxu0 0.0
        %1703 = vmatprep.subr.mxu0 0.0
        %1704 = vmatpush1.msra.mxu0 0.0
        %1705 = vmatprep.subr.mxu0 0.0
        %1706 = vmatpush1.msra.mxu0 0.0
        %1707 = vmatprep.subr.mxu0 0.0
        %1708 = vmatpush1.msra.mxu0 0.0
        %1709 = vmatprep.mubr.f32.mxu0 0.0
        %1710 = vmatmul.mubr.f32.gmra.mrb[0].mxu0 %v1564
        %v1711 = vpop.f32.mrb[0].mxu0
        %v1712 = vadd.f32 0.0, %v1711
        %v1713 = vpop.f32.mrb[0].mxu0
        %v1714 = vadd.f32 0.0, %v1713
        %1715 = vdwg.mxu0
        %v1716 = vadd.f32 %v1570, %v1641
        %v1717 = vadd.f32 %v1571, %v1643
        %v1718 = vadd.f32 %v1572, %v1712
        %v1719 = vadd.f32 %v1573, %v1714
        %v1720 = vxor.u32 %v1716, 2147483648
        %v1721 = vxor.u32 %v1717, 2147483648
        %v1722 = vxor.u32 %v1718, 2147483648
        %v1723 = vmul.f32 %v1720, 1.442695
        %v1724 = vpow.pop %v1723
        %v1725 = vmul.f32 %v1721, 1.442695
        %v1726 = vpow.pop %v1725
        %v1727 = vmul.f32 %v1722, 1.442695
        %v1728 = vpow.pop %v1727
        %v1729 = vadd.f32 %v1724, 1.0
        %v1730 = vadd.f32 %v1726, 1.0
        %v1731 = vadd.f32 %v1728, 1.0
        %v1732 = vrcp.pop %v1729
        %v1733 = vmul.f32 1.0, %v1732
        %v1734 = vrcp.pop %v1730
        %v1735 = vmul.f32 1.0, %v1734
        %v1736 = vrcp.pop %v1731
        %v1737 = vmul.f32 1.0, %v1736
        %v1738 = vtanh.pop %v1719
        %v1739 = vmul.f32 %v1735, %v1562
        %v1740 = vmul.f32 %v1733, %v1738
        %v1741 = vadd.f32 %v1739, %v1740
        %v1742 = vtanh.pop %v1741
        %v1743 = vmul.f32 %v1737, %v1742
        %s1744 = scalar_lea.vmem [#allocation7], 32
        %1745 = vst [vmem:[%s1744] sm:$0xff] %v1743
        %s1746 = smul.u32 5, 4
        %s1747 = smul.addr %s1746, 8
        %s1748 = scalar_lea.vmem [#allocation6], %s1747
        %v1749 = vld [vmem:[%s1748] sm:$0xff]
        %v1750 = vld [vmem:[%s1748 + $0x8] sm:$0xff]
        %v1751 = vld [vmem:[%s1748 + $0x10] sm:$0xff]
        %v1752 = vld [vmem:[%s1748 + $0x18] sm:$0xff]
        %1753 = vmatprep.subr.mxu0 %v787
        %1754 = vmatpush1.msra.mxu0 %v786
        %1755 = vmatprep.subr.mxu0 %v791
        %1756 = vmatpush1.msra.mxu0 %v790
        %1757 = vmatprep.subr.mxu0 %v795
        %1758 = vmatpush1.msra.mxu0 %v794
        %1759 = vmatprep.subr.mxu0 %v799
        %1760 = vmatpush1.msra.mxu0 %v798
        %1761 = vmatprep.subr.mxu0 %v803
        %1762 = vmatpush1.msra.mxu0 %v802
        %1763 = vmatprep.subr.mxu0 %v807
        %1764 = vmatpush1.msra.mxu0 %v806
        %1765 = vmatprep.subr.mxu0 %v811
        %1766 = vmatpush1.msra.mxu0 %v810
        %1767 = vmatprep.subr.mxu0 %v815
        %1768 = vmatpush1.msra.mxu0 %v814
        %1769 = vmatprep.subr.mxu0 %v819
        %1770 = vmatpush1.msra.mxu0 %v818
        %1771 = vmatprep.subr.mxu0 %v823
        %1772 = vmatpush1.msra.mxu0 %v822
        %1773 = vmatprep.subr.mxu0 %v827
        %1774 = vmatpush1.msra.mxu0 %v826
        %1775 = vmatprep.subr.mxu0 %v831
        %1776 = vmatpush1.msra.mxu0 %v830
        %1777 = vmatprep.subr.mxu0 %v835
        %1778 = vmatpush1.msra.mxu0 %v834
        %1779 = vmatprep.subr.mxu0 %v839
        %1780 = vmatpush1.msra.mxu0 %v838
        %1781 = vmatprep.subr.mxu0 %v843
        %1782 = vmatpush1.msra.mxu0 %v842
        %1783 = vmatprep.subr.mxu0 %v847
        %1784 = vmatpush1.msra.mxu0 %v846
        %1785 = vmatprep.subr.mxu0 0.0
        %1786 = vmatpush1.msra.mxu0 0.0
        %1787 = vmatprep.subr.mxu0 0.0
        %1788 = vmatpush1.msra.mxu0 0.0
        %1789 = vmatprep.subr.mxu0 0.0
        %1790 = vmatpush1.msra.mxu0 0.0
        %1791 = vmatprep.subr.mxu0 0.0
        %1792 = vmatpush1.msra.mxu0 0.0
        %1793 = vmatprep.subr.mxu0 0.0
        %1794 = vmatpush1.msra.mxu0 0.0
        %1795 = vmatprep.subr.mxu0 0.0
        %1796 = vmatpush1.msra.mxu0 0.0
        %1797 = vmatprep.subr.mxu0 0.0
        %1798 = vmatpush1.msra.mxu0 0.0
        %1799 = vmatprep.subr.mxu0 0.0
        %1800 = vmatpush1.msra.mxu0 0.0
        %1801 = vmatprep.subr.mxu0 0.0
        %1802 = vmatpush1.msra.mxu0 0.0
        %1803 = vmatprep.subr.mxu0 0.0
        %1804 = vmatpush1.msra.mxu0 0.0
        %1805 = vmatprep.subr.mxu0 0.0
        %1806 = vmatpush1.msra.mxu0 0.0
        %1807 = vmatprep.subr.mxu0 0.0
        %1808 = vmatpush1.msra.mxu0 0.0
        %1809 = vmatprep.subr.mxu0 0.0
        %1810 = vmatpush1.msra.mxu0 0.0
        %1811 = vmatprep.subr.mxu0 0.0
        %1812 = vmatpush1.msra.mxu0 0.0
        %1813 = vmatprep.subr.mxu0 0.0
        %1814 = vmatpush1.msra.mxu0 0.0
        %1815 = vmatprep.subr.mxu0 0.0
        %1816 = vmatpush1.msra.mxu0 0.0
        %1817 = vmatprep.mubr.f32.mxu0 0.0
        %1818 = vmatmul.mubr.f32.gmra.mrb[0].mxu0 %v1743
        %v1819 = vpop.f32.mrb[0].mxu0
        %v1820 = vadd.f32 0.0, %v1819
        %v1821 = vpop.f32.mrb[0].mxu0
        %v1822 = vadd.f32 0.0, %v1821
        %1823 = vdwg.mxu0
        %1824 = vmatprep.subr.mxu0 %v789
        %1825 = vmatpush1.msra.mxu0 %v788
        %1826 = vmatprep.subr.mxu0 %v793
        %1827 = vmatpush1.msra.mxu0 %v792
        %1828 = vmatprep.subr.mxu0 %v797
        %1829 = vmatpush1.msra.mxu0 %v796
        %1830 = vmatprep.subr.mxu0 %v801
        %1831 = vmatpush1.msra.mxu0 %v800
        %1832 = vmatprep.subr.mxu0 %v805
        %1833 = vmatpush1.msra.mxu0 %v804
        %1834 = vmatprep.subr.mxu0 %v809
        %1835 = vmatpush1.msra.mxu0 %v808
        %1836 = vmatprep.subr.mxu0 %v813
        %1837 = vmatpush1.msra.mxu0 %v812
        %1838 = vmatprep.subr.mxu0 %v817
        %1839 = vmatpush1.msra.mxu0 %v816
        %1840 = vmatprep.subr.mxu0 %v821
        %1841 = vmatpush1.msra.mxu0 %v820
        %1842 = vmatprep.subr.mxu0 %v825
        %1843 = vmatpush1.msra.mxu0 %v824
        %1844 = vmatprep.subr.mxu0 %v829
        %1845 = vmatpush1.msra.mxu0 %v828
        %1846 = vmatprep.subr.mxu0 %v833
        %1847 = vmatpush1.msra.mxu0 %v832
        %1848 = vmatprep.subr.mxu0 %v837
        %1849 = vmatpush1.msra.mxu0 %v836
        %1850 = vmatprep.subr.mxu0 %v841
        %1851 = vmatpush1.msra.mxu0 %v840
        %1852 = vmatprep.subr.mxu0 %v845
        %1853 = vmatpush1.msra.mxu0 %v844
        %1854 = vmatprep.subr.mxu0 %v849
        %1855 = vmatpush1.msra.mxu0 %v848
        %1856 = vmatprep.subr.mxu0 0.0
        %1857 = vmatpush1.msra.mxu0 0.0
        %1858 = vmatprep.subr.mxu0 0.0
        %1859 = vmatpush1.msra.mxu0 0.0
        %1860 = vmatprep.subr.mxu0 0.0
        %1861 = vmatpush1.msra.mxu0 0.0
        %1862 = vmatprep.subr.mxu0 0.0
        %1863 = vmatpush1.msra.mxu0 0.0
        %1864 = vmatprep.subr.mxu0 0.0
        %1865 = vmatpush1.msra.mxu0 0.0
        %1866 = vmatprep.subr.mxu0 0.0
        %1867 = vmatpush1.msra.mxu0 0.0
        %1868 = vmatprep.subr.mxu0 0.0
        %1869 = vmatpush1.msra.mxu0 0.0
        %1870 = vmatprep.subr.mxu0 0.0
        %1871 = vmatpush1.msra.mxu0 0.0
        %1872 = vmatprep.subr.mxu0 0.0
        %1873 = vmatpush1.msra.mxu0 0.0
        %1874 = vmatprep.subr.mxu0 0.0
        %1875 = vmatpush1.msra.mxu0 0.0
        %1876 = vmatprep.subr.mxu0 0.0
        %1877 = vmatpush1.msra.mxu0 0.0
        %1878 = vmatprep.subr.mxu0 0.0
        %1879 = vmatpush1.msra.mxu0 0.0
        %1880 = vmatprep.subr.mxu0 0.0
        %1881 = vmatpush1.msra.mxu0 0.0
        %1882 = vmatprep.subr.mxu0 0.0
        %1883 = vmatpush1.msra.mxu0 0.0
        %1884 = vmatprep.subr.mxu0 0.0
        %1885 = vmatpush1.msra.mxu0 0.0
        %1886 = vmatprep.subr.mxu0 0.0
        %1887 = vmatpush1.msra.mxu0 0.0
        %1888 = vmatprep.mubr.f32.mxu0 0.0
        %1889 = vmatmul.mubr.f32.gmra.mrb[0].mxu0 %v1743
        %v1890 = vpop.f32.mrb[0].mxu0
        %v1891 = vadd.f32 0.0, %v1890
        %v1892 = vpop.f32.mrb[0].mxu0
        %v1893 = vadd.f32 0.0, %v1892
        %1894 = vdwg.mxu0
        %v1895 = vadd.f32 %v1749, %v1820
        %v1896 = vadd.f32 %v1750, %v1822
        %v1897 = vadd.f32 %v1751, %v1891
        %v1898 = vadd.f32 %v1752, %v1893
        %v1899 = vxor.u32 %v1895, 2147483648
        %v1900 = vxor.u32 %v1896, 2147483648
        %v1901 = vxor.u32 %v1897, 2147483648
        %v1902 = vmul.f32 %v1899, 1.442695
        %v1903 = vpow.pop %v1902
        %v1904 = vmul.f32 %v1900, 1.442695
        %v1905 = vpow.pop %v1904
        %v1906 = vmul.f32 %v1901, 1.442695
        %v1907 = vpow.pop %v1906
        %v1908 = vadd.f32 %v1903, 1.0
        %v1909 = vadd.f32 %v1905, 1.0
        %v1910 = vadd.f32 %v1907, 1.0
        %v1911 = vrcp.pop %v1908
        %v1912 = vmul.f32 1.0, %v1911
        %v1913 = vrcp.pop %v1909
        %v1914 = vmul.f32 1.0, %v1913
        %v1915 = vrcp.pop %v1910
        %v1916 = vmul.f32 1.0, %v1915
        %v1917 = vtanh.pop %v1898
        %v1918 = vmul.f32 %v1914, %v1741
        %v1919 = vmul.f32 %v1912, %v1917
        %v1920 = vadd.f32 %v1918, %v1919
        %v1921 = vtanh.pop %v1920
        %v1922 = vmul.f32 %v1916, %v1921
        %s1923 = scalar_lea.vmem [#allocation7], 40
        %1924 = vst [vmem:[%s1923] sm:$0xff] %v1922
        %s1925 = smul.u32 6, 4
        %s1926 = smul.addr %s1925, 8
        %s1927 = scalar_lea.vmem [#allocation6], %s1926
        %v1928 = vld [vmem:[%s1927] sm:$0xff]
        %v1929 = vld [vmem:[%s1927 + $0x8] sm:$0xff]
        %v1930 = vld [vmem:[%s1927 + $0x10] sm:$0xff]
        %v1931 = vld [vmem:[%s1927 + $0x18] sm:$0xff]
        %1932 = vmatprep.subr.mxu0 %v787
        %1933 = vmatpush1.msra.mxu0 %v786
        %1934 = vmatprep.subr.mxu0 %v791
        %1935 = vmatpush1.msra.mxu0 %v790
        %1936 = vmatprep.subr.mxu0 %v795
        %1937 = vmatpush1.msra.mxu0 %v794
        %1938 = vmatprep.subr.mxu0 %v799
        %1939 = vmatpush1.msra.mxu0 %v798
        %1940 = vmatprep.subr.mxu0 %v803
        %1941 = vmatpush1.msra.mxu0 %v802
        %1942 = vmatprep.subr.mxu0 %v807
        %1943 = vmatpush1.msra.mxu0 %v806
        %1944 = vmatprep.subr.mxu0 %v811
        %1945 = vmatpush1.msra.mxu0 %v810
        %1946 = vmatprep.subr.mxu0 %v815
        %1947 = vmatpush1.msra.mxu0 %v814
        %1948 = vmatprep.subr.mxu0 %v819
        %1949 = vmatpush1.msra.mxu0 %v818
        %1950 = vmatprep.subr.mxu0 %v823
        %1951 = vmatpush1.msra.mxu0 %v822
        %1952 = vmatprep.subr.mxu0 %v827
        %1953 = vmatpush1.msra.mxu0 %v826
        %1954 = vmatprep.subr.mxu0 %v831
        %1955 = vmatpush1.msra.mxu0 %v830
        %1956 = vmatprep.subr.mxu0 %v835
        %1957 = vmatpush1.msra.mxu0 %v834
        %1958 = vmatprep.subr.mxu0 %v839
        %1959 = vmatpush1.msra.mxu0 %v838
        %1960 = vmatprep.subr.mxu0 %v843
        %1961 = vmatpush1.msra.mxu0 %v842
        %1962 = vmatprep.subr.mxu0 %v847
        %1963 = vmatpush1.msra.mxu0 %v846
        %1964 = vmatprep.subr.mxu0 0.0
        %1965 = vmatpush1.msra.mxu0 0.0
        %1966 = vmatprep.subr.mxu0 0.0
        %1967 = vmatpush1.msra.mxu0 0.0
        %1968 = vmatprep.subr.mxu0 0.0
        %1969 = vmatpush1.msra.mxu0 0.0
        %1970 = vmatprep.subr.mxu0 0.0
        %1971 = vmatpush1.msra.mxu0 0.0
        %1972 = vmatprep.subr.mxu0 0.0
        %1973 = vmatpush1.msra.mxu0 0.0
        %1974 = vmatprep.subr.mxu0 0.0
        %1975 = vmatpush1.msra.mxu0 0.0
        %1976 = vmatprep.subr.mxu0 0.0
        %1977 = vmatpush1.msra.mxu0 0.0
        %1978 = vmatprep.subr.mxu0 0.0
        %1979 = vmatpush1.msra.mxu0 0.0
        %1980 = vmatprep.subr.mxu0 0.0
        %1981 = vmatpush1.msra.mxu0 0.0
        %1982 = vmatprep.subr.mxu0 0.0
        %1983 = vmatpush1.msra.mxu0 0.0
        %1984 = vmatprep.subr.mxu0 0.0
        %1985 = vmatpush1.msra.mxu0 0.0
        %1986 = vmatprep.subr.mxu0 0.0
        %1987 = vmatpush1.msra.mxu0 0.0
        %1988 = vmatprep.subr.mxu0 0.0
        %1989 = vmatpush1.msra.mxu0 0.0
        %1990 = vmatprep.subr.mxu0 0.0
        %1991 = vmatpush1.msra.mxu0 0.0
        %1992 = vmatprep.subr.mxu0 0.0
        %1993 = vmatpush1.msra.mxu0 0.0
        %1994 = vmatprep.subr.mxu0 0.0
        %1995 = vmatpush1.msra.mxu0 0.0
        %1996 = vmatprep.mubr.f32.mxu0 0.0
        %1997 = vmatmul.mubr.f32.gmra.mrb[0].mxu0 %v1922
        %v1998 = vpop.f32.mrb[0].mxu0
        %v1999 = vadd.f32 0.0, %v1998
        %v2000 = vpop.f32.mrb[0].mxu0
        %v2001 = vadd.f32 0.0, %v2000
        %2002 = vdwg.mxu0
        %2003 = vmatprep.subr.mxu0 %v789
        %2004 = vmatpush1.msra.mxu0 %v788
        %2005 = vmatprep.subr.mxu0 %v793
        %2006 = vmatpush1.msra.mxu0 %v792
        %2007 = vmatprep.subr.mxu0 %v797
        %2008 = vmatpush1.msra.mxu0 %v796
        %2009 = vmatprep.subr.mxu0 %v801
        %2010 = vmatpush1.msra.mxu0 %v800
        %2011 = vmatprep.subr.mxu0 %v805
        %2012 = vmatpush1.msra.mxu0 %v804
        %2013 = vmatprep.subr.mxu0 %v809
        %2014 = vmatpush1.msra.mxu0 %v808
        %2015 = vmatprep.subr.mxu0 %v813
        %2016 = vmatpush1.msra.mxu0 %v812
        %2017 = vmatprep.subr.mxu0 %v817
        %2018 = vmatpush1.msra.mxu0 %v816
        %2019 = vmatprep.subr.mxu0 %v821
        %2020 = vmatpush1.msra.mxu0 %v820
        %2021 = vmatprep.subr.mxu0 %v825
        %2022 = vmatpush1.msra.mxu0 %v824
        %2023 = vmatprep.subr.mxu0 %v829
        %2024 = vmatpush1.msra.mxu0 %v828
        %2025 = vmatprep.subr.mxu0 %v833
        %2026 = vmatpush1.msra.mxu0 %v832
        %2027 = vmatprep.subr.mxu0 %v837
        %2028 = vmatpush1.msra.mxu0 %v836
        %2029 = vmatprep.subr.mxu0 %v841
        %2030 = vmatpush1.msra.mxu0 %v840
        %2031 = vmatprep.subr.mxu0 %v845
        %2032 = vmatpush1.msra.mxu0 %v844
        %2033 = vmatprep.subr.mxu0 %v849
        %2034 = vmatpush1.msra.mxu0 %v848
        %2035 = vmatprep.subr.mxu0 0.0
        %2036 = vmatpush1.msra.mxu0 0.0
        %2037 = vmatprep.subr.mxu0 0.0
        %2038 = vmatpush1.msra.mxu0 0.0
        %2039 = vmatprep.subr.mxu0 0.0
        %2040 = vmatpush1.msra.mxu0 0.0
        %2041 = vmatprep.subr.mxu0 0.0
        %2042 = vmatpush1.msra.mxu0 0.0
        %2043 = vmatprep.subr.mxu0 0.0
        %2044 = vmatpush1.msra.mxu0 0.0
        %2045 = vmatprep.subr.mxu0 0.0
        %2046 = vmatpush1.msra.mxu0 0.0
        %2047 = vmatprep.subr.mxu0 0.0
        %2048 = vmatpush1.msra.mxu0 0.0
        %2049 = vmatprep.subr.mxu0 0.0
        %2050 = vmatpush1.msra.mxu0 0.0
        %2051 = vmatprep.subr.mxu0 0.0
        %2052 = vmatpush1.msra.mxu0 0.0
        %2053 = vmatprep.subr.mxu0 0.0
        %2054 = vmatpush1.msra.mxu0 0.0
        %2055 = vmatprep.subr.mxu0 0.0
        %2056 = vmatpush1.msra.mxu0 0.0
        %2057 = vmatprep.subr.mxu0 0.0
        %2058 = vmatpush1.msra.mxu0 0.0
        %2059 = vmatprep.subr.mxu0 0.0
        %2060 = vmatpush1.msra.mxu0 0.0
        %2061 = vmatprep.subr.mxu0 0.0
        %2062 = vmatpush1.msra.mxu0 0.0
        %2063 = vmatprep.subr.mxu0 0.0
        %2064 = vmatpush1.msra.mxu0 0.0
        %2065 = vmatprep.subr.mxu0 0.0
        %2066 = vmatpush1.msra.mxu0 0.0
        %2067 = vmatprep.mubr.f32.mxu0 0.0
        %2068 = vmatmul.mubr.f32.gmra.mrb[0].mxu0 %v1922
        %v2069 = vpop.f32.mrb[0].mxu0
        %v2070 = vadd.f32 0.0, %v2069
        %v2071 = vpop.f32.mrb[0].mxu0
        %v2072 = vadd.f32 0.0, %v2071
        %2073 = vdwg.mxu0
        %v2074 = vadd.f32 %v1928, %v1999
        %v2075 = vadd.f32 %v1929, %v2001
        %v2076 = vadd.f32 %v1930, %v2070
        %v2077 = vadd.f32 %v1931, %v2072
        %v2078 = vxor.u32 %v2074, 2147483648
        %v2079 = vxor.u32 %v2075, 2147483648
        %v2080 = vxor.u32 %v2076, 2147483648
        %v2081 = vmul.f32 %v2078, 1.442695
        %v2082 = vpow.pop %v2081
        %v2083 = vmul.f32 %v2079, 1.442695
        %v2084 = vpow.pop %v2083
        %v2085 = vmul.f32 %v2080, 1.442695
        %v2086 = vpow.pop %v2085
        %v2087 = vadd.f32 %v2082, 1.0
        %v2088 = vadd.f32 %v2084, 1.0
        %v2089 = vadd.f32 %v2086, 1.0
        %v2090 = vrcp.pop %v2087
        %v2091 = vmul.f32 1.0, %v2090
        %v2092 = vrcp.pop %v2088
        %v2093 = vmul.f32 1.0, %v2092
        %v2094 = vrcp.pop %v2089
        %v2095 = vmul.f32 1.0, %v2094
        %v2096 = vtanh.pop %v2077
        %v2097 = vmul.f32 %v2093, %v1920
        %v2098 = vmul.f32 %v2091, %v2096
        %v2099 = vadd.f32 %v2097, %v2098
        %v2100 = vtanh.pop %v2099
        %v2101 = vmul.f32 %v2095, %v2100
        %s2102 = scalar_lea.vmem [#allocation7], 48
        %2103 = vst [vmem:[%s2102] sm:$0xff] %v2101
        %s2104 = smul.u32 7, 4
        %s2105 = smul.addr %s2104, 8
        %s2106 = scalar_lea.vmem [#allocation6], %s2105
        %v2107 = vld [vmem:[%s2106] sm:$0xff]
        %v2108 = vld [vmem:[%s2106 + $0x8] sm:$0xff]
        %v2109 = vld [vmem:[%s2106 + $0x10] sm:$0xff]
        %v2110 = vld [vmem:[%s2106 + $0x18] sm:$0xff]
        %2111 = vmatprep.subr.mxu0 %v787
        %2112 = vmatpush1.msra.mxu0 %v786
        %2113 = vmatprep.subr.mxu0 %v791
        %2114 = vmatpush1.msra.mxu0 %v790
        %2115 = vmatprep.subr.mxu0 %v795
        %2116 = vmatpush1.msra.mxu0 %v794
        %2117 = vmatprep.subr.mxu0 %v799
        %2118 = vmatpush1.msra.mxu0 %v798
        %2119 = vmatprep.subr.mxu0 %v803
        %2120 = vmatpush1.msra.mxu0 %v802
        %2121 = vmatprep.subr.mxu0 %v807
        %2122 = vmatpush1.msra.mxu0 %v806
        %2123 = vmatprep.subr.mxu0 %v811
        %2124 = vmatpush1.msra.mxu0 %v810
        %2125 = vmatprep.subr.mxu0 %v815
        %2126 = vmatpush1.msra.mxu0 %v814
        %2127 = vmatprep.subr.mxu0 %v819
        %2128 = vmatpush1.msra.mxu0 %v818
        %2129 = vmatprep.subr.mxu0 %v823
        %2130 = vmatpush1.msra.mxu0 %v822
        %2131 = vmatprep.subr.mxu0 %v827
        %2132 = vmatpush1.msra.mxu0 %v826
        %2133 = vmatprep.subr.mxu0 %v831
        %2134 = vmatpush1.msra.mxu0 %v830
        %2135 = vmatprep.subr.mxu0 %v835
        %2136 = vmatpush1.msra.mxu0 %v834
        %2137 = vmatprep.subr.mxu0 %v839
        %2138 = vmatpush1.msra.mxu0 %v838
        %2139 = vmatprep.subr.mxu0 %v843
        %2140 = vmatpush1.msra.mxu0 %v842
        %2141 = vmatprep.subr.mxu0 %v847
        %2142 = vmatpush1.msra.mxu0 %v846
        %2143 = vmatprep.subr.mxu0 0.0
        %2144 = vmatpush1.msra.mxu0 0.0
        %2145 = vmatprep.subr.mxu0 0.0
        %2146 = vmatpush1.msra.mxu0 0.0
        %2147 = vmatprep.subr.mxu0 0.0
        %2148 = vmatpush1.msra.mxu0 0.0
        %2149 = vmatprep.subr.mxu0 0.0
        %2150 = vmatpush1.msra.mxu0 0.0
        %2151 = vmatprep.subr.mxu0 0.0
        %2152 = vmatpush1.msra.mxu0 0.0
        %2153 = vmatprep.subr.mxu0 0.0
        %2154 = vmatpush1.msra.mxu0 0.0
        %2155 = vmatprep.subr.mxu0 0.0
        %2156 = vmatpush1.msra.mxu0 0.0
        %2157 = vmatprep.subr.mxu0 0.0
        %2158 = vmatpush1.msra.mxu0 0.0
        %2159 = vmatprep.subr.mxu0 0.0
        %2160 = vmatpush1.msra.mxu0 0.0
        %2161 = vmatprep.subr.mxu0 0.0
        %2162 = vmatpush1.msra.mxu0 0.0
        %2163 = vmatprep.subr.mxu0 0.0
        %2164 = vmatpush1.msra.mxu0 0.0
        %2165 = vmatprep.subr.mxu0 0.0
        %2166 = vmatpush1.msra.mxu0 0.0
        %2167 = vmatprep.subr.mxu0 0.0
        %2168 = vmatpush1.msra.mxu0 0.0
        %2169 = vmatprep.subr.mxu0 0.0
        %2170 = vmatpush1.msra.mxu0 0.0
        %2171 = vmatprep.subr.mxu0 0.0
        %2172 = vmatpush1.msra.mxu0 0.0
        %2173 = vmatprep.subr.mxu0 0.0
        %2174 = vmatpush1.msra.mxu0 0.0
        %2175 = vmatprep.mubr.f32.mxu0 0.0
        %2176 = vmatmul.mubr.f32.gmra.mrb[0].mxu0 %v2101
        %v2177 = vpop.f32.mrb[0].mxu0
        %v2178 = vadd.f32 0.0, %v2177
        %v2179 = vpop.f32.mrb[0].mxu0
        %v2180 = vadd.f32 0.0, %v2179
        %2181 = vdwg.mxu0
        %2182 = vmatprep.subr.mxu0 %v789
        %2183 = vmatpush1.msra.mxu0 %v788
        %2184 = vmatprep.subr.mxu0 %v793
        %2185 = vmatpush1.msra.mxu0 %v792
        %2186 = vmatprep.subr.mxu0 %v797
        %2187 = vmatpush1.msra.mxu0 %v796
        %2188 = vmatprep.subr.mxu0 %v801
        %2189 = vmatpush1.msra.mxu0 %v800
        %2190 = vmatprep.subr.mxu0 %v805
        %2191 = vmatpush1.msra.mxu0 %v804
        %2192 = vmatprep.subr.mxu0 %v809
        %2193 = vmatpush1.msra.mxu0 %v808
        %2194 = vmatprep.subr.mxu0 %v813
        %2195 = vmatpush1.msra.mxu0 %v812
        %2196 = vmatprep.subr.mxu0 %v817
        %2197 = vmatpush1.msra.mxu0 %v816
        %2198 = vmatprep.subr.mxu0 %v821
        %2199 = vmatpush1.msra.mxu0 %v820
        %2200 = vmatprep.subr.mxu0 %v825
        %2201 = vmatpush1.msra.mxu0 %v824
        %2202 = vmatprep.subr.mxu0 %v829
        %2203 = vmatpush1.msra.mxu0 %v828
        %2204 = vmatprep.subr.mxu0 %v833
        %2205 = vmatpush1.msra.mxu0 %v832
        %2206 = vmatprep.subr.mxu0 %v837
        %2207 = vmatpush1.msra.mxu0 %v836
        %2208 = vmatprep.subr.mxu0 %v841
        %2209 = vmatpush1.msra.mxu0 %v840
        %2210 = vmatprep.subr.mxu0 %v845
        %2211 = vmatpush1.msra.mxu0 %v844
        %2212 = vmatprep.subr.mxu0 %v849
        %2213 = vmatpush1.msra.mxu0 %v848
        %2214 = vmatprep.subr.mxu0 0.0
        %2215 = vmatpush1.msra.mxu0 0.0
        %2216 = vmatprep.subr.mxu0 0.0
        %2217 = vmatpush1.msra.mxu0 0.0
        %2218 = vmatprep.subr.mxu0 0.0
        %2219 = vmatpush1.msra.mxu0 0.0
        %2220 = vmatprep.subr.mxu0 0.0
        %2221 = vmatpush1.msra.mxu0 0.0
        %2222 = vmatprep.subr.mxu0 0.0
        %2223 = vmatpush1.msra.mxu0 0.0
        %2224 = vmatprep.subr.mxu0 0.0
        %2225 = vmatpush1.msra.mxu0 0.0
        %2226 = vmatprep.subr.mxu0 0.0
        %2227 = vmatpush1.msra.mxu0 0.0
        %2228 = vmatprep.subr.mxu0 0.0
        %2229 = vmatpush1.msra.mxu0 0.0
        %2230 = vmatprep.subr.mxu0 0.0
        %2231 = vmatpush1.msra.mxu0 0.0
        %2232 = vmatprep.subr.mxu0 0.0
        %2233 = vmatpush1.msra.mxu0 0.0
        %2234 = vmatprep.subr.mxu0 0.0
        %2235 = vmatpush1.msra.mxu0 0.0
        %2236 = vmatprep.subr.mxu0 0.0
        %2237 = vmatpush1.msra.mxu0 0.0
        %2238 = vmatprep.subr.mxu0 0.0
        %2239 = vmatpush1.msra.mxu0 0.0
        %2240 = vmatprep.subr.mxu0 0.0
        %2241 = vmatpush1.msra.mxu0 0.0
        %2242 = vmatprep.subr.mxu0 0.0
        %2243 = vmatpush1.msra.mxu0 0.0
        %2244 = vmatprep.subr.mxu0 0.0
        %2245 = vmatpush1.msra.mxu0 0.0
        %2246 = vmatprep.mubr.f32.mxu0 0.0
        %2247 = vmatmul.mubr.f32.gmra.mrb[0].mxu0 %v2101
        %v2248 = vpop.f32.mrb[0].mxu0
        %v2249 = vadd.f32 0.0, %v2248
        %v2250 = vpop.f32.mrb[0].mxu0
        %v2251 = vadd.f32 0.0, %v2250
        %2252 = vdwg.mxu0
        %v2253 = vadd.f32 %v2107, %v2178
        %v2254 = vadd.f32 %v2108, %v2180
        %v2255 = vadd.f32 %v2109, %v2249
        %v2256 = vadd.f32 %v2110, %v2251
        %v2257 = vxor.u32 %v2253, 2147483648
        %v2258 = vxor.u32 %v2254, 2147483648
        %v2259 = vxor.u32 %v2255, 2147483648
        %v2260 = vmul.f32 %v2257, 1.442695
        %v2261 = vpow.pop %v2260
        %v2262 = vmul.f32 %v2258, 1.442695
        %v2263 = vpow.pop %v2262
        %v2264 = vmul.f32 %v2259, 1.442695
        %v2265 = vpow.pop %v2264
        %v2266 = vadd.f32 %v2261, 1.0
        %v2267 = vadd.f32 %v2263, 1.0
        %v2268 = vadd.f32 %v2265, 1.0
        %v2269 = vrcp.pop %v2266
        %v2270 = vmul.f32 1.0, %v2269
        %v2271 = vrcp.pop %v2267
        %v2272 = vmul.f32 1.0, %v2271
        %v2273 = vrcp.pop %v2268
        %v2274 = vmul.f32 1.0, %v2273
        %v2275 = vtanh.pop %v2256
        %v2276 = vmul.f32 %v2272, %v2099
        %v2277 = vmul.f32 %v2270, %v2275
        %v2278 = vadd.f32 %v2276, %v2277
        %v2279 = vtanh.pop %v2278
        %v2280 = vmul.f32 %v2274, %v2279
        %s2281 = scalar_lea.vmem [#allocation7], 56
        %2282 = vst [vmem:[%s2281] sm:$0xff] %v2280
        %2283 = vst [vmem:[#allocation2] sm:$0xff] %v2280
        %2284 = vst [vmem:[#allocation3] sm:$0xff] %v2278
        %v2285 = vld [vmem:[#allocation7] sm:$0xff]
        %v2286 = vld [vmem:[#allocation7 + $0x8] sm:$0xff]
        %v2287 = vld [vmem:[#allocation7 + $0x10] sm:$0xff]
        %v2288 = vld [vmem:[#allocation7 + $0x18] sm:$0xff]
        %v2289 = vld [vmem:[#allocation7 + $0x20] sm:$0xff]
        %v2290 = vld [vmem:[#allocation7 + $0x28] sm:$0xff]
        %v2291 = vld [vmem:[#allocation7 + $0x30] sm:$0xff]
        %v2292 = vld [vmem:[#allocation7 + $0x38] sm:$0xff]
        %v2293 = vld [vmem:[#allocation14] sm:$0xff]
        %v2294 = vld [vmem:[#allocation14 + $0x8] sm:$0xff]
        %v2295 = vld [vmem:[#allocation14 + $0x10] sm:$0xff]
        %v2296 = vld [vmem:[#allocation14 + $0x18] sm:$0xff]
        %v2297 = vld [vmem:[#allocation14 + $0x20] sm:$0xff]
        %v2298 = vld [vmem:[#allocation14 + $0x28] sm:$0xff]
        %v2299 = vld [vmem:[#allocation14 + $0x30] sm:$0xff]
        %v2300 = vld [vmem:[#allocation14 + $0x38] sm:$0xff]
        %v2301 = vld [vmem:[#allocation14 + $0x40] sm:$0xff]
        %v2302 = vld [vmem:[#allocation14 + $0x48] sm:$0xff]
        %v2303 = vld [vmem:[#allocation14 + $0x50] sm:$0xff]
        %v2304 = vld [vmem:[#allocation14 + $0x58] sm:$0xff]
        %v2305 = vld [vmem:[#allocation14 + $0x60] sm:$0xff]
        %v2306 = vld [vmem:[#allocation14 + $0x68] sm:$0xff]
        %v2307 = vld [vmem:[#allocation14 + $0x70] sm:$0xff]
        %v2308 = vld [vmem:[#allocation14 + $0x78] sm:$0xff]
        %v2309 = vld [vmem:[#allocation14 + $0x80] sm:$0xff]
        %v2310 = vld [vmem:[#allocation14 + $0x88] sm:$0xff]
        %v2311 = vld [vmem:[#allocation14 + $0x90] sm:$0xff]
        %v2312 = vld [vmem:[#allocation14 + $0x98] sm:$0xff]
        %v2313 = vld [vmem:[#allocation14 + $0xa0] sm:$0xff]
        %v2314 = vld [vmem:[#allocation14 + $0xa8] sm:$0xff]
        %v2315 = vld [vmem:[#allocation14 + $0xb0] sm:$0xff]
        %v2316 = vld [vmem:[#allocation14 + $0xb8] sm:$0xff]
        %v2317 = vld [vmem:[#allocation14 + $0xc0] sm:$0xff]
        %v2318 = vld [vmem:[#allocation14 + $0xc8] sm:$0xff]
        %v2319 = vld [vmem:[#allocation14 + $0xd0] sm:$0xff]
        %v2320 = vld [vmem:[#allocation14 + $0xd8] sm:$0xff]
        %v2321 = vld [vmem:[#allocation14 + $0xe0] sm:$0xff]
        %v2322 = vld [vmem:[#allocation14 + $0xe8] sm:$0xff]
        %v2323 = vld [vmem:[#allocation14 + $0xf0] sm:$0xff]
        %v2324 = vld [vmem:[#allocation14 + $0xf8] sm:$0xff]
        %v2325 = vld [vmem:[#allocation14 + $0x100] sm:$0xff]
        %v2326 = vld [vmem:[#allocation14 + $0x108] sm:$0xff]
        %v2327 = vld [vmem:[#allocation14 + $0x110] sm:$0xff]
        %v2328 = vld [vmem:[#allocation14 + $0x118] sm:$0xff]
        %v2329 = vld [vmem:[#allocation14 + $0x120] sm:$0xff]
        %v2330 = vld [vmem:[#allocation14 + $0x128] sm:$0xff]
        %v2331 = vld [vmem:[#allocation14 + $0x130] sm:$0xff]
        %v2332 = vld [vmem:[#allocation14 + $0x138] sm:$0xff]
        %v2333 = vld [vmem:[#allocation14 + $0x140] sm:$0xff]
        %v2334 = vld [vmem:[#allocation14 + $0x148] sm:$0xff]
        %v2335 = vld [vmem:[#allocation14 + $0x150] sm:$0xff]
        %v2336 = vld [vmem:[#allocation14 + $0x158] sm:$0xff]
        %v2337 = vld [vmem:[#allocation14 + $0x160] sm:$0xff]
        %v2338 = vld [vmem:[#allocation14 + $0x168] sm:$0xff]
        %v2339 = vld [vmem:[#allocation14 + $0x170] sm:$0xff]
        %v2340 = vld [vmem:[#allocation14 + $0x178] sm:$0xff]
        %v2341 = vld [vmem:[#allocation14 + $0x180] sm:$0xff]
        %v2342 = vld [vmem:[#allocation14 + $0x188] sm:$0xff]
        %v2343 = vld [vmem:[#allocation14 + $0x190] sm:$0xff]
        %v2344 = vld [vmem:[#allocation14 + $0x198] sm:$0xff]
        %v2345 = vld [vmem:[#allocation14 + $0x1a0] sm:$0xff]
        %v2346 = vld [vmem:[#allocation14 + $0x1a8] sm:$0xff]
        %v2347 = vld [vmem:[#allocation14 + $0x1b0] sm:$0xff]
        %v2348 = vld [vmem:[#allocation14 + $0x1b8] sm:$0xff]
        %v2349 = vld [vmem:[#allocation14 + $0x1c0] sm:$0xff]
        %v2350 = vld [vmem:[#allocation14 + $0x1c8] sm:$0xff]
        %v2351 = vld [vmem:[#allocation14 + $0x1d0] sm:$0xff]
        %v2352 = vld [vmem:[#allocation14 + $0x1d8] sm:$0xff]
        %v2353 = vld [vmem:[#allocation14 + $0x1e0] sm:$0xff]
        %v2354 = vld [vmem:[#allocation14 + $0x1e8] sm:$0xff]
        %v2355 = vld [vmem:[#allocation14 + $0x1f0] sm:$0xff]
        %v2356 = vld [vmem:[#allocation14 + $0x1f8] sm:$0xff]
        %v2357 = vld [vmem:[%s6] sm:$0xf]
        %v2359 = vlaneseq
        %v2360 = vshrl.u32 %v2359, 7
        %v2361 = vsub.s32 0, %v2360
        %v2362 = vrot.slane %v2357, %v2361
        %v2363 = vlaneseq
        %v2364 = vshrl.u32 %v2363, 7
        %v2365 = vsub.s32 1, %v2364
        %v2366 = vrot.slane %v2357, %v2365
        %v2367 = vlaneseq
        %v2368 = vshrl.u32 %v2367, 7
        %v2369 = vsub.s32 2, %v2368
        %v2370 = vrot.slane %v2357, %v2369
        %v2371 = vlaneseq
        %v2372 = vshrl.u32 %v2371, 7
        %v2373 = vsub.s32 3, %v2372
        %v2374 = vrot.slane %v2357, %v2373
        %2379 = vmatprep.subr.mxu0 %v2294
        %2380 = vmatpush1.msra.mxu0 %v2293
        %2381 = vmatprep.subr.mxu0 %v2298
        %2382 = vmatpush1.msra.mxu0 %v2297
        %2383 = vmatprep.subr.mxu0 %v2302
        %2384 = vmatpush1.msra.mxu0 %v2301
        %2385 = vmatprep.subr.mxu0 %v2306
        %2386 = vmatpush1.msra.mxu0 %v2305
        %2387 = vmatprep.subr.mxu0 %v2310
        %2388 = vmatpush1.msra.mxu0 %v2309
        %2389 = vmatprep.subr.mxu0 %v2314
        %2390 = vmatpush1.msra.mxu0 %v2313
        %2391 = vmatprep.subr.mxu0 %v2318
        %2392 = vmatpush1.msra.mxu0 %v2317
        %2393 = vmatprep.subr.mxu0 %v2322
        %2394 = vmatpush1.msra.mxu0 %v2321
        %2395 = vmatprep.subr.mxu0 %v2326
        %2396 = vmatpush1.msra.mxu0 %v2325
        %2397 = vmatprep.subr.mxu0 %v2330
        %2398 = vmatpush1.msra.mxu0 %v2329
        %2399 = vmatprep.subr.mxu0 %v2334
        %2400 = vmatpush1.msra.mxu0 %v2333
        %2401 = vmatprep.subr.mxu0 %v2338
        %2402 = vmatpush1.msra.mxu0 %v2337
        %2403 = vmatprep.subr.mxu0 %v2342
        %2404 = vmatpush1.msra.mxu0 %v2341
        %2405 = vmatprep.subr.mxu0 %v2346
        %2406 = vmatpush1.msra.mxu0 %v2345
        %2407 = vmatprep.subr.mxu0 %v2350
        %2408 = vmatpush1.msra.mxu0 %v2349
        %2409 = vmatprep.subr.mxu0 %v2354
        %2410 = vmatpush1.msra.mxu0 %v2353
        %2411 = vmatprep.subr.mxu0 0.0
        %2412 = vmatpush1.msra.mxu0 0.0
        %2413 = vmatprep.subr.mxu0 0.0
        %2414 = vmatpush1.msra.mxu0 0.0
        %2415 = vmatprep.subr.mxu0 0.0
        %2416 = vmatpush1.msra.mxu0 0.0
        %2417 = vmatprep.subr.mxu0 0.0
        %2418 = vmatpush1.msra.mxu0 0.0
        %2419 = vmatprep.subr.mxu0 0.0
        %2420 = vmatpush1.msra.mxu0 0.0
        %2421 = vmatprep.subr.mxu0 0.0
        %2422 = vmatpush1.msra.mxu0 0.0
        %2423 = vmatprep.subr.mxu0 0.0
        %2424 = vmatpush1.msra.mxu0 0.0
        %2425 = vmatprep.subr.mxu0 0.0
        %2426 = vmatpush1.msra.mxu0 0.0
        %2427 = vmatprep.subr.mxu0 0.0
        %2428 = vmatpush1.msra.mxu0 0.0
        %2429 = vmatprep.subr.mxu0 0.0
        %2430 = vmatpush1.msra.mxu0 0.0
        %2431 = vmatprep.subr.mxu0 0.0
        %2432 = vmatpush1.msra.mxu0 0.0
        %2433 = vmatprep.subr.mxu0 0.0
        %2434 = vmatpush1.msra.mxu0 0.0
        %2435 = vmatprep.subr.mxu0 0.0
        %2436 = vmatpush1.msra.mxu0 0.0
        %2437 = vmatprep.subr.mxu0 0.0
        %2438 = vmatpush1.msra.mxu0 0.0
        %2439 = vmatprep.subr.mxu0 0.0
        %2440 = vmatpush1.msra.mxu0 0.0
        %2441 = vmatprep.subr.mxu0 0.0
        %2442 = vmatpush1.msra.mxu0 0.0
        %2443 = vmatprep.mubr.f32.mxu0 0.0
        %2444 = vmatmul.mubr.f32.gmra.mrb[0].mxu0 %v2285
        %v2445 = vpop.f32.mrb[0].mxu0
        %v2446 = vadd.f32 %v2362, %v2445
        %v2447 = vpop.f32.mrb[0].mxu0
        %v2448 = vadd.f32 %v2366, %v2447
        %2449 = vmatprep.mubr.f32.mxu0 0.0
        %2450 = vmatmul.mubr.f32.gmra.mrb[0].mxu0 %v2286
        %v2451 = vpop.f32.mrb[0].mxu0
        %v2452 = vadd.f32 %v2362, %v2451
        %v2453 = vpop.f32.mrb[0].mxu0
        %v2454 = vadd.f32 %v2366, %v2453
        %2455 = vmatprep.mubr.f32.mxu0 0.0
        %2456 = vmatmul.mubr.f32.gmra.mrb[0].mxu0 %v2287
        %v2457 = vpop.f32.mrb[0].mxu0
        %v2458 = vadd.f32 %v2362, %v2457
        %v2459 = vpop.f32.mrb[0].mxu0
        %v2460 = vadd.f32 %v2366, %v2459
        %2461 = vmatprep.mubr.f32.mxu0 0.0
        %2462 = vmatmul.mubr.f32.gmra.mrb[0].mxu0 %v2288
        %v2463 = vpop.f32.mrb[0].mxu0
        %v2464 = vadd.f32 %v2362, %v2463
        %v2465 = vpop.f32.mrb[0].mxu0
        %v2466 = vadd.f32 %v2366, %v2465
        %2467 = vmatprep.mubr.f32.mxu0 0.0
        %2468 = vmatmul.mubr.f32.gmra.mrb[0].mxu0 %v2289
        %v2469 = vpop.f32.mrb[0].mxu0
        %v2470 = vadd.f32 %v2362, %v2469
        %v2471 = vpop.f32.mrb[0].mxu0
        %v2472 = vadd.f32 %v2366, %v2471
        %2473 = vmatprep.mubr.f32.mxu0 0.0
        %2474 = vmatmul.mubr.f32.gmra.mrb[0].mxu0 %v2290
        %v2475 = vpop.f32.mrb[0].mxu0
        %v2476 = vadd.f32 %v2362, %v2475
        %v2477 = vpop.f32.mrb[0].mxu0
        %v2478 = vadd.f32 %v2366, %v2477
        %2479 = vmatprep.mubr.f32.mxu0 0.0
        %2480 = vmatmul.mubr.f32.gmra.mrb[0].mxu0 %v2291
        %v2481 = vpop.f32.mrb[0].mxu0
        %v2482 = vadd.f32 %v2362, %v2481
        %v2483 = vpop.f32.mrb[0].mxu0
        %v2484 = vadd.f32 %v2366, %v2483
        %2485 = vmatprep.mubr.f32.mxu0 0.0
        %2486 = vmatmul.mubr.f32.gmra.mrb[0].mxu0 %v2292
        %v2487 = vpop.f32.mrb[0].mxu0
        %v2488 = vadd.f32 %v2362, %v2487
        %v2489 = vpop.f32.mrb[0].mxu0
        %v2490 = vadd.f32 %v2366, %v2489
        %2491 = vdwg.mxu0
        %2492 = vmatprep.subr.mxu0 %v2296
        %2493 = vmatpush1.msra.mxu0 %v2295
        %2494 = vmatprep.subr.mxu0 %v2300
        %2495 = vmatpush1.msra.mxu0 %v2299
        %2496 = vmatprep.subr.mxu0 %v2304
        %2497 = vmatpush1.msra.mxu0 %v2303
        %2498 = vmatprep.subr.mxu0 %v2308
        %2499 = vmatpush1.msra.mxu0 %v2307
        %2500 = vmatprep.subr.mxu0 %v2312
        %2501 = vmatpush1.msra.mxu0 %v2311
        %2502 = vmatprep.subr.mxu0 %v2316
        %2503 = vmatpush1.msra.mxu0 %v2315
        %2504 = vmatprep.subr.mxu0 %v2320
        %2505 = vmatpush1.msra.mxu0 %v2319
        %2506 = vmatprep.subr.mxu0 %v2324
        %2507 = vmatpush1.msra.mxu0 %v2323
        %2508 = vmatprep.subr.mxu0 %v2328
        %2509 = vmatpush1.msra.mxu0 %v2327
        %2510 = vmatprep.subr.mxu0 %v2332
        %2511 = vmatpush1.msra.mxu0 %v2331
        %2512 = vmatprep.subr.mxu0 %v2336
        %2513 = vmatpush1.msra.mxu0 %v2335
        %2514 = vmatprep.subr.mxu0 %v2340
        %2515 = vmatpush1.msra.mxu0 %v2339
        %2516 = vmatprep.subr.mxu0 %v2344
        %2517 = vmatpush1.msra.mxu0 %v2343
        %2518 = vmatprep.subr.mxu0 %v2348
        %2519 = vmatpush1.msra.mxu0 %v2347
        %2520 = vmatprep.subr.mxu0 %v2352
        %2521 = vmatpush1.msra.mxu0 %v2351
        %2522 = vmatprep.subr.mxu0 %v2356
        %2523 = vmatpush1.msra.mxu0 %v2355
        %2524 = vmatprep.subr.mxu0 0.0
        %2525 = vmatpush1.msra.mxu0 0.0
        %2526 = vmatprep.subr.mxu0 0.0
        %2527 = vmatpush1.msra.mxu0 0.0
        %2528 = vmatprep.subr.mxu0 0.0
        %2529 = vmatpush1.msra.mxu0 0.0
        %2530 = vmatprep.subr.mxu0 0.0
        %2531 = vmatpush1.msra.mxu0 0.0
        %2532 = vmatprep.subr.mxu0 0.0
        %2533 = vmatpush1.msra.mxu0 0.0
        %2534 = vmatprep.subr.mxu0 0.0
        %2535 = vmatpush1.msra.mxu0 0.0
        %2536 = vmatprep.subr.mxu0 0.0
        %2537 = vmatpush1.msra.mxu0 0.0
        %2538 = vmatprep.subr.mxu0 0.0
        %2539 = vmatpush1.msra.mxu0 0.0
        %2540 = vmatprep.subr.mxu0 0.0
        %2541 = vmatpush1.msra.mxu0 0.0
        %2542 = vmatprep.subr.mxu0 0.0
        %2543 = vmatpush1.msra.mxu0 0.0
        %2544 = vmatprep.subr.mxu0 0.0
        %2545 = vmatpush1.msra.mxu0 0.0
        %2546 = vmatprep.subr.mxu0 0.0
        %2547 = vmatpush1.msra.mxu0 0.0
        %2548 = vmatprep.subr.mxu0 0.0
        %2549 = vmatpush1.msra.mxu0 0.0
        %2550 = vmatprep.subr.mxu0 0.0
        %2551 = vmatpush1.msra.mxu0 0.0
        %2552 = vmatprep.subr.mxu0 0.0
        %2553 = vmatpush1.msra.mxu0 0.0
        %2554 = vmatprep.subr.mxu0 0.0
        %2555 = vmatpush1.msra.mxu0 0.0
        %2556 = vmatprep.mubr.f32.mxu0 0.0
        %2557 = vmatmul.mubr.f32.gmra.mrb[0].mxu0 %v2285
        %v2558 = vpop.f32.mrb[0].mxu0
        %v2559 = vadd.f32 %v2370, %v2558
        %v2560 = vpop.f32.mrb[0].mxu0
        %v2561 = vadd.f32 %v2374, %v2560
        %2562 = vmatprep.mubr.f32.mxu0 0.0
        %2563 = vmatmul.mubr.f32.gmra.mrb[0].mxu0 %v2286
        %v2564 = vpop.f32.mrb[0].mxu0
        %v2565 = vadd.f32 %v2370, %v2564
        %v2566 = vpop.f32.mrb[0].mxu0
        %v2567 = vadd.f32 %v2374, %v2566
        %2568 = vmatprep.mubr.f32.mxu0 0.0
        %2569 = vmatmul.mubr.f32.gmra.mrb[0].mxu0 %v2287
        %v2570 = vpop.f32.mrb[0].mxu0
        %v2571 = vadd.f32 %v2370, %v2570
        %v2572 = vpop.f32.mrb[0].mxu0
        %v2573 = vadd.f32 %v2374, %v2572
        %2574 = vmatprep.mubr.f32.mxu0 0.0
        %2575 = vmatmul.mubr.f32.gmra.mrb[0].mxu0 %v2288
        %v2576 = vpop.f32.mrb[0].mxu0
        %v2577 = vadd.f32 %v2370, %v2576
        %v2578 = vpop.f32.mrb[0].mxu0
        %v2579 = vadd.f32 %v2374, %v2578
        %2580 = vmatprep.mubr.f32.mxu0 0.0
        %2581 = vmatmul.mubr.f32.gmra.mrb[0].mxu0 %v2289
        %v2582 = vpop.f32.mrb[0].mxu0
        %v2583 = vadd.f32 %v2370, %v2582
        %v2584 = vpop.f32.mrb[0].mxu0
        %v2585 = vadd.f32 %v2374, %v2584
        %2586 = vmatprep.mubr.f32.mxu0 0.0
        %2587 = vmatmul.mubr.f32.gmra.mrb[0].mxu0 %v2290
        %v2588 = vpop.f32.mrb[0].mxu0
        %v2589 = vadd.f32 %v2370, %v2588
        %v2590 = vpop.f32.mrb[0].mxu0
        %v2591 = vadd.f32 %v2374, %v2590
        %2592 = vmatprep.mubr.f32.mxu0 0.0
        %2593 = vmatmul.mubr.f32.gmra.mrb[0].mxu0 %v2291
        %v2594 = vpop.f32.mrb[0].mxu0
        %v2595 = vadd.f32 %v2370, %v2594
        %v2596 = vpop.f32.mrb[0].mxu0
        %v2597 = vadd.f32 %v2374, %v2596
        %2598 = vmatprep.mubr.f32.mxu0 0.0
        %2599 = vmatmul.mubr.f32.gmra.mrb[0].mxu0 %v2292
        %v2600 = vpop.f32.mrb[0].mxu0
        %v2601 = vadd.f32 %v2370, %v2600
        %v2602 = vpop.f32.mrb[0].mxu0
        %v2603 = vadd.f32 %v2374, %v2602
        %2604 = vdwg.mxu0
        %2605 = vst [vmem:[#allocation6] sm:$0xff] %v2446
        %2606 = vst [vmem:[#allocation6 + $0x8] sm:$0xff] %v2448
        %2607 = vst [vmem:[#allocation6 + $0x10] sm:$0xff] %v2559
        %2608 = vst [vmem:[#allocation6 + $0x18] sm:$0xff] %v2561
        %2609 = vst [vmem:[#allocation6 + $0x20] sm:$0xff] %v2452
        %2610 = vst [vmem:[#allocation6 + $0x28] sm:$0xff] %v2454
        %2611 = vst [vmem:[#allocation6 + $0x30] sm:$0xff] %v2565
        %2612 = vst [vmem:[#allocation6 + $0x38] sm:$0xff] %v2567
        %2613 = vst [vmem:[#allocation6 + $0x40] sm:$0xff] %v2458
        %2614 = vst [vmem:[#allocation6 + $0x48] sm:$0xff] %v2460
        %2615 = vst [vmem:[#allocation6 + $0x50] sm:$0xff] %v2571
        %2616 = vst [vmem:[#allocation6 + $0x58] sm:$0xff] %v2573
        %2617 = vst [vmem:[#allocation6 + $0x60] sm:$0xff] %v2464
        %2618 = vst [vmem:[#allocation6 + $0x68] sm:$0xff] %v2466
        %2619 = vst [vmem:[#allocation6 + $0x70] sm:$0xff] %v2577
        %2620 = vst [vmem:[#allocation6 + $0x78] sm:$0xff] %v2579
        %2621 = vst [vmem:[#allocation6 + $0x80] sm:$0xff] %v2470
        %2622 = vst [vmem:[#allocation6 + $0x88] sm:$0xff] %v2472
        %2623 = vst [vmem:[#allocation6 + $0x90] sm:$0xff] %v2583
        %2624 = vst [vmem:[#allocation6 + $0x98] sm:$0xff] %v2585
        %2625 = vst [vmem:[#allocation6 + $0xa0] sm:$0xff] %v2476
        %2626 = vst [vmem:[#allocation6 + $0xa8] sm:$0xff] %v2478
        %2627 = vst [vmem:[#allocation6 + $0xb0] sm:$0xff] %v2589
        %2628 = vst [vmem:[#allocation6 + $0xb8] sm:$0xff] %v2591
        %2629 = vst [vmem:[#allocation6 + $0xc0] sm:$0xff] %v2482
        %2630 = vst [vmem:[#allocation6 + $0xc8] sm:$0xff] %v2484
        %2631 = vst [vmem:[#allocation6 + $0xd0] sm:$0xff] %v2595
        %2632 = vst [vmem:[#allocation6 + $0xd8] sm:$0xff] %v2597
        %2633 = vst [vmem:[#allocation6 + $0xe0] sm:$0xff] %v2488
        %2634 = vst [vmem:[#allocation6 + $0xe8] sm:$0xff] %v2490
        %2635 = vst [vmem:[#allocation6 + $0xf0] sm:$0xff] %v2601
        %2636 = vst [vmem:[#allocation6 + $0xf8] sm:$0xff] %v2603
        %v2637 = vld [vmem:[#allocation16] sm:$0xff]
        %v2638 = vld [vmem:[#allocation16 + $0x8] sm:$0xff]
        %v2639 = vld [vmem:[#allocation16 + $0x10] sm:$0xff]
        %v2640 = vld [vmem:[#allocation16 + $0x18] sm:$0xff]
        %v2641 = vld [vmem:[#allocation16 + $0x20] sm:$0xff]
        %v2642 = vld [vmem:[#allocation16 + $0x28] sm:$0xff]
        %v2643 = vld [vmem:[#allocation16 + $0x30] sm:$0xff]
        %v2644 = vld [vmem:[#allocation16 + $0x38] sm:$0xff]
        %v2645 = vld [vmem:[#allocation16 + $0x40] sm:$0xff]
        %v2646 = vld [vmem:[#allocation16 + $0x48] sm:$0xff]
        %v2647 = vld [vmem:[#allocation16 + $0x50] sm:$0xff]
        %v2648 = vld [vmem:[#allocation16 + $0x58] sm:$0xff]
        %v2649 = vld [vmem:[#allocation16 + $0x60] sm:$0xff]
        %v2650 = vld [vmem:[#allocation16 + $0x68] sm:$0xff]
        %v2651 = vld [vmem:[#allocation16 + $0x70] sm:$0xff]
        %v2652 = vld [vmem:[#allocation16 + $0x78] sm:$0xff]
        %v2653 = vld [vmem:[#allocation16 + $0x80] sm:$0xff]
        %v2654 = vld [vmem:[#allocation16 + $0x88] sm:$0xff]
        %v2655 = vld [vmem:[#allocation16 + $0x90] sm:$0xff]
        %v2656 = vld [vmem:[#allocation16 + $0x98] sm:$0xff]
        %v2657 = vld [vmem:[#allocation16 + $0xa0] sm:$0xff]
        %v2658 = vld [vmem:[#allocation16 + $0xa8] sm:$0xff]
        %v2659 = vld [vmem:[#allocation16 + $0xb0] sm:$0xff]
        %v2660 = vld [vmem:[#allocation16 + $0xb8] sm:$0xff]
        %v2661 = vld [vmem:[#allocation16 + $0xc0] sm:$0xff]
        %v2662 = vld [vmem:[#allocation16 + $0xc8] sm:$0xff]
        %v2663 = vld [vmem:[#allocation16 + $0xd0] sm:$0xff]
        %v2664 = vld [vmem:[#allocation16 + $0xd8] sm:$0xff]
        %v2665 = vld [vmem:[#allocation16 + $0xe0] sm:$0xff]
        %v2666 = vld [vmem:[#allocation16 + $0xe8] sm:$0xff]
        %v2667 = vld [vmem:[#allocation16 + $0xf0] sm:$0xff]
        %v2668 = vld [vmem:[#allocation16 + $0xf8] sm:$0xff]
        %v2669 = vld [vmem:[#allocation16 + $0x100] sm:$0xff]
        %v2670 = vld [vmem:[#allocation16 + $0x108] sm:$0xff]
        %v2671 = vld [vmem:[#allocation16 + $0x110] sm:$0xff]
        %v2672 = vld [vmem:[#allocation16 + $0x118] sm:$0xff]
        %v2673 = vld [vmem:[#allocation16 + $0x120] sm:$0xff]
        %v2674 = vld [vmem:[#allocation16 + $0x128] sm:$0xff]
        %v2675 = vld [vmem:[#allocation16 + $0x130] sm:$0xff]
        %v2676 = vld [vmem:[#allocation16 + $0x138] sm:$0xff]
        %v2677 = vld [vmem:[#allocation16 + $0x140] sm:$0xff]
        %v2678 = vld [vmem:[#allocation16 + $0x148] sm:$0xff]
        %v2679 = vld [vmem:[#allocation16 + $0x150] sm:$0xff]
        %v2680 = vld [vmem:[#allocation16 + $0x158] sm:$0xff]
        %v2681 = vld [vmem:[#allocation16 + $0x160] sm:$0xff]
        %v2682 = vld [vmem:[#allocation16 + $0x168] sm:$0xff]
        %v2683 = vld [vmem:[#allocation16 + $0x170] sm:$0xff]
        %v2684 = vld [vmem:[#allocation16 + $0x178] sm:$0xff]
        %v2685 = vld [vmem:[#allocation16 + $0x180] sm:$0xff]
        %v2686 = vld [vmem:[#allocation16 + $0x188] sm:$0xff]
        %v2687 = vld [vmem:[#allocation16 + $0x190] sm:$0xff]
        %v2688 = vld [vmem:[#allocation16 + $0x198] sm:$0xff]
        %v2689 = vld [vmem:[#allocation16 + $0x1a0] sm:$0xff]
        %v2690 = vld [vmem:[#allocation16 + $0x1a8] sm:$0xff]
        %v2691 = vld [vmem:[#allocation16 + $0x1b0] sm:$0xff]
        %v2692 = vld [vmem:[#allocation16 + $0x1b8] sm:$0xff]
        %v2693 = vld [vmem:[#allocation16 + $0x1c0] sm:$0xff]
        %v2694 = vld [vmem:[#allocation16 + $0x1c8] sm:$0xff]
        %v2695 = vld [vmem:[#allocation16 + $0x1d0] sm:$0xff]
        %v2696 = vld [vmem:[#allocation16 + $0x1d8] sm:$0xff]
        %v2697 = vld [vmem:[#allocation16 + $0x1e0] sm:$0xff]
        %v2698 = vld [vmem:[#allocation16 + $0x1e8] sm:$0xff]
        %v2699 = vld [vmem:[#allocation16 + $0x1f0] sm:$0xff]
        %v2700 = vld [vmem:[#allocation16 + $0x1f8] sm:$0xff]
        %v2701 = vld [vmem:[#allocation4] sm:$0xff]
        %v2702 = vld [vmem:[#allocation5] sm:$0xff]
        %v2703 = vld [vmem:[%s854] sm:$0xff]
        %v2704 = vld [vmem:[%s854 + $0x8] sm:$0xff]
        %v2705 = vld [vmem:[%s854 + $0x10] sm:$0xff]
        %v2706 = vld [vmem:[%s854 + $0x18] sm:$0xff]
        %2707 = vmatprep.subr.mxu0 %v2638
        %2708 = vmatpush1.msra.mxu0 %v2637
        %2709 = vmatprep.subr.mxu0 %v2642
        %2710 = vmatpush1.msra.mxu0 %v2641
        %2711 = vmatprep.subr.mxu0 %v2646
        %2712 = vmatpush1.msra.mxu0 %v2645
        %2713 = vmatprep.subr.mxu0 %v2650
        %2714 = vmatpush1.msra.mxu0 %v2649
        %2715 = vmatprep.subr.mxu0 %v2654
        %2716 = vmatpush1.msra.mxu0 %v2653
        %2717 = vmatprep.subr.mxu0 %v2658
        %2718 = vmatpush1.msra.mxu0 %v2657
        %2719 = vmatprep.subr.mxu0 %v2662
        %2720 = vmatpush1.msra.mxu0 %v2661
        %2721 = vmatprep.subr.mxu0 %v2666
        %2722 = vmatpush1.msra.mxu0 %v2665
        %2723 = vmatprep.subr.mxu0 %v2670
        %2724 = vmatpush1.msra.mxu0 %v2669
        %2725 = vmatprep.subr.mxu0 %v2674
        %2726 = vmatpush1.msra.mxu0 %v2673
        %2727 = vmatprep.subr.mxu0 %v2678
        %2728 = vmatpush1.msra.mxu0 %v2677
        %2729 = vmatprep.subr.mxu0 %v2682
        %2730 = vmatpush1.msra.mxu0 %v2681
        %2731 = vmatprep.subr.mxu0 %v2686
        %2732 = vmatpush1.msra.mxu0 %v2685
        %2733 = vmatprep.subr.mxu0 %v2690
        %2734 = vmatpush1.msra.mxu0 %v2689
        %2735 = vmatprep.subr.mxu0 %v2694
        %2736 = vmatpush1.msra.mxu0 %v2693
        %2737 = vmatprep.subr.mxu0 %v2698
        %2738 = vmatpush1.msra.mxu0 %v2697
        %2739 = vmatprep.subr.mxu0 0.0
        %2740 = vmatpush1.msra.mxu0 0.0
        %2741 = vmatprep.subr.mxu0 0.0
        %2742 = vmatpush1.msra.mxu0 0.0
        %2743 = vmatprep.subr.mxu0 0.0
        %2744 = vmatpush1.msra.mxu0 0.0
        %2745 = vmatprep.subr.mxu0 0.0
        %2746 = vmatpush1.msra.mxu0 0.0
        %2747 = vmatprep.subr.mxu0 0.0
        %2748 = vmatpush1.msra.mxu0 0.0
        %2749 = vmatprep.subr.mxu0 0.0
        %2750 = vmatpush1.msra.mxu0 0.0
        %2751 = vmatprep.subr.mxu0 0.0
        %2752 = vmatpush1.msra.mxu0 0.0
        %2753 = vmatprep.subr.mxu0 0.0
        %2754 = vmatpush1.msra.mxu0 0.0
        %2755 = vmatprep.subr.mxu0 0.0
        %2756 = vmatpush1.msra.mxu0 0.0
        %2757 = vmatprep.subr.mxu0 0.0
        %2758 = vmatpush1.msra.mxu0 0.0
        %2759 = vmatprep.subr.mxu0 0.0
        %2760 = vmatpush1.msra.mxu0 0.0
        %2761 = vmatprep.subr.mxu0 0.0
        %2762 = vmatpush1.msra.mxu0 0.0
        %2763 = vmatprep.subr.mxu0 0.0
        %2764 = vmatpush1.msra.mxu0 0.0
        %2765 = vmatprep.subr.mxu0 0.0
        %2766 = vmatpush1.msra.mxu0 0.0
        %2767 = vmatprep.subr.mxu0 0.0
        %2768 = vmatpush1.msra.mxu0 0.0
        %2769 = vmatprep.subr.mxu0 0.0
        %2770 = vmatpush1.msra.mxu0 0.0
        %2771 = vmatprep.mubr.f32.mxu0 0.0
        %2772 = vmatmul.mubr.f32.gmra.mrb[0].mxu0 %v2701
        %v2773 = vpop.f32.mrb[0].mxu0
        %v2774 = vadd.f32 0.0, %v2773
        %v2775 = vpop.f32.mrb[0].mxu0
        %v2776 = vadd.f32 0.0, %v2775
        %2777 = vdwg.mxu0
        %2778 = vmatprep.subr.mxu0 %v2640
        %2779 = vmatpush1.msra.mxu0 %v2639
        %2780 = vmatprep.subr.mxu0 %v2644
        %2781 = vmatpush1.msra.mxu0 %v2643
        %2782 = vmatprep.subr.mxu0 %v2648
        %2783 = vmatpush1.msra.mxu0 %v2647
        %2784 = vmatprep.subr.mxu0 %v2652
        %2785 = vmatpush1.msra.mxu0 %v2651
        %2786 = vmatprep.subr.mxu0 %v2656
        %2787 = vmatpush1.msra.mxu0 %v2655
        %2788 = vmatprep.subr.mxu0 %v2660
        %2789 = vmatpush1.msra.mxu0 %v2659
        %2790 = vmatprep.subr.mxu0 %v2664
        %2791 = vmatpush1.msra.mxu0 %v2663
        %2792 = vmatprep.subr.mxu0 %v2668
        %2793 = vmatpush1.msra.mxu0 %v2667
        %2794 = vmatprep.subr.mxu0 %v2672
        %2795 = vmatpush1.msra.mxu0 %v2671
        %2796 = vmatprep.subr.mxu0 %v2676
        %2797 = vmatpush1.msra.mxu0 %v2675
        %2798 = vmatprep.subr.mxu0 %v2680
        %2799 = vmatpush1.msra.mxu0 %v2679
        %2800 = vmatprep.subr.mxu0 %v2684
        %2801 = vmatpush1.msra.mxu0 %v2683
        %2802 = vmatprep.subr.mxu0 %v2688
        %2803 = vmatpush1.msra.mxu0 %v2687
        %2804 = vmatprep.subr.mxu0 %v2692
        %2805 = vmatpush1.msra.mxu0 %v2691
        %2806 = vmatprep.subr.mxu0 %v2696
        %2807 = vmatpush1.msra.mxu0 %v2695
        %2808 = vmatprep.subr.mxu0 %v2700
        %2809 = vmatpush1.msra.mxu0 %v2699
        %2810 = vmatprep.subr.mxu0 0.0
        %2811 = vmatpush1.msra.mxu0 0.0
        %2812 = vmatprep.subr.mxu0 0.0
        %2813 = vmatpush1.msra.mxu0 0.0
        %2814 = vmatprep.subr.mxu0 0.0
        %2815 = vmatpush1.msra.mxu0 0.0
        %2816 = vmatprep.subr.mxu0 0.0
        %2817 = vmatpush1.msra.mxu0 0.0
        %2818 = vmatprep.subr.mxu0 0.0
        %2819 = vmatpush1.msra.mxu0 0.0
        %2820 = vmatprep.subr.mxu0 0.0
        %2821 = vmatpush1.msra.mxu0 0.0
        %2822 = vmatprep.subr.mxu0 0.0
        %2823 = vmatpush1.msra.mxu0 0.0
        %2824 = vmatprep.subr.mxu0 0.0
        %2825 = vmatpush1.msra.mxu0 0.0
        %2826 = vmatprep.subr.mxu0 0.0
        %2827 = vmatpush1.msra.mxu0 0.0
        %2828 = vmatprep.subr.mxu0 0.0
        %2829 = vmatpush1.msra.mxu0 0.0
        %2830 = vmatprep.subr.mxu0 0.0
        %2831 = vmatpush1.msra.mxu0 0.0
        %2832 = vmatprep.subr.mxu0 0.0
        %2833 = vmatpush1.msra.mxu0 0.0
        %2834 = vmatprep.subr.mxu0 0.0
        %2835 = vmatpush1.msra.mxu0 0.0
        %2836 = vmatprep.subr.mxu0 0.0
        %2837 = vmatpush1.msra.mxu0 0.0
        %2838 = vmatprep.subr.mxu0 0.0
        %2839 = vmatpush1.msra.mxu0 0.0
        %2840 = vmatprep.subr.mxu0 0.0
        %2841 = vmatpush1.msra.mxu0 0.0
        %2842 = vmatprep.mubr.f32.mxu0 0.0
        %2843 = vmatmul.mubr.f32.gmra.mrb[0].mxu0 %v2701
        %v2844 = vpop.f32.mrb[0].mxu0
        %v2845 = vadd.f32 0.0, %v2844
        %v2846 = vpop.f32.mrb[0].mxu0
        %v2847 = vadd.f32 0.0, %v2846
        %2848 = vdwg.mxu0
        %v2849 = vadd.f32 %v2703, %v2774
        %v2850 = vadd.f32 %v2704, %v2776
        %v2851 = vadd.f32 %v2705, %v2845
        %v2852 = vadd.f32 %v2706, %v2847
        %v2853 = vxor.u32 %v2849, 2147483648
        %v2854 = vxor.u32 %v2850, 2147483648
        %v2855 = vxor.u32 %v2851, 2147483648
        %v2856 = vmul.f32 %v2853, 1.442695
        %v2857 = vpow.pop %v2856
        %v2858 = vmul.f32 %v2854, 1.442695
        %v2859 = vpow.pop %v2858
        %v2860 = vmul.f32 %v2855, 1.442695
        %v2861 = vpow.pop %v2860
        %v2862 = vadd.f32 %v2857, 1.0
        %v2863 = vadd.f32 %v2859, 1.0
        %v2864 = vadd.f32 %v2861, 1.0
        %v2865 = vrcp.pop %v2862
        %v2866 = vmul.f32 1.0, %v2865
        %v2867 = vrcp.pop %v2863
        %v2868 = vmul.f32 1.0, %v2867
        %v2869 = vrcp.pop %v2864
        %v2870 = vmul.f32 1.0, %v2869
        %v2871 = vtanh.pop %v2852
        %v2872 = vmul.f32 %v2868, %v2702
        %v2873 = vmul.f32 %v2866, %v2871
        %v2874 = vadd.f32 %v2872, %v2873
        %v2875 = vtanh.pop %v2874
        %v2876 = vmul.f32 %v2870, %v2875
        %2877 = vst [vmem:[#allocation7] sm:$0xff] %v2876
        %v2878 = vld [vmem:[%s1032] sm:$0xff]
        %v2879 = vld [vmem:[%s1032 + $0x8] sm:$0xff]
        %v2880 = vld [vmem:[%s1032 + $0x10] sm:$0xff]
        %v2881 = vld [vmem:[%s1032 + $0x18] sm:$0xff]
        %2882 = vmatprep.subr.mxu0 %v2638
        %2883 = vmatpush1.msra.mxu0 %v2637
        %2884 = vmatprep.subr.mxu0 %v2642
        %2885 = vmatpush1.msra.mxu0 %v2641
        %2886 = vmatprep.subr.mxu0 %v2646
        %2887 = vmatpush1.msra.mxu0 %v2645
        %2888 = vmatprep.subr.mxu0 %v2650
        %2889 = vmatpush1.msra.mxu0 %v2649
        %2890 = vmatprep.subr.mxu0 %v2654
        %2891 = vmatpush1.msra.mxu0 %v2653
        %2892 = vmatprep.subr.mxu0 %v2658
        %2893 = vmatpush1.msra.mxu0 %v2657
        %2894 = vmatprep.subr.mxu0 %v2662
        %2895 = vmatpush1.msra.mxu0 %v2661
        %2896 = vmatprep.subr.mxu0 %v2666
        %2897 = vmatpush1.msra.mxu0 %v2665
        %2898 = vmatprep.subr.mxu0 %v2670
        %2899 = vmatpush1.msra.mxu0 %v2669
        %2900 = vmatprep.subr.mxu0 %v2674
        %2901 = vmatpush1.msra.mxu0 %v2673
        %2902 = vmatprep.subr.mxu0 %v2678
        %2903 = vmatpush1.msra.mxu0 %v2677
        %2904 = vmatprep.subr.mxu0 %v2682
        %2905 = vmatpush1.msra.mxu0 %v2681
        %2906 = vmatprep.subr.mxu0 %v2686
        %2907 = vmatpush1.msra.mxu0 %v2685
        %2908 = vmatprep.subr.mxu0 %v2690
        %2909 = vmatpush1.msra.mxu0 %v2689
        %2910 = vmatprep.subr.mxu0 %v2694
        %2911 = vmatpush1.msra.mxu0 %v2693
        %2912 = vmatprep.subr.mxu0 %v2698
        %2913 = vmatpush1.msra.mxu0 %v2697
        %2914 = vmatprep.subr.mxu0 0.0
        %2915 = vmatpush1.msra.mxu0 0.0
        %2916 = vmatprep.subr.mxu0 0.0
        %2917 = vmatpush1.msra.mxu0 0.0
        %2918 = vmatprep.subr.mxu0 0.0
        %2919 = vmatpush1.msra.mxu0 0.0
        %2920 = vmatprep.subr.mxu0 0.0
        %2921 = vmatpush1.msra.mxu0 0.0
        %2922 = vmatprep.subr.mxu0 0.0
        %2923 = vmatpush1.msra.mxu0 0.0
        %2924 = vmatprep.subr.mxu0 0.0
        %2925 = vmatpush1.msra.mxu0 0.0
        %2926 = vmatprep.subr.mxu0 0.0
        %2927 = vmatpush1.msra.mxu0 0.0
        %2928 = vmatprep.subr.mxu0 0.0
        %2929 = vmatpush1.msra.mxu0 0.0
        %2930 = vmatprep.subr.mxu0 0.0
        %2931 = vmatpush1.msra.mxu0 0.0
        %2932 = vmatprep.subr.mxu0 0.0
        %2933 = vmatpush1.msra.mxu0 0.0
        %2934 = vmatprep.subr.mxu0 0.0
        %2935 = vmatpush1.msra.mxu0 0.0
        %2936 = vmatprep.subr.mxu0 0.0
        %2937 = vmatpush1.msra.mxu0 0.0
        %2938 = vmatprep.subr.mxu0 0.0
        %2939 = vmatpush1.msra.mxu0 0.0
        %2940 = vmatprep.subr.mxu0 0.0
        %2941 = vmatpush1.msra.mxu0 0.0
        %2942 = vmatprep.subr.mxu0 0.0
        %2943 = vmatpush1.msra.mxu0 0.0
        %2944 = vmatprep.subr.mxu0 0.0
        %2945 = vmatpush1.msra.mxu0 0.0
        %2946 = vmatprep.mubr.f32.mxu0 0.0
        %2947 = vmatmul.mubr.f32.gmra.mrb[0].mxu0 %v2876
        %v2948 = vpop.f32.mrb[0].mxu0
        %v2949 = vadd.f32 0.0, %v2948
        %v2950 = vpop.f32.mrb[0].mxu0
        %v2951 = vadd.f32 0.0, %v2950
        %2952 = vdwg.mxu0
        %2953 = vmatprep.subr.mxu0 %v2640
        %2954 = vmatpush1.msra.mxu0 %v2639
        %2955 = vmatprep.subr.mxu0 %v2644
        %2956 = vmatpush1.msra.mxu0 %v2643
        %2957 = vmatprep.subr.mxu0 %v2648
        %2958 = vmatpush1.msra.mxu0 %v2647
        %2959 = vmatprep.subr.mxu0 %v2652
        %2960 = vmatpush1.msra.mxu0 %v2651
        %2961 = vmatprep.subr.mxu0 %v2656
        %2962 = vmatpush1.msra.mxu0 %v2655
        %2963 = vmatprep.subr.mxu0 %v2660
        %2964 = vmatpush1.msra.mxu0 %v2659
        %2965 = vmatprep.subr.mxu0 %v2664
        %2966 = vmatpush1.msra.mxu0 %v2663
        %2967 = vmatprep.subr.mxu0 %v2668
        %2968 = vmatpush1.msra.mxu0 %v2667
        %2969 = vmatprep.subr.mxu0 %v2672
        %2970 = vmatpush1.msra.mxu0 %v2671
        %2971 = vmatprep.subr.mxu0 %v2676
        %2972 = vmatpush1.msra.mxu0 %v2675
        %2973 = vmatprep.subr.mxu0 %v2680
        %2974 = vmatpush1.msra.mxu0 %v2679
        %2975 = vmatprep.subr.mxu0 %v2684
        %2976 = vmatpush1.msra.mxu0 %v2683
        %2977 = vmatprep.subr.mxu0 %v2688
        %2978 = vmatpush1.msra.mxu0 %v2687
        %2979 = vmatprep.subr.mxu0 %v2692
        %2980 = vmatpush1.msra.mxu0 %v2691
        %2981 = vmatprep.subr.mxu0 %v2696
        %2982 = vmatpush1.msra.mxu0 %v2695
        %2983 = vmatprep.subr.mxu0 %v2700
        %2984 = vmatpush1.msra.mxu0 %v2699
        %2985 = vmatprep.subr.mxu0 0.0
        %2986 = vmatpush1.msra.mxu0 0.0
        %2987 = vmatprep.subr.mxu0 0.0
        %2988 = vmatpush1.msra.mxu0 0.0
        %2989 = vmatprep.subr.mxu0 0.0
        %2990 = vmatpush1.msra.mxu0 0.0
        %2991 = vmatprep.subr.mxu0 0.0
        %2992 = vmatpush1.msra.mxu0 0.0
        %2993 = vmatprep.subr.mxu0 0.0
        %2994 = vmatpush1.msra.mxu0 0.0
        %2995 = vmatprep.subr.mxu0 0.0
        %2996 = vmatpush1.msra.mxu0 0.0
        %2997 = vmatprep.subr.mxu0 0.0
        %2998 = vmatpush1.msra.mxu0 0.0
        %2999 = vmatprep.subr.mxu0 0.0
        %3000 = vmatpush1.msra.mxu0 0.0
        %3001 = vmatprep.subr.mxu0 0.0
        %3002 = vmatpush1.msra.mxu0 0.0
        %3003 = vmatprep.subr.mxu0 0.0
        %3004 = vmatpush1.msra.mxu0 0.0
        %3005 = vmatprep.subr.mxu0 0.0
        %3006 = vmatpush1.msra.mxu0 0.0
        %3007 = vmatprep.subr.mxu0 0.0
        %3008 = vmatpush1.msra.mxu0 0.0
        %3009 = vmatprep.subr.mxu0 0.0
        %3010 = vmatpush1.msra.mxu0 0.0
        %3011 = vmatprep.subr.mxu0 0.0
        %3012 = vmatpush1.msra.mxu0 0.0
        %3013 = vmatprep.subr.mxu0 0.0
        %3014 = vmatpush1.msra.mxu0 0.0
        %3015 = vmatprep.subr.mxu0 0.0
        %3016 = vmatpush1.msra.mxu0 0.0
        %3017 = vmatprep.mubr.f32.mxu0 0.0
        %3018 = vmatmul.mubr.f32.gmra.mrb[0].mxu0 %v2876
        %v3019 = vpop.f32.mrb[0].mxu0
        %v3020 = vadd.f32 0.0, %v3019
        %v3021 = vpop.f32.mrb[0].mxu0
        %v3022 = vadd.f32 0.0, %v3021
        %3023 = vdwg.mxu0
        %v3024 = vadd.f32 %v2878, %v2949
        %v3025 = vadd.f32 %v2879, %v2951
        %v3026 = vadd.f32 %v2880, %v3020
        %v3027 = vadd.f32 %v2881, %v3022
        %v3028 = vxor.u32 %v3024, 2147483648
        %v3029 = vxor.u32 %v3025, 2147483648
        %v3030 = vxor.u32 %v3026, 2147483648
        %v3031 = vmul.f32 %v3028, 1.442695
        %v3032 = vpow.pop %v3031
        %v3033 = vmul.f32 %v3029, 1.442695
        %v3034 = vpow.pop %v3033
        %v3035 = vmul.f32 %v3030, 1.442695
        %v3036 = vpow.pop %v3035
        %v3037 = vadd.f32 %v3032, 1.0
        %v3038 = vadd.f32 %v3034, 1.0
        %v3039 = vadd.f32 %v3036, 1.0
        %v3040 = vrcp.pop %v3037
        %v3041 = vmul.f32 1.0, %v3040
        %v3042 = vrcp.pop %v3038
        %v3043 = vmul.f32 1.0, %v3042
        %v3044 = vrcp.pop %v3039
        %v3045 = vmul.f32 1.0, %v3044
        %v3046 = vtanh.pop %v3027
        %v3047 = vmul.f32 %v3043, %v2874
        %v3048 = vmul.f32 %v3041, %v3046
        %v3049 = vadd.f32 %v3047, %v3048
        %v3050 = vtanh.pop %v3049
        %v3051 = vmul.f32 %v3045, %v3050
        %3052 = vst [vmem:[%s1207] sm:$0xff] %v3051
        %v3053 = vld [vmem:[%s1211] sm:$0xff]
        %v3054 = vld [vmem:[%s1211 + $0x8] sm:$0xff]
        %v3055 = vld [vmem:[%s1211 + $0x10] sm:$0xff]
        %v3056 = vld [vmem:[%s1211 + $0x18] sm:$0xff]
        %3057 = vmatprep.subr.mxu0 %v2638
        %3058 = vmatpush1.msra.mxu0 %v2637
        %3059 = vmatprep.subr.mxu0 %v2642
        %3060 = vmatpush1.msra.mxu0 %v2641
        %3061 = vmatprep.subr.mxu0 %v2646
        %3062 = vmatpush1.msra.mxu0 %v2645
        %3063 = vmatprep.subr.mxu0 %v2650
        %3064 = vmatpush1.msra.mxu0 %v2649
        %3065 = vmatprep.subr.mxu0 %v2654
        %3066 = vmatpush1.msra.mxu0 %v2653
        %3067 = vmatprep.subr.mxu0 %v2658
        %3068 = vmatpush1.msra.mxu0 %v2657
        %3069 = vmatprep.subr.mxu0 %v2662
        %3070 = vmatpush1.msra.mxu0 %v2661
        %3071 = vmatprep.subr.mxu0 %v2666
        %3072 = vmatpush1.msra.mxu0 %v2665
        %3073 = vmatprep.subr.mxu0 %v2670
        %3074 = vmatpush1.msra.mxu0 %v2669
        %3075 = vmatprep.subr.mxu0 %v2674
        %3076 = vmatpush1.msra.mxu0 %v2673
        %3077 = vmatprep.subr.mxu0 %v2678
        %3078 = vmatpush1.msra.mxu0 %v2677
        %3079 = vmatprep.subr.mxu0 %v2682
        %3080 = vmatpush1.msra.mxu0 %v2681
        %3081 = vmatprep.subr.mxu0 %v2686
        %3082 = vmatpush1.msra.mxu0 %v2685
        %3083 = vmatprep.subr.mxu0 %v2690
        %3084 = vmatpush1.msra.mxu0 %v2689
        %3085 = vmatprep.subr.mxu0 %v2694
        %3086 = vmatpush1.msra.mxu0 %v2693
        %3087 = vmatprep.subr.mxu0 %v2698
        %3088 = vmatpush1.msra.mxu0 %v2697
        %3089 = vmatprep.subr.mxu0 0.0
        %3090 = vmatpush1.msra.mxu0 0.0
        %3091 = vmatprep.subr.mxu0 0.0
        %3092 = vmatpush1.msra.mxu0 0.0
        %3093 = vmatprep.subr.mxu0 0.0
        %3094 = vmatpush1.msra.mxu0 0.0
        %3095 = vmatprep.subr.mxu0 0.0
        %3096 = vmatpush1.msra.mxu0 0.0
        %3097 = vmatprep.subr.mxu0 0.0
        %3098 = vmatpush1.msra.mxu0 0.0
        %3099 = vmatprep.subr.mxu0 0.0
        %3100 = vmatpush1.msra.mxu0 0.0
        %3101 = vmatprep.subr.mxu0 0.0
        %3102 = vmatpush1.msra.mxu0 0.0
        %3103 = vmatprep.subr.mxu0 0.0
        %3104 = vmatpush1.msra.mxu0 0.0
        %3105 = vmatprep.subr.mxu0 0.0
        %3106 = vmatpush1.msra.mxu0 0.0
        %3107 = vmatprep.subr.mxu0 0.0
        %3108 = vmatpush1.msra.mxu0 0.0
        %3109 = vmatprep.subr.mxu0 0.0
        %3110 = vmatpush1.msra.mxu0 0.0
        %3111 = vmatprep.subr.mxu0 0.0
        %3112 = vmatpush1.msra.mxu0 0.0
        %3113 = vmatprep.subr.mxu0 0.0
        %3114 = vmatpush1.msra.mxu0 0.0
        %3115 = vmatprep.subr.mxu0 0.0
        %3116 = vmatpush1.msra.mxu0 0.0
        %3117 = vmatprep.subr.mxu0 0.0
        %3118 = vmatpush1.msra.mxu0 0.0
        %3119 = vmatprep.subr.mxu0 0.0
        %3120 = vmatpush1.msra.mxu0 0.0
        %3121 = vmatprep.mubr.f32.mxu0 0.0
        %3122 = vmatmul.mubr.f32.gmra.mrb[0].mxu0 %v3051
        %v3123 = vpop.f32.mrb[0].mxu0
        %v3124 = vadd.f32 0.0, %v3123
        %v3125 = vpop.f32.mrb[0].mxu0
        %v3126 = vadd.f32 0.0, %v3125
        %3127 = vdwg.mxu0
        %3128 = vmatprep.subr.mxu0 %v2640
        %3129 = vmatpush1.msra.mxu0 %v2639
        %3130 = vmatprep.subr.mxu0 %v2644
        %3131 = vmatpush1.msra.mxu0 %v2643
        %3132 = vmatprep.subr.mxu0 %v2648
        %3133 = vmatpush1.msra.mxu0 %v2647
        %3134 = vmatprep.subr.mxu0 %v2652
        %3135 = vmatpush1.msra.mxu0 %v2651
        %3136 = vmatprep.subr.mxu0 %v2656
        %3137 = vmatpush1.msra.mxu0 %v2655
        %3138 = vmatprep.subr.mxu0 %v2660
        %3139 = vmatpush1.msra.mxu0 %v2659
        %3140 = vmatprep.subr.mxu0 %v2664
        %3141 = vmatpush1.msra.mxu0 %v2663
        %3142 = vmatprep.subr.mxu0 %v2668
        %3143 = vmatpush1.msra.mxu0 %v2667
        %3144 = vmatprep.subr.mxu0 %v2672
        %3145 = vmatpush1.msra.mxu0 %v2671
        %3146 = vmatprep.subr.mxu0 %v2676
        %3147 = vmatpush1.msra.mxu0 %v2675
        %3148 = vmatprep.subr.mxu0 %v2680
        %3149 = vmatpush1.msra.mxu0 %v2679
        %3150 = vmatprep.subr.mxu0 %v2684
        %3151 = vmatpush1.msra.mxu0 %v2683
        %3152 = vmatprep.subr.mxu0 %v2688
        %3153 = vmatpush1.msra.mxu0 %v2687
        %3154 = vmatprep.subr.mxu0 %v2692
        %3155 = vmatpush1.msra.mxu0 %v2691
        %3156 = vmatprep.subr.mxu0 %v2696
        %3157 = vmatpush1.msra.mxu0 %v2695
        %3158 = vmatprep.subr.mxu0 %v2700
        %3159 = vmatpush1.msra.mxu0 %v2699
        %3160 = vmatprep.subr.mxu0 0.0
        %3161 = vmatpush1.msra.mxu0 0.0
        %3162 = vmatprep.subr.mxu0 0.0
        %3163 = vmatpush1.msra.mxu0 0.0
        %3164 = vmatprep.subr.mxu0 0.0
        %3165 = vmatpush1.msra.mxu0 0.0
        %3166 = vmatprep.subr.mxu0 0.0
        %3167 = vmatpush1.msra.mxu0 0.0
        %3168 = vmatprep.subr.mxu0 0.0
        %3169 = vmatpush1.msra.mxu0 0.0
        %3170 = vmatprep.subr.mxu0 0.0
        %3171 = vmatpush1.msra.mxu0 0.0
        %3172 = vmatprep.subr.mxu0 0.0
        %3173 = vmatpush1.msra.mxu0 0.0
        %3174 = vmatprep.subr.mxu0 0.0
        %3175 = vmatpush1.msra.mxu0 0.0
        %3176 = vmatprep.subr.mxu0 0.0
        %3177 = vmatpush1.msra.mxu0 0.0
        %3178 = vmatprep.subr.mxu0 0.0
        %3179 = vmatpush1.msra.mxu0 0.0
        %3180 = vmatprep.subr.mxu0 0.0
        %3181 = vmatpush1.msra.mxu0 0.0
        %3182 = vmatprep.subr.mxu0 0.0
        %3183 = vmatpush1.msra.mxu0 0.0
        %3184 = vmatprep.subr.mxu0 0.0
        %3185 = vmatpush1.msra.mxu0 0.0
        %3186 = vmatprep.subr.mxu0 0.0
        %3187 = vmatpush1.msra.mxu0 0.0
        %3188 = vmatprep.subr.mxu0 0.0
        %3189 = vmatpush1.msra.mxu0 0.0
        %3190 = vmatprep.subr.mxu0 0.0
        %3191 = vmatpush1.msra.mxu0 0.0
        %3192 = vmatprep.mubr.f32.mxu0 0.0
        %3193 = vmatmul.mubr.f32.gmra.mrb[0].mxu0 %v3051
        %v3194 = vpop.f32.mrb[0].mxu0
        %v3195 = vadd.f32 0.0, %v3194
        %v3196 = vpop.f32.mrb[0].mxu0
        %v3197 = vadd.f32 0.0, %v3196
        %3198 = vdwg.mxu0
        %v3199 = vadd.f32 %v3053, %v3124
        %v3200 = vadd.f32 %v3054, %v3126
        %v3201 = vadd.f32 %v3055, %v3195
        %v3202 = vadd.f32 %v3056, %v3197
        %v3203 = vxor.u32 %v3199, 2147483648
        %v3204 = vxor.u32 %v3200, 2147483648
        %v3205 = vxor.u32 %v3201, 2147483648
        %v3206 = vmul.f32 %v3203, 1.442695
        %v3207 = vpow.pop %v3206
        %v3208 = vmul.f32 %v3204, 1.442695
        %v3209 = vpow.pop %v3208
        %v3210 = vmul.f32 %v3205, 1.442695
        %v3211 = vpow.pop %v3210
        %v3212 = vadd.f32 %v3207, 1.0
        %v3213 = vadd.f32 %v3209, 1.0
        %v3214 = vadd.f32 %v3211, 1.0
        %v3215 = vrcp.pop %v3212
        %v3216 = vmul.f32 1.0, %v3215
        %v3217 = vrcp.pop %v3213
        %v3218 = vmul.f32 1.0, %v3217
        %v3219 = vrcp.pop %v3214
        %v3220 = vmul.f32 1.0, %v3219
        %v3221 = vtanh.pop %v3202
        %v3222 = vmul.f32 %v3218, %v3049
        %v3223 = vmul.f32 %v3216, %v3221
        %v3224 = vadd.f32 %v3222, %v3223
        %v3225 = vtanh.pop %v3224
        %v3226 = vmul.f32 %v3220, %v3225
        %3227 = vst [vmem:[%s1386] sm:$0xff] %v3226
        %v3228 = vld [vmem:[%s1390] sm:$0xff]
        %v3229 = vld [vmem:[%s1390 + $0x8] sm:$0xff]
        %v3230 = vld [vmem:[%s1390 + $0x10] sm:$0xff]
        %v3231 = vld [vmem:[%s1390 + $0x18] sm:$0xff]
        %3232 = vmatprep.subr.mxu0 %v2638
        %3233 = vmatpush1.msra.mxu0 %v2637
        %3234 = vmatprep.subr.mxu0 %v2642
        %3235 = vmatpush1.msra.mxu0 %v2641
        %3236 = vmatprep.subr.mxu0 %v2646
        %3237 = vmatpush1.msra.mxu0 %v2645
        %3238 = vmatprep.subr.mxu0 %v2650
        %3239 = vmatpush1.msra.mxu0 %v2649
        %3240 = vmatprep.subr.mxu0 %v2654
        %3241 = vmatpush1.msra.mxu0 %v2653
        %3242 = vmatprep.subr.mxu0 %v2658
        %3243 = vmatpush1.msra.mxu0 %v2657
        %3244 = vmatprep.subr.mxu0 %v2662
        %3245 = vmatpush1.msra.mxu0 %v2661
        %3246 = vmatprep.subr.mxu0 %v2666
        %3247 = vmatpush1.msra.mxu0 %v2665
        %3248 = vmatprep.subr.mxu0 %v2670
        %3249 = vmatpush1.msra.mxu0 %v2669
        %3250 = vmatprep.subr.mxu0 %v2674
        %3251 = vmatpush1.msra.mxu0 %v2673
        %3252 = vmatprep.subr.mxu0 %v2678
        %3253 = vmatpush1.msra.mxu0 %v2677
        %3254 = vmatprep.subr.mxu0 %v2682
        %3255 = vmatpush1.msra.mxu0 %v2681
        %3256 = vmatprep.subr.mxu0 %v2686
        %3257 = vmatpush1.msra.mxu0 %v2685
        %3258 = vmatprep.subr.mxu0 %v2690
        %3259 = vmatpush1.msra.mxu0 %v2689
        %3260 = vmatprep.subr.mxu0 %v2694
        %3261 = vmatpush1.msra.mxu0 %v2693
        %3262 = vmatprep.subr.mxu0 %v2698
        %3263 = vmatpush1.msra.mxu0 %v2697
        %3264 = vmatprep.subr.mxu0 0.0
        %3265 = vmatpush1.msra.mxu0 0.0
        %3266 = vmatprep.subr.mxu0 0.0
        %3267 = vmatpush1.msra.mxu0 0.0
        %3268 = vmatprep.subr.mxu0 0.0
        %3269 = vmatpush1.msra.mxu0 0.0
        %3270 = vmatprep.subr.mxu0 0.0
        %3271 = vmatpush1.msra.mxu0 0.0
        %3272 = vmatprep.subr.mxu0 0.0
        %3273 = vmatpush1.msra.mxu0 0.0
        %3274 = vmatprep.subr.mxu0 0.0
        %3275 = vmatpush1.msra.mxu0 0.0
        %3276 = vmatprep.subr.mxu0 0.0
        %3277 = vmatpush1.msra.mxu0 0.0
        %3278 = vmatprep.subr.mxu0 0.0
        %3279 = vmatpush1.msra.mxu0 0.0
        %3280 = vmatprep.subr.mxu0 0.0
        %3281 = vmatpush1.msra.mxu0 0.0
        %3282 = vmatprep.subr.mxu0 0.0
        %3283 = vmatpush1.msra.mxu0 0.0
        %3284 = vmatprep.subr.mxu0 0.0
        %3285 = vmatpush1.msra.mxu0 0.0
        %3286 = vmatprep.subr.mxu0 0.0
        %3287 = vmatpush1.msra.mxu0 0.0
        %3288 = vmatprep.subr.mxu0 0.0
        %3289 = vmatpush1.msra.mxu0 0.0
        %3290 = vmatprep.subr.mxu0 0.0
        %3291 = vmatpush1.msra.mxu0 0.0
        %3292 = vmatprep.subr.mxu0 0.0
        %3293 = vmatpush1.msra.mxu0 0.0
        %3294 = vmatprep.subr.mxu0 0.0
        %3295 = vmatpush1.msra.mxu0 0.0
        %3296 = vmatprep.mubr.f32.mxu0 0.0
        %3297 = vmatmul.mubr.f32.gmra.mrb[0].mxu0 %v3226
        %v3298 = vpop.f32.mrb[0].mxu0
        %v3299 = vadd.f32 0.0, %v3298
        %v3300 = vpop.f32.mrb[0].mxu0
        %v3301 = vadd.f32 0.0, %v3300
        %3302 = vdwg.mxu0
        %3303 = vmatprep.subr.mxu0 %v2640
        %3304 = vmatpush1.msra.mxu0 %v2639
        %3305 = vmatprep.subr.mxu0 %v2644
        %3306 = vmatpush1.msra.mxu0 %v2643
        %3307 = vmatprep.subr.mxu0 %v2648
        %3308 = vmatpush1.msra.mxu0 %v2647
        %3309 = vmatprep.subr.mxu0 %v2652
        %3310 = vmatpush1.msra.mxu0 %v2651
        %3311 = vmatprep.subr.mxu0 %v2656
        %3312 = vmatpush1.msra.mxu0 %v2655
        %3313 = vmatprep.subr.mxu0 %v2660
        %3314 = vmatpush1.msra.mxu0 %v2659
        %3315 = vmatprep.subr.mxu0 %v2664
        %3316 = vmatpush1.msra.mxu0 %v2663
        %3317 = vmatprep.subr.mxu0 %v2668
        %3318 = vmatpush1.msra.mxu0 %v2667
        %3319 = vmatprep.subr.mxu0 %v2672
        %3320 = vmatpush1.msra.mxu0 %v2671
        %3321 = vmatprep.subr.mxu0 %v2676
        %3322 = vmatpush1.msra.mxu0 %v2675
        %3323 = vmatprep.subr.mxu0 %v2680
        %3324 = vmatpush1.msra.mxu0 %v2679
        %3325 = vmatprep.subr.mxu0 %v2684
        %3326 = vmatpush1.msra.mxu0 %v2683
        %3327 = vmatprep.subr.mxu0 %v2688
        %3328 = vmatpush1.msra.mxu0 %v2687
        %3329 = vmatprep.subr.mxu0 %v2692
        %3330 = vmatpush1.msra.mxu0 %v2691
        %3331 = vmatprep.subr.mxu0 %v2696
        %3332 = vmatpush1.msra.mxu0 %v2695
        %3333 = vmatprep.subr.mxu0 %v2700
        %3334 = vmatpush1.msra.mxu0 %v2699
        %3335 = vmatprep.subr.mxu0 0.0
        %3336 = vmatpush1.msra.mxu0 0.0
        %3337 = vmatprep.subr.mxu0 0.0
        %3338 = vmatpush1.msra.mxu0 0.0
        %3339 = vmatprep.subr.mxu0 0.0
        %3340 = vmatpush1.msra.mxu0 0.0
        %3341 = vmatprep.subr.mxu0 0.0
        %3342 = vmatpush1.msra.mxu0 0.0
        %3343 = vmatprep.subr.mxu0 0.0
        %3344 = vmatpush1.msra.mxu0 0.0
        %3345 = vmatprep.subr.mxu0 0.0
        %3346 = vmatpush1.msra.mxu0 0.0
        %3347 = vmatprep.subr.mxu0 0.0
        %3348 = vmatpush1.msra.mxu0 0.0
        %3349 = vmatprep.subr.mxu0 0.0
        %3350 = vmatpush1.msra.mxu0 0.0
        %3351 = vmatprep.subr.mxu0 0.0
        %3352 = vmatpush1.msra.mxu0 0.0
        %3353 = vmatprep.subr.mxu0 0.0
        %3354 = vmatpush1.msra.mxu0 0.0
        %3355 = vmatprep.subr.mxu0 0.0
        %3356 = vmatpush1.msra.mxu0 0.0
        %3357 = vmatprep.subr.mxu0 0.0
        %3358 = vmatpush1.msra.mxu0 0.0
        %3359 = vmatprep.subr.mxu0 0.0
        %3360 = vmatpush1.msra.mxu0 0.0
        %3361 = vmatprep.subr.mxu0 0.0
        %3362 = vmatpush1.msra.mxu0 0.0
        %3363 = vmatprep.subr.mxu0 0.0
        %3364 = vmatpush1.msra.mxu0 0.0
        %3365 = vmatprep.subr.mxu0 0.0
        %3366 = vmatpush1.msra.mxu0 0.0
        %3367 = vmatprep.mubr.f32.mxu0 0.0
        %3368 = vmatmul.mubr.f32.gmra.mrb[0].mxu0 %v3226
        %v3369 = vpop.f32.mrb[0].mxu0
        %v3370 = vadd.f32 0.0, %v3369
        %v3371 = vpop.f32.mrb[0].mxu0
        %v3372 = vadd.f32 0.0, %v3371
        %3373 = vdwg.mxu0
        %v3374 = vadd.f32 %v3228, %v3299
        %v3375 = vadd.f32 %v3229, %v3301
        %v3376 = vadd.f32 %v3230, %v3370
        %v3377 = vadd.f32 %v3231, %v3372
        %v3378 = vxor.u32 %v3374, 2147483648
        %v3379 = vxor.u32 %v3375, 2147483648
        %v3380 = vxor.u32 %v3376, 2147483648
        %v3381 = vmul.f32 %v3378, 1.442695
        %v3382 = vpow.pop %v3381
        %v3383 = vmul.f32 %v3379, 1.442695
        %v3384 = vpow.pop %v3383
        %v3385 = vmul.f32 %v3380, 1.442695
        %v3386 = vpow.pop %v3385
        %v3387 = vadd.f32 %v3382, 1.0
        %v3388 = vadd.f32 %v3384, 1.0
        %v3389 = vadd.f32 %v3386, 1.0
        %v3390 = vrcp.pop %v3387
        %v3391 = vmul.f32 1.0, %v3390
        %v3392 = vrcp.pop %v3388
        %v3393 = vmul.f32 1.0, %v3392
        %v3394 = vrcp.pop %v3389
        %v3395 = vmul.f32 1.0, %v3394
        %v3396 = vtanh.pop %v3377
        %v3397 = vmul.f32 %v3393, %v3224
        %v3398 = vmul.f32 %v3391, %v3396
        %v3399 = vadd.f32 %v3397, %v3398
        %v3400 = vtanh.pop %v3399
        %v3401 = vmul.f32 %v3395, %v3400
        %3402 = vst [vmem:[%s1565] sm:$0xff] %v3401
        %v3403 = vld [vmem:[%s1569] sm:$0xff]
        %v3404 = vld [vmem:[%s1569 + $0x8] sm:$0xff]
        %v3405 = vld [vmem:[%s1569 + $0x10] sm:$0xff]
        %v3406 = vld [vmem:[%s1569 + $0x18] sm:$0xff]
        %3407 = vmatprep.subr.mxu0 %v2638
        %3408 = vmatpush1.msra.mxu0 %v2637
        %3409 = vmatprep.subr.mxu0 %v2642
        %3410 = vmatpush1.msra.mxu0 %v2641
        %3411 = vmatprep.subr.mxu0 %v2646
        %3412 = vmatpush1.msra.mxu0 %v2645
        %3413 = vmatprep.subr.mxu0 %v2650
        %3414 = vmatpush1.msra.mxu0 %v2649
        %3415 = vmatprep.subr.mxu0 %v2654
        %3416 = vmatpush1.msra.mxu0 %v2653
        %3417 = vmatprep.subr.mxu0 %v2658
        %3418 = vmatpush1.msra.mxu0 %v2657
        %3419 = vmatprep.subr.mxu0 %v2662
        %3420 = vmatpush1.msra.mxu0 %v2661
        %3421 = vmatprep.subr.mxu0 %v2666
        %3422 = vmatpush1.msra.mxu0 %v2665
        %3423 = vmatprep.subr.mxu0 %v2670
        %3424 = vmatpush1.msra.mxu0 %v2669
        %3425 = vmatprep.subr.mxu0 %v2674
        %3426 = vmatpush1.msra.mxu0 %v2673
        %3427 = vmatprep.subr.mxu0 %v2678
        %3428 = vmatpush1.msra.mxu0 %v2677
        %3429 = vmatprep.subr.mxu0 %v2682
        %3430 = vmatpush1.msra.mxu0 %v2681
        %3431 = vmatprep.subr.mxu0 %v2686
        %3432 = vmatpush1.msra.mxu0 %v2685
        %3433 = vmatprep.subr.mxu0 %v2690
        %3434 = vmatpush1.msra.mxu0 %v2689
        %3435 = vmatprep.subr.mxu0 %v2694
        %3436 = vmatpush1.msra.mxu0 %v2693
        %3437 = vmatprep.subr.mxu0 %v2698
        %3438 = vmatpush1.msra.mxu0 %v2697
        %3439 = vmatprep.subr.mxu0 0.0
        %3440 = vmatpush1.msra.mxu0 0.0
        %3441 = vmatprep.subr.mxu0 0.0
        %3442 = vmatpush1.msra.mxu0 0.0
        %3443 = vmatprep.subr.mxu0 0.0
        %3444 = vmatpush1.msra.mxu0 0.0
        %3445 = vmatprep.subr.mxu0 0.0
        %3446 = vmatpush1.msra.mxu0 0.0
        %3447 = vmatprep.subr.mxu0 0.0
        %3448 = vmatpush1.msra.mxu0 0.0
        %3449 = vmatprep.subr.mxu0 0.0
        %3450 = vmatpush1.msra.mxu0 0.0
        %3451 = vmatprep.subr.mxu0 0.0
        %3452 = vmatpush1.msra.mxu0 0.0
        %3453 = vmatprep.subr.mxu0 0.0
        %3454 = vmatpush1.msra.mxu0 0.0
        %3455 = vmatprep.subr.mxu0 0.0
        %3456 = vmatpush1.msra.mxu0 0.0
        %3457 = vmatprep.subr.mxu0 0.0
        %3458 = vmatpush1.msra.mxu0 0.0
        %3459 = vmatprep.subr.mxu0 0.0
        %3460 = vmatpush1.msra.mxu0 0.0
        %3461 = vmatprep.subr.mxu0 0.0
        %3462 = vmatpush1.msra.mxu0 0.0
        %3463 = vmatprep.subr.mxu0 0.0
        %3464 = vmatpush1.msra.mxu0 0.0
        %3465 = vmatprep.subr.mxu0 0.0
        %3466 = vmatpush1.msra.mxu0 0.0
        %3467 = vmatprep.subr.mxu0 0.0
        %3468 = vmatpush1.msra.mxu0 0.0
        %3469 = vmatprep.subr.mxu0 0.0
        %3470 = vmatpush1.msra.mxu0 0.0
        %3471 = vmatprep.mubr.f32.mxu0 0.0
        %3472 = vmatmul.mubr.f32.gmra.mrb[0].mxu0 %v3401
        %v3473 = vpop.f32.mrb[0].mxu0
        %v3474 = vadd.f32 0.0, %v3473
        %v3475 = vpop.f32.mrb[0].mxu0
        %v3476 = vadd.f32 0.0, %v3475
        %3477 = vdwg.mxu0
        %3478 = vmatprep.subr.mxu0 %v2640
        %3479 = vmatpush1.msra.mxu0 %v2639
        %3480 = vmatprep.subr.mxu0 %v2644
        %3481 = vmatpush1.msra.mxu0 %v2643
        %3482 = vmatprep.subr.mxu0 %v2648
        %3483 = vmatpush1.msra.mxu0 %v2647
        %3484 = vmatprep.subr.mxu0 %v2652
        %3485 = vmatpush1.msra.mxu0 %v2651
        %3486 = vmatprep.subr.mxu0 %v2656
        %3487 = vmatpush1.msra.mxu0 %v2655
        %3488 = vmatprep.subr.mxu0 %v2660
        %3489 = vmatpush1.msra.mxu0 %v2659
        %3490 = vmatprep.subr.mxu0 %v2664
        %3491 = vmatpush1.msra.mxu0 %v2663
        %3492 = vmatprep.subr.mxu0 %v2668
        %3493 = vmatpush1.msra.mxu0 %v2667
        %3494 = vmatprep.subr.mxu0 %v2672
        %3495 = vmatpush1.msra.mxu0 %v2671
        %3496 = vmatprep.subr.mxu0 %v2676
        %3497 = vmatpush1.msra.mxu0 %v2675
        %3498 = vmatprep.subr.mxu0 %v2680
        %3499 = vmatpush1.msra.mxu0 %v2679
        %3500 = vmatprep.subr.mxu0 %v2684
        %3501 = vmatpush1.msra.mxu0 %v2683
        %3502 = vmatprep.subr.mxu0 %v2688
        %3503 = vmatpush1.msra.mxu0 %v2687
        %3504 = vmatprep.subr.mxu0 %v2692
        %3505 = vmatpush1.msra.mxu0 %v2691
        %3506 = vmatprep.subr.mxu0 %v2696
        %3507 = vmatpush1.msra.mxu0 %v2695
        %3508 = vmatprep.subr.mxu0 %v2700
        %3509 = vmatpush1.msra.mxu0 %v2699
        %3510 = vmatprep.subr.mxu0 0.0
        %3511 = vmatpush1.msra.mxu0 0.0
        %3512 = vmatprep.subr.mxu0 0.0
        %3513 = vmatpush1.msra.mxu0 0.0
        %3514 = vmatprep.subr.mxu0 0.0
        %3515 = vmatpush1.msra.mxu0 0.0
        %3516 = vmatprep.subr.mxu0 0.0
        %3517 = vmatpush1.msra.mxu0 0.0
        %3518 = vmatprep.subr.mxu0 0.0
        %3519 = vmatpush1.msra.mxu0 0.0
        %3520 = vmatprep.subr.mxu0 0.0
        %3521 = vmatpush1.msra.mxu0 0.0
        %3522 = vmatprep.subr.mxu0 0.0
        %3523 = vmatpush1.msra.mxu0 0.0
        %3524 = vmatprep.subr.mxu0 0.0
        %3525 = vmatpush1.msra.mxu0 0.0
        %3526 = vmatprep.subr.mxu0 0.0
        %3527 = vmatpush1.msra.mxu0 0.0
        %3528 = vmatprep.subr.mxu0 0.0
        %3529 = vmatpush1.msra.mxu0 0.0
        %3530 = vmatprep.subr.mxu0 0.0
        %3531 = vmatpush1.msra.mxu0 0.0
        %3532 = vmatprep.subr.mxu0 0.0
        %3533 = vmatpush1.msra.mxu0 0.0
        %3534 = vmatprep.subr.mxu0 0.0
        %3535 = vmatpush1.msra.mxu0 0.0
        %3536 = vmatprep.subr.mxu0 0.0
        %3537 = vmatpush1.msra.mxu0 0.0
        %3538 = vmatprep.subr.mxu0 0.0
        %3539 = vmatpush1.msra.mxu0 0.0
        %3540 = vmatprep.subr.mxu0 0.0
        %3541 = vmatpush1.msra.mxu0 0.0
        %3542 = vmatprep.mubr.f32.mxu0 0.0
        %3543 = vmatmul.mubr.f32.gmra.mrb[0].mxu0 %v3401
        %v3544 = vpop.f32.mrb[0].mxu0
        %v3545 = vadd.f32 0.0, %v3544
        %v3546 = vpop.f32.mrb[0].mxu0
        %v3547 = vadd.f32 0.0, %v3546
        %3548 = vdwg.mxu0
        %v3549 = vadd.f32 %v3403, %v3474
        %v3550 = vadd.f32 %v3404, %v3476
        %v3551 = vadd.f32 %v3405, %v3545
        %v3552 = vadd.f32 %v3406, %v3547
        %v3553 = vxor.u32 %v3549, 2147483648
        %v3554 = vxor.u32 %v3550, 2147483648
        %v3555 = vxor.u32 %v3551, 2147483648
        %v3556 = vmul.f32 %v3553, 1.442695
        %v3557 = vpow.pop %v3556
        %v3558 = vmul.f32 %v3554, 1.442695
        %v3559 = vpow.pop %v3558
        %v3560 = vmul.f32 %v3555, 1.442695
        %v3561 = vpow.pop %v3560
        %v3562 = vadd.f32 %v3557, 1.0
        %v3563 = vadd.f32 %v3559, 1.0
        %v3564 = vadd.f32 %v3561, 1.0
        %v3565 = vrcp.pop %v3562
        %v3566 = vmul.f32 1.0, %v3565
        %v3567 = vrcp.pop %v3563
        %v3568 = vmul.f32 1.0, %v3567
        %v3569 = vrcp.pop %v3564
        %v3570 = vmul.f32 1.0, %v3569
        %v3571 = vtanh.pop %v3552
        %v3572 = vmul.f32 %v3568, %v3399
        %v3573 = vmul.f32 %v3566, %v3571
        %v3574 = vadd.f32 %v3572, %v3573
        %v3575 = vtanh.pop %v3574
        %v3576 = vmul.f32 %v3570, %v3575
        %3577 = vst [vmem:[%s1744] sm:$0xff] %v3576
        %v3578 = vld [vmem:[%s1748] sm:$0xff]
        %v3579 = vld [vmem:[%s1748 + $0x8] sm:$0xff]
        %v3580 = vld [vmem:[%s1748 + $0x10] sm:$0xff]
        %v3581 = vld [vmem:[%s1748 + $0x18] sm:$0xff]
        %3582 = vmatprep.subr.mxu0 %v2638
        %3583 = vmatpush1.msra.mxu0 %v2637
        %3584 = vmatprep.subr.mxu0 %v2642
        %3585 = vmatpush1.msra.mxu0 %v2641
        %3586 = vmatprep.subr.mxu0 %v2646
        %3587 = vmatpush1.msra.mxu0 %v2645
        %3588 = vmatprep.subr.mxu0 %v2650
        %3589 = vmatpush1.msra.mxu0 %v2649
        %3590 = vmatprep.subr.mxu0 %v2654
        %3591 = vmatpush1.msra.mxu0 %v2653
        %3592 = vmatprep.subr.mxu0 %v2658
        %3593 = vmatpush1.msra.mxu0 %v2657
        %3594 = vmatprep.subr.mxu0 %v2662
        %3595 = vmatpush1.msra.mxu0 %v2661
        %3596 = vmatprep.subr.mxu0 %v2666
        %3597 = vmatpush1.msra.mxu0 %v2665
        %3598 = vmatprep.subr.mxu0 %v2670
        %3599 = vmatpush1.msra.mxu0 %v2669
        %3600 = vmatprep.subr.mxu0 %v2674
        %3601 = vmatpush1.msra.mxu0 %v2673
        %3602 = vmatprep.subr.mxu0 %v2678
        %3603 = vmatpush1.msra.mxu0 %v2677
        %3604 = vmatprep.subr.mxu0 %v2682
        %3605 = vmatpush1.msra.mxu0 %v2681
        %3606 = vmatprep.subr.mxu0 %v2686
        %3607 = vmatpush1.msra.mxu0 %v2685
        %3608 = vmatprep.subr.mxu0 %v2690
        %3609 = vmatpush1.msra.mxu0 %v2689
        %3610 = vmatprep.subr.mxu0 %v2694
        %3611 = vmatpush1.msra.mxu0 %v2693
        %3612 = vmatprep.subr.mxu0 %v2698
        %3613 = vmatpush1.msra.mxu0 %v2697
        %3614 = vmatprep.subr.mxu0 0.0
        %3615 = vmatpush1.msra.mxu0 0.0
        %3616 = vmatprep.subr.mxu0 0.0
        %3617 = vmatpush1.msra.mxu0 0.0
        %3618 = vmatprep.subr.mxu0 0.0
        %3619 = vmatpush1.msra.mxu0 0.0
        %3620 = vmatprep.subr.mxu0 0.0
        %3621 = vmatpush1.msra.mxu0 0.0
        %3622 = vmatprep.subr.mxu0 0.0
        %3623 = vmatpush1.msra.mxu0 0.0
        %3624 = vmatprep.subr.mxu0 0.0
        %3625 = vmatpush1.msra.mxu0 0.0
        %3626 = vmatprep.subr.mxu0 0.0
        %3627 = vmatpush1.msra.mxu0 0.0
        %3628 = vmatprep.subr.mxu0 0.0
        %3629 = vmatpush1.msra.mxu0 0.0
        %3630 = vmatprep.subr.mxu0 0.0
        %3631 = vmatpush1.msra.mxu0 0.0
        %3632 = vmatprep.subr.mxu0 0.0
        %3633 = vmatpush1.msra.mxu0 0.0
        %3634 = vmatprep.subr.mxu0 0.0
        %3635 = vmatpush1.msra.mxu0 0.0
        %3636 = vmatprep.subr.mxu0 0.0
        %3637 = vmatpush1.msra.mxu0 0.0
        %3638 = vmatprep.subr.mxu0 0.0
        %3639 = vmatpush1.msra.mxu0 0.0
        %3640 = vmatprep.subr.mxu0 0.0
        %3641 = vmatpush1.msra.mxu0 0.0
        %3642 = vmatprep.subr.mxu0 0.0
        %3643 = vmatpush1.msra.mxu0 0.0
        %3644 = vmatprep.subr.mxu0 0.0
        %3645 = vmatpush1.msra.mxu0 0.0
        %3646 = vmatprep.mubr.f32.mxu0 0.0
        %3647 = vmatmul.mubr.f32.gmra.mrb[0].mxu0 %v3576
        %v3648 = vpop.f32.mrb[0].mxu0
        %v3649 = vadd.f32 0.0, %v3648
        %v3650 = vpop.f32.mrb[0].mxu0
        %v3651 = vadd.f32 0.0, %v3650
        %3652 = vdwg.mxu0
        %3653 = vmatprep.subr.mxu0 %v2640
        %3654 = vmatpush1.msra.mxu0 %v2639
        %3655 = vmatprep.subr.mxu0 %v2644
        %3656 = vmatpush1.msra.mxu0 %v2643
        %3657 = vmatprep.subr.mxu0 %v2648
        %3658 = vmatpush1.msra.mxu0 %v2647
        %3659 = vmatprep.subr.mxu0 %v2652
        %3660 = vmatpush1.msra.mxu0 %v2651
        %3661 = vmatprep.subr.mxu0 %v2656
        %3662 = vmatpush1.msra.mxu0 %v2655
        %3663 = vmatprep.subr.mxu0 %v2660
        %3664 = vmatpush1.msra.mxu0 %v2659
        %3665 = vmatprep.subr.mxu0 %v2664
        %3666 = vmatpush1.msra.mxu0 %v2663
        %3667 = vmatprep.subr.mxu0 %v2668
        %3668 = vmatpush1.msra.mxu0 %v2667
        %3669 = vmatprep.subr.mxu0 %v2672
        %3670 = vmatpush1.msra.mxu0 %v2671
        %3671 = vmatprep.subr.mxu0 %v2676
        %3672 = vmatpush1.msra.mxu0 %v2675
        %3673 = vmatprep.subr.mxu0 %v2680
        %3674 = vmatpush1.msra.mxu0 %v2679
        %3675 = vmatprep.subr.mxu0 %v2684
        %3676 = vmatpush1.msra.mxu0 %v2683
        %3677 = vmatprep.subr.mxu0 %v2688
        %3678 = vmatpush1.msra.mxu0 %v2687
        %3679 = vmatprep.subr.mxu0 %v2692
        %3680 = vmatpush1.msra.mxu0 %v2691
        %3681 = vmatprep.subr.mxu0 %v2696
        %3682 = vmatpush1.msra.mxu0 %v2695
        %3683 = vmatprep.subr.mxu0 %v2700
        %3684 = vmatpush1.msra.mxu0 %v2699
        %3685 = vmatprep.subr.mxu0 0.0
        %3686 = vmatpush1.msra.mxu0 0.0
        %3687 = vmatprep.subr.mxu0 0.0
        %3688 = vmatpush1.msra.mxu0 0.0
        %3689 = vmatprep.subr.mxu0 0.0
        %3690 = vmatpush1.msra.mxu0 0.0
        %3691 = vmatprep.subr.mxu0 0.0
        %3692 = vmatpush1.msra.mxu0 0.0
        %3693 = vmatprep.subr.mxu0 0.0
        %3694 = vmatpush1.msra.mxu0 0.0
        %3695 = vmatprep.subr.mxu0 0.0
        %3696 = vmatpush1.msra.mxu0 0.0
        %3697 = vmatprep.subr.mxu0 0.0
        %3698 = vmatpush1.msra.mxu0 0.0
        %3699 = vmatprep.subr.mxu0 0.0
        %3700 = vmatpush1.msra.mxu0 0.0
        %3701 = vmatprep.subr.mxu0 0.0
        %3702 = vmatpush1.msra.mxu0 0.0
        %3703 = vmatprep.subr.mxu0 0.0
        %3704 = vmatpush1.msra.mxu0 0.0
        %3705 = vmatprep.subr.mxu0 0.0
        %3706 = vmatpush1.msra.mxu0 0.0
        %3707 = vmatprep.subr.mxu0 0.0
        %3708 = vmatpush1.msra.mxu0 0.0
        %3709 = vmatprep.subr.mxu0 0.0
        %3710 = vmatpush1.msra.mxu0 0.0
        %3711 = vmatprep.subr.mxu0 0.0
        %3712 = vmatpush1.msra.mxu0 0.0
        %3713 = vmatprep.subr.mxu0 0.0
        %3714 = vmatpush1.msra.mxu0 0.0
        %3715 = vmatprep.subr.mxu0 0.0
        %3716 = vmatpush1.msra.mxu0 0.0
        %3717 = vmatprep.mubr.f32.mxu0 0.0
        %3718 = vmatmul.mubr.f32.gmra.mrb[0].mxu0 %v3576
        %v3719 = vpop.f32.mrb[0].mxu0
        %v3720 = vadd.f32 0.0, %v3719
        %v3721 = vpop.f32.mrb[0].mxu0
        %v3722 = vadd.f32 0.0, %v3721
        %3723 = vdwg.mxu0
        %v3724 = vadd.f32 %v3578, %v3649
        %v3725 = vadd.f32 %v3579, %v3651
        %v3726 = vadd.f32 %v3580, %v3720
        %v3727 = vadd.f32 %v3581, %v3722
        %v3728 = vxor.u32 %v3724, 2147483648
        %v3729 = vxor.u32 %v3725, 2147483648
        %v3730 = vxor.u32 %v3726, 2147483648
        %v3731 = vmul.f32 %v3728, 1.442695
        %v3732 = vpow.pop %v3731
        %v3733 = vmul.f32 %v3729, 1.442695
        %v3734 = vpow.pop %v3733
        %v3735 = vmul.f32 %v3730, 1.442695
        %v3736 = vpow.pop %v3735
        %v3737 = vadd.f32 %v3732, 1.0
        %v3738 = vadd.f32 %v3734, 1.0
        %v3739 = vadd.f32 %v3736, 1.0
        %v3740 = vrcp.pop %v3737
        %v3741 = vmul.f32 1.0, %v3740
        %v3742 = vrcp.pop %v3738
        %v3743 = vmul.f32 1.0, %v3742
        %v3744 = vrcp.pop %v3739
        %v3745 = vmul.f32 1.0, %v3744
        %v3746 = vtanh.pop %v3727
        %v3747 = vmul.f32 %v3743, %v3574
        %v3748 = vmul.f32 %v3741, %v3746
        %v3749 = vadd.f32 %v3747, %v3748
        %v3750 = vtanh.pop %v3749
        %v3751 = vmul.f32 %v3745, %v3750
        %3752 = vst [vmem:[%s1923] sm:$0xff] %v3751
        %v3753 = vld [vmem:[%s1927] sm:$0xff]
        %v3754 = vld [vmem:[%s1927 + $0x8] sm:$0xff]
        %v3755 = vld [vmem:[%s1927 + $0x10] sm:$0xff]
        %v3756 = vld [vmem:[%s1927 + $0x18] sm:$0xff]
        %3757 = vmatprep.subr.mxu0 %v2638
        %3758 = vmatpush1.msra.mxu0 %v2637
        %3759 = vmatprep.subr.mxu0 %v2642
        %3760 = vmatpush1.msra.mxu0 %v2641
        %3761 = vmatprep.subr.mxu0 %v2646
        %3762 = vmatpush1.msra.mxu0 %v2645
        %3763 = vmatprep.subr.mxu0 %v2650
        %3764 = vmatpush1.msra.mxu0 %v2649
        %3765 = vmatprep.subr.mxu0 %v2654
        %3766 = vmatpush1.msra.mxu0 %v2653
        %3767 = vmatprep.subr.mxu0 %v2658
        %3768 = vmatpush1.msra.mxu0 %v2657
        %3769 = vmatprep.subr.mxu0 %v2662
        %3770 = vmatpush1.msra.mxu0 %v2661
        %3771 = vmatprep.subr.mxu0 %v2666
        %3772 = vmatpush1.msra.mxu0 %v2665
        %3773 = vmatprep.subr.mxu0 %v2670
        %3774 = vmatpush1.msra.mxu0 %v2669
        %3775 = vmatprep.subr.mxu0 %v2674
        %3776 = vmatpush1.msra.mxu0 %v2673
        %3777 = vmatprep.subr.mxu0 %v2678
        %3778 = vmatpush1.msra.mxu0 %v2677
        %3779 = vmatprep.subr.mxu0 %v2682
        %3780 = vmatpush1.msra.mxu0 %v2681
        %3781 = vmatprep.subr.mxu0 %v2686
        %3782 = vmatpush1.msra.mxu0 %v2685
        %3783 = vmatprep.subr.mxu0 %v2690
        %3784 = vmatpush1.msra.mxu0 %v2689
        %3785 = vmatprep.subr.mxu0 %v2694
        %3786 = vmatpush1.msra.mxu0 %v2693
        %3787 = vmatprep.subr.mxu0 %v2698
        %3788 = vmatpush1.msra.mxu0 %v2697
        %3789 = vmatprep.subr.mxu0 0.0
        %3790 = vmatpush1.msra.mxu0 0.0
        %3791 = vmatprep.subr.mxu0 0.0
        %3792 = vmatpush1.msra.mxu0 0.0
        %3793 = vmatprep.subr.mxu0 0.0
        %3794 = vmatpush1.msra.mxu0 0.0
        %3795 = vmatprep.subr.mxu0 0.0
        %3796 = vmatpush1.msra.mxu0 0.0
        %3797 = vmatprep.subr.mxu0 0.0
        %3798 = vmatpush1.msra.mxu0 0.0
        %3799 = vmatprep.subr.mxu0 0.0
        %3800 = vmatpush1.msra.mxu0 0.0
        %3801 = vmatprep.subr.mxu0 0.0
        %3802 = vmatpush1.msra.mxu0 0.0
        %3803 = vmatprep.subr.mxu0 0.0
        %3804 = vmatpush1.msra.mxu0 0.0
        %3805 = vmatprep.subr.mxu0 0.0
        %3806 = vmatpush1.msra.mxu0 0.0
        %3807 = vmatprep.subr.mxu0 0.0
        %3808 = vmatpush1.msra.mxu0 0.0
        %3809 = vmatprep.subr.mxu0 0.0
        %3810 = vmatpush1.msra.mxu0 0.0
        %3811 = vmatprep.subr.mxu0 0.0
        %3812 = vmatpush1.msra.mxu0 0.0
        %3813 = vmatprep.subr.mxu0 0.0
        %3814 = vmatpush1.msra.mxu0 0.0
        %3815 = vmatprep.subr.mxu0 0.0
        %3816 = vmatpush1.msra.mxu0 0.0
        %3817 = vmatprep.subr.mxu0 0.0
        %3818 = vmatpush1.msra.mxu0 0.0
        %3819 = vmatprep.subr.mxu0 0.0
        %3820 = vmatpush1.msra.mxu0 0.0
        %3821 = vmatprep.mubr.f32.mxu0 0.0
        %3822 = vmatmul.mubr.f32.gmra.mrb[0].mxu0 %v3751
        %v3823 = vpop.f32.mrb[0].mxu0
        %v3824 = vadd.f32 0.0, %v3823
        %v3825 = vpop.f32.mrb[0].mxu0
        %v3826 = vadd.f32 0.0, %v3825
        %3827 = vdwg.mxu0
        %3828 = vmatprep.subr.mxu0 %v2640
        %3829 = vmatpush1.msra.mxu0 %v2639
        %3830 = vmatprep.subr.mxu0 %v2644
        %3831 = vmatpush1.msra.mxu0 %v2643
        %3832 = vmatprep.subr.mxu0 %v2648
        %3833 = vmatpush1.msra.mxu0 %v2647
        %3834 = vmatprep.subr.mxu0 %v2652
        %3835 = vmatpush1.msra.mxu0 %v2651
        %3836 = vmatprep.subr.mxu0 %v2656
        %3837 = vmatpush1.msra.mxu0 %v2655
        %3838 = vmatprep.subr.mxu0 %v2660
        %3839 = vmatpush1.msra.mxu0 %v2659
        %3840 = vmatprep.subr.mxu0 %v2664
        %3841 = vmatpush1.msra.mxu0 %v2663
        %3842 = vmatprep.subr.mxu0 %v2668
        %3843 = vmatpush1.msra.mxu0 %v2667
        %3844 = vmatprep.subr.mxu0 %v2672
        %3845 = vmatpush1.msra.mxu0 %v2671
        %3846 = vmatprep.subr.mxu0 %v2676
        %3847 = vmatpush1.msra.mxu0 %v2675
        %3848 = vmatprep.subr.mxu0 %v2680
        %3849 = vmatpush1.msra.mxu0 %v2679
        %3850 = vmatprep.subr.mxu0 %v2684
        %3851 = vmatpush1.msra.mxu0 %v2683
        %3852 = vmatprep.subr.mxu0 %v2688
        %3853 = vmatpush1.msra.mxu0 %v2687
        %3854 = vmatprep.subr.mxu0 %v2692
        %3855 = vmatpush1.msra.mxu0 %v2691
        %3856 = vmatprep.subr.mxu0 %v2696
        %3857 = vmatpush1.msra.mxu0 %v2695
        %3858 = vmatprep.subr.mxu0 %v2700
        %3859 = vmatpush1.msra.mxu0 %v2699
        %3860 = vmatprep.subr.mxu0 0.0
        %3861 = vmatpush1.msra.mxu0 0.0
        %3862 = vmatprep.subr.mxu0 0.0
        %3863 = vmatpush1.msra.mxu0 0.0
        %3864 = vmatprep.subr.mxu0 0.0
        %3865 = vmatpush1.msra.mxu0 0.0
        %3866 = vmatprep.subr.mxu0 0.0
        %3867 = vmatpush1.msra.mxu0 0.0
        %3868 = vmatprep.subr.mxu0 0.0
        %3869 = vmatpush1.msra.mxu0 0.0
        %3870 = vmatprep.subr.mxu0 0.0
        %3871 = vmatpush1.msra.mxu0 0.0
        %3872 = vmatprep.subr.mxu0 0.0
        %3873 = vmatpush1.msra.mxu0 0.0
        %3874 = vmatprep.subr.mxu0 0.0
        %3875 = vmatpush1.msra.mxu0 0.0
        %3876 = vmatprep.subr.mxu0 0.0
        %3877 = vmatpush1.msra.mxu0 0.0
        %3878 = vmatprep.subr.mxu0 0.0
        %3879 = vmatpush1.msra.mxu0 0.0
        %3880 = vmatprep.subr.mxu0 0.0
        %3881 = vmatpush1.msra.mxu0 0.0
        %3882 = vmatprep.subr.mxu0 0.0
        %3883 = vmatpush1.msra.mxu0 0.0
        %3884 = vmatprep.subr.mxu0 0.0
        %3885 = vmatpush1.msra.mxu0 0.0
        %3886 = vmatprep.subr.mxu0 0.0
        %3887 = vmatpush1.msra.mxu0 0.0
        %3888 = vmatprep.subr.mxu0 0.0
        %3889 = vmatpush1.msra.mxu0 0.0
        %3890 = vmatprep.subr.mxu0 0.0
        %3891 = vmatpush1.msra.mxu0 0.0
        %3892 = vmatprep.mubr.f32.mxu0 0.0
        %3893 = vmatmul.mubr.f32.gmra.mrb[0].mxu0 %v3751
        %v3894 = vpop.f32.mrb[0].mxu0
        %v3895 = vadd.f32 0.0, %v3894
        %v3896 = vpop.f32.mrb[0].mxu0
        %v3897 = vadd.f32 0.0, %v3896
        %3898 = vdwg.mxu0
        %v3899 = vadd.f32 %v3753, %v3824
        %v3900 = vadd.f32 %v3754, %v3826
        %v3901 = vadd.f32 %v3755, %v3895
        %v3902 = vadd.f32 %v3756, %v3897
        %v3903 = vxor.u32 %v3899, 2147483648
        %v3904 = vxor.u32 %v3900, 2147483648
        %v3905 = vxor.u32 %v3901, 2147483648
        %v3906 = vmul.f32 %v3903, 1.442695
        %v3907 = vpow.pop %v3906
        %v3908 = vmul.f32 %v3904, 1.442695
        %v3909 = vpow.pop %v3908
        %v3910 = vmul.f32 %v3905, 1.442695
        %v3911 = vpow.pop %v3910
        %v3912 = vadd.f32 %v3907, 1.0
        %v3913 = vadd.f32 %v3909, 1.0
        %v3914 = vadd.f32 %v3911, 1.0
        %v3915 = vrcp.pop %v3912
        %v3916 = vmul.f32 1.0, %v3915
        %v3917 = vrcp.pop %v3913
        %v3918 = vmul.f32 1.0, %v3917
        %v3919 = vrcp.pop %v3914
        %v3920 = vmul.f32 1.0, %v3919
        %v3921 = vtanh.pop %v3902
        %v3922 = vmul.f32 %v3918, %v3749
        %v3923 = vmul.f32 %v3916, %v3921
        %v3924 = vadd.f32 %v3922, %v3923
        %v3925 = vtanh.pop %v3924
        %v3926 = vmul.f32 %v3920, %v3925
        %3927 = vst [vmem:[%s2102] sm:$0xff] %v3926
        %v3928 = vld [vmem:[%s2106] sm:$0xff]
        %v3929 = vld [vmem:[%s2106 + $0x8] sm:$0xff]
        %v3930 = vld [vmem:[%s2106 + $0x10] sm:$0xff]
        %v3931 = vld [vmem:[%s2106 + $0x18] sm:$0xff]
        %3932 = vmatprep.subr.mxu0 %v2638
        %3933 = vmatpush1.msra.mxu0 %v2637
        %3934 = vmatprep.subr.mxu0 %v2642
        %3935 = vmatpush1.msra.mxu0 %v2641
        %3936 = vmatprep.subr.mxu0 %v2646
        %3937 = vmatpush1.msra.mxu0 %v2645
        %3938 = vmatprep.subr.mxu0 %v2650
        %3939 = vmatpush1.msra.mxu0 %v2649
        %3940 = vmatprep.subr.mxu0 %v2654
        %3941 = vmatpush1.msra.mxu0 %v2653
        %3942 = vmatprep.subr.mxu0 %v2658
        %3943 = vmatpush1.msra.mxu0 %v2657
        %3944 = vmatprep.subr.mxu0 %v2662
        %3945 = vmatpush1.msra.mxu0 %v2661
        %3946 = vmatprep.subr.mxu0 %v2666
        %3947 = vmatpush1.msra.mxu0 %v2665
        %3948 = vmatprep.subr.mxu0 %v2670
        %3949 = vmatpush1.msra.mxu0 %v2669
        %3950 = vmatprep.subr.mxu0 %v2674
        %3951 = vmatpush1.msra.mxu0 %v2673
        %3952 = vmatprep.subr.mxu0 %v2678
        %3953 = vmatpush1.msra.mxu0 %v2677
        %3954 = vmatprep.subr.mxu0 %v2682
        %3955 = vmatpush1.msra.mxu0 %v2681
        %3956 = vmatprep.subr.mxu0 %v2686
        %3957 = vmatpush1.msra.mxu0 %v2685
        %3958 = vmatprep.subr.mxu0 %v2690
        %3959 = vmatpush1.msra.mxu0 %v2689
        %3960 = vmatprep.subr.mxu0 %v2694
        %3961 = vmatpush1.msra.mxu0 %v2693
        %3962 = vmatprep.subr.mxu0 %v2698
        %3963 = vmatpush1.msra.mxu0 %v2697
        %3964 = vmatprep.subr.mxu0 0.0
        %3965 = vmatpush1.msra.mxu0 0.0
        %3966 = vmatprep.subr.mxu0 0.0
        %3967 = vmatpush1.msra.mxu0 0.0
        %3968 = vmatprep.subr.mxu0 0.0
        %3969 = vmatpush1.msra.mxu0 0.0
        %3970 = vmatprep.subr.mxu0 0.0
        %3971 = vmatpush1.msra.mxu0 0.0
        %3972 = vmatprep.subr.mxu0 0.0
        %3973 = vmatpush1.msra.mxu0 0.0
        %3974 = vmatprep.subr.mxu0 0.0
        %3975 = vmatpush1.msra.mxu0 0.0
        %3976 = vmatprep.subr.mxu0 0.0
        %3977 = vmatpush1.msra.mxu0 0.0
        %3978 = vmatprep.subr.mxu0 0.0
        %3979 = vmatpush1.msra.mxu0 0.0
        %3980 = vmatprep.subr.mxu0 0.0
        %3981 = vmatpush1.msra.mxu0 0.0
        %3982 = vmatprep.subr.mxu0 0.0
        %3983 = vmatpush1.msra.mxu0 0.0
        %3984 = vmatprep.subr.mxu0 0.0
        %3985 = vmatpush1.msra.mxu0 0.0
        %3986 = vmatprep.subr.mxu0 0.0
        %3987 = vmatpush1.msra.mxu0 0.0
        %3988 = vmatprep.subr.mxu0 0.0
        %3989 = vmatpush1.msra.mxu0 0.0
        %3990 = vmatprep.subr.mxu0 0.0
        %3991 = vmatpush1.msra.mxu0 0.0
        %3992 = vmatprep.subr.mxu0 0.0
        %3993 = vmatpush1.msra.mxu0 0.0
        %3994 = vmatprep.subr.mxu0 0.0
        %3995 = vmatpush1.msra.mxu0 0.0
        %3996 = vmatprep.mubr.f32.mxu0 0.0
        %3997 = vmatmul.mubr.f32.gmra.mrb[0].mxu0 %v3926
        %v3998 = vpop.f32.mrb[0].mxu0
        %v3999 = vadd.f32 0.0, %v3998
        %v4000 = vpop.f32.mrb[0].mxu0
        %v4001 = vadd.f32 0.0, %v4000
        %4002 = vdwg.mxu0
        %4003 = vmatprep.subr.mxu0 %v2640
        %4004 = vmatpush1.msra.mxu0 %v2639
        %4005 = vmatprep.subr.mxu0 %v2644
        %4006 = vmatpush1.msra.mxu0 %v2643
        %4007 = vmatprep.subr.mxu0 %v2648
        %4008 = vmatpush1.msra.mxu0 %v2647
        %4009 = vmatprep.subr.mxu0 %v2652
        %4010 = vmatpush1.msra.mxu0 %v2651
        %4011 = vmatprep.subr.mxu0 %v2656
        %4012 = vmatpush1.msra.mxu0 %v2655
        %4013 = vmatprep.subr.mxu0 %v2660
        %4014 = vmatpush1.msra.mxu0 %v2659
        %4015 = vmatprep.subr.mxu0 %v2664
        %4016 = vmatpush1.msra.mxu0 %v2663
        %4017 = vmatprep.subr.mxu0 %v2668
        %4018 = vmatpush1.msra.mxu0 %v2667
        %4019 = vmatprep.subr.mxu0 %v2672
        %4020 = vmatpush1.msra.mxu0 %v2671
        %4021 = vmatprep.subr.mxu0 %v2676
        %4022 = vmatpush1.msra.mxu0 %v2675
        %4023 = vmatprep.subr.mxu0 %v2680
        %4024 = vmatpush1.msra.mxu0 %v2679
        %4025 = vmatprep.subr.mxu0 %v2684
        %4026 = vmatpush1.msra.mxu0 %v2683
        %4027 = vmatprep.subr.mxu0 %v2688
        %4028 = vmatpush1.msra.mxu0 %v2687
        %4029 = vmatprep.subr.mxu0 %v2692
        %4030 = vmatpush1.msra.mxu0 %v2691
        %4031 = vmatprep.subr.mxu0 %v2696
        %4032 = vmatpush1.msra.mxu0 %v2695
        %4033 = vmatprep.subr.mxu0 %v2700
        %4034 = vmatpush1.msra.mxu0 %v2699
        %4035 = vmatprep.subr.mxu0 0.0
        %4036 = vmatpush1.msra.mxu0 0.0
        %4037 = vmatprep.subr.mxu0 0.0
        %4038 = vmatpush1.msra.mxu0 0.0
        %4039 = vmatprep.subr.mxu0 0.0
        %4040 = vmatpush1.msra.mxu0 0.0
        %4041 = vmatprep.subr.mxu0 0.0
        %4042 = vmatpush1.msra.mxu0 0.0
        %4043 = vmatprep.subr.mxu0 0.0
        %4044 = vmatpush1.msra.mxu0 0.0
        %4045 = vmatprep.subr.mxu0 0.0
        %4046 = vmatpush1.msra.mxu0 0.0
        %4047 = vmatprep.subr.mxu0 0.0
        %4048 = vmatpush1.msra.mxu0 0.0
        %4049 = vmatprep.subr.mxu0 0.0
        %4050 = vmatpush1.msra.mxu0 0.0
        %4051 = vmatprep.subr.mxu0 0.0
        %4052 = vmatpush1.msra.mxu0 0.0
        %4053 = vmatprep.subr.mxu0 0.0
        %4054 = vmatpush1.msra.mxu0 0.0
        %4055 = vmatprep.subr.mxu0 0.0
        %4056 = vmatpush1.msra.mxu0 0.0
        %4057 = vmatprep.subr.mxu0 0.0
        %4058 = vmatpush1.msra.mxu0 0.0
        %4059 = vmatprep.subr.mxu0 0.0
        %4060 = vmatpush1.msra.mxu0 0.0
        %4061 = vmatprep.subr.mxu0 0.0
        %4062 = vmatpush1.msra.mxu0 0.0
        %4063 = vmatprep.subr.mxu0 0.0
        %4064 = vmatpush1.msra.mxu0 0.0
        %4065 = vmatprep.subr.mxu0 0.0
        %4066 = vmatpush1.msra.mxu0 0.0
        %4067 = vmatprep.mubr.f32.mxu0 0.0
        %4068 = vmatmul.mubr.f32.gmra.mrb[0].mxu0 %v3926
        %v4069 = vpop.f32.mrb[0].mxu0
        %v4070 = vadd.f32 0.0, %v4069
        %v4071 = vpop.f32.mrb[0].mxu0
        %v4072 = vadd.f32 0.0, %v4071
        %4073 = vdwg.mxu0
        %v4074 = vadd.f32 %v3928, %v3999
        %v4075 = vadd.f32 %v3929, %v4001
        %v4076 = vadd.f32 %v3930, %v4070
        %v4077 = vadd.f32 %v3931, %v4072
        %v4078 = vxor.u32 %v4074, 2147483648
        %v4079 = vxor.u32 %v4075, 2147483648
        %v4080 = vxor.u32 %v4076, 2147483648
        %v4081 = vmul.f32 %v4078, 1.442695
        %v4082 = vpow.pop %v4081
        %v4083 = vmul.f32 %v4079, 1.442695
        %v4084 = vpow.pop %v4083
        %v4085 = vmul.f32 %v4080, 1.442695
        %v4086 = vpow.pop %v4085
        %v4087 = vadd.f32 %v4082, 1.0
        %v4088 = vadd.f32 %v4084, 1.0
        %v4089 = vadd.f32 %v4086, 1.0
        %v4090 = vrcp.pop %v4087
        %v4091 = vmul.f32 1.0, %v4090
        %v4092 = vrcp.pop %v4088
        %v4093 = vmul.f32 1.0, %v4092
        %v4094 = vrcp.pop %v4089
        %v4095 = vmul.f32 1.0, %v4094
        %v4096 = vtanh.pop %v4077
        %v4097 = vmul.f32 %v4093, %v3924
        %v4098 = vmul.f32 %v4091, %v4096
        %v4099 = vadd.f32 %v4097, %v4098
        %v4100 = vtanh.pop %v4099
        %v4101 = vmul.f32 %v4095, %v4100
        %4102 = vst [vmem:[%s2281] sm:$0xff] %v4101
        %4103 = vst [vmem:[#allocation4] sm:$0xff] %v4101
        %4104 = vst [vmem:[#allocation5] sm:$0xff] %v4099
        %v4105 = vld [vmem:[#allocation7] sm:$0xff]
        %v4106 = vld [vmem:[#allocation7 + $0x8] sm:$0xff]
        %v4107 = vld [vmem:[#allocation7 + $0x10] sm:$0xff]
        %v4108 = vld [vmem:[#allocation7 + $0x18] sm:$0xff]
        %v4109 = vld [vmem:[#allocation7 + $0x20] sm:$0xff]
        %v4110 = vld [vmem:[#allocation7 + $0x28] sm:$0xff]
        %v4111 = vld [vmem:[#allocation7 + $0x30] sm:$0xff]
        %v4112 = vld [vmem:[#allocation7 + $0x38] sm:$0xff]
        %v4113 = vld [vmem:[%s7] sm:$0x1]
        %v4115 = vlaneseq
        %v4116 = vshrl.u32 %v4115, 7
        %v4117 = vsub.s32 0, %v4116
        %v4118 = vrot.slane %v4113, %v4117
        %v4120 = vmul.f32 %v4105, %v4118
        %v4121 = vmul.f32 %v4106, %v4118
        %v4122 = vmul.f32 %v4107, %v4118
        %v4123 = vmul.f32 %v4108, %v4118
        %v4124 = vmul.f32 %v4109, %v4118
        %v4125 = vmul.f32 %v4110, %v4118
        %v4126 = vmul.f32 %v4111, %v4118
        %v4127 = vmul.f32 %v4112, %v4118
        %4128 = vadd.xlane.f32.xlu0 %v4120
        %v4129 = vpop.xlane.xlu0 %4128
        %4130 = vadd.xlane.f32.xlu0 %v4121
        %v4131 = vpop.xlane.xlu0 %4130
        %4132 = vadd.xlane.f32.xlu0 %v4122
        %v4133 = vpop.xlane.xlu0 %4132
        %4134 = vadd.xlane.f32.xlu0 %v4123
        %v4135 = vpop.xlane.xlu0 %4134
        %4136 = vadd.xlane.f32.xlu0 %v4124
        %v4137 = vpop.xlane.xlu0 %4136
        %4138 = vadd.xlane.f32.xlu0 %v4125
        %v4139 = vpop.xlane.xlu0 %4138
        %4140 = vadd.xlane.f32.xlu0 %v4126
        %v4141 = vpop.xlane.xlu0 %4140
        %4142 = vadd.xlane.f32.xlu0 %v4127
        %v4143 = vpop.xlane.xlu0 %4142
        %v4144 = vld [vmem:[#allocation11] sm:$0x1]
        %s4145 = vtos %v4144
        %v4146 = vstv %s4145
        %v4147 = vadd.f32 %v4129, %v4146
        %v4148 = vadd.f32 %v4131, %v4146
        %v4149 = vadd.f32 %v4133, %v4146
        %v4150 = vadd.f32 %v4135, %v4146
        %v4151 = vadd.f32 %v4137, %v4146
        %v4152 = vadd.f32 %v4139, %v4146
        %v4153 = vadd.f32 %v4141, %v4146
        %v4154 = vadd.f32 %v4143, %v4146
        %s4155 = smul.u32 %s31, 8
        %v4156 = vstv %s4155
        %v4157 = vadd.s32 %v4156, 1
        %v4158 = vadd.s32 %v4156, 2
        %v4159 = vadd.s32 %v4156, 3
        %v4160 = vadd.s32 %v4156, 4
        %v4161 = vadd.s32 %v4156, 5
        %v4162 = vadd.s32 %v4156, 6
        %v4163 = vadd.s32 %v4156, 7
        %vm4164 = vcmp.lt.s32.totalorder %v4156, 16
        %vm4165 = vcmp.lt.s32.totalorder %v4157, 16
        %vm4166 = vcmp.lt.s32.totalorder %v4158, 16
        %vm4167 = vcmp.lt.s32.totalorder %v4159, 16
        %vm4168 = vcmp.lt.s32.totalorder %v4160, 16
        %vm4169 = vcmp.lt.s32.totalorder %v4161, 16
        %vm4170 = vcmp.lt.s32.totalorder %v4162, 16
        %vm4171 = vcmp.lt.s32.totalorder %v4163, 16
        %v4172 = vsel %vm4164, %v4147, -1e+30
        %v4173 = vsel %vm4165, %v4148, -1e+30
        %v4174 = vsel %vm4166, %v4149, -1e+30
        %v4175 = vsel %vm4167, %v4150, -1e+30
        %v4176 = vsel %vm4168, %v4151, -1e+30
        %v4177 = vsel %vm4169, %v4152, -1e+30
        %v4178 = vsel %vm4170, %v4153, -1e+30
        %v4179 = vsel %vm4171, %v4154, -1e+30
        %v4180 = vld [vmem:[#allocation8] sm:$0xff]
        %v4181 = vmax.f32 %v4172, %v4176
        %v4182 = vmax.f32 %v4173, %v4177
        %v4183 = vmax.f32 %v4174, %v4178
        %v4184 = vmax.f32 %v4175, %v4179
        %v4185 = vmax.f32 %v4181, %v4182
        %v4186 = vmax.f32 %v4183, %v4184
        %v4187 = vmax.f32 %v4185, %v4186
        %v4188 = vmax.f32 %v4180, %v4187
        %v4189 = vsub.f32 %v4180, %v4188
        %v4190 = vmul.f32 %v4189, 1.442695
        %v4191 = vpow.pop %v4190
        %v4192 = vsub.f32 %v4172, %v4188
        %v4193 = vsub.f32 %v4173, %v4188
        %v4194 = vsub.f32 %v4174, %v4188
        %v4195 = vsub.f32 %v4175, %v4188
        %v4196 = vsub.f32 %v4176, %v4188
        %v4197 = vsub.f32 %v4177, %v4188
        %v4198 = vsub.f32 %v4178, %v4188
        %v4199 = vsub.f32 %v4179, %v4188
        %v4200 = vmul.f32 %v4192, 1.442695
        %v4201 = vpow.pop %v4200
        %v4202 = vmul.f32 %v4193, 1.442695
        %v4203 = vpow.pop %v4202
        %v4204 = vmul.f32 %v4194, 1.442695
        %v4205 = vpow.pop %v4204
        %v4206 = vmul.f32 %v4195, 1.442695
        %v4207 = vpow.pop %v4206
        %v4208 = vmul.f32 %v4196, 1.442695
        %v4209 = vpow.pop %v4208
        %v4210 = vmul.f32 %v4197, 1.442695
        %v4211 = vpow.pop %v4210
        %v4212 = vmul.f32 %v4198, 1.442695
        %v4213 = vpow.pop %v4212
        %v4214 = vmul.f32 %v4199, 1.442695
        %v4215 = vpow.pop %v4214
        %v4216 = vld [vmem:[#allocation9] sm:$0xff]
        %v4217 = vmul.f32 %v4191, %v4216
        %vm4218 = vcmask 7168
        %v4219 = vsel %vm4218, %v4201, 0.0
        %v4220 = vsel %vm4218, %v4203, 0.0
        %v4221 = vadd.f32 %v4219, %v4220
        %v4222 = vsel %vm4218, %v4205, 0.0
        %v4223 = vadd.f32 %v4221, %v4222
        %v4224 = vsel %vm4218, %v4207, 0.0
        %v4225 = vadd.f32 %v4223, %v4224
        %v4226 = vsel %vm4218, %v4209, 0.0
        %v4227 = vadd.f32 %v4225, %v4226
        %v4228 = vsel %vm4218, %v4211, 0.0
        %v4229 = vadd.f32 %v4227, %v4228
        %v4230 = vsel %vm4218, %v4213, 0.0
        %v4231 = vadd.f32 %v4229, %v4230
        %v4232 = vsel %vm4218, %v4215, 0.0
        %v4233 = vadd.f32 %v4231, %v4232
        %v4234 = vadd.f32 %v4217, %v4233
        %4235 = vst.msk [vmem:[#allocation9] sm:$0xff] %vm4218, %v4234
        %4236 = vst.msk [vmem:[#allocation8] sm:$0xff] %vm4218, %v4188
        %v4237 = vld [vmem:[#allocation10] sm:$0xff]
        %4239 = vset.pattern.permute.xlu0 0
        %4240 = vperm.xlu0 %4239, %v4191
        %v4241 = vpop.permute.xlu0 %4240
        %v4243 = vmul.f32 %v4241, %v4237
        %4245 = vset.pattern.permute.xlu0 0
        %4246 = vperm.xlu0 %4245, %v4201
        %v4247 = vpop.permute.xlu0 %4246
        %4250 = vset.pattern.permute.xlu0 0
        %4251 = vperm.xlu0 %4250, %v4203
        %v4252 = vpop.permute.xlu0 %4251
        %4255 = vset.pattern.permute.xlu0 0
        %4256 = vperm.xlu0 %4255, %v4205
        %v4257 = vpop.permute.xlu0 %4256
        %4260 = vset.pattern.permute.xlu0 0
        %4261 = vperm.xlu0 %4260, %v4207
        %v4262 = vpop.permute.xlu0 %4261
        %4265 = vset.pattern.permute.xlu0 0
        %4266 = vperm.xlu0 %4265, %v4209
        %v4267 = vpop.permute.xlu0 %4266
        %4270 = vset.pattern.permute.xlu0 0
        %4271 = vperm.xlu0 %4270, %v4211
        %v4272 = vpop.permute.xlu0 %4271
        %4275 = vset.pattern.permute.xlu0 0
        %4276 = vperm.xlu0 %4275, %v4213
        %v4277 = vpop.permute.xlu0 %4276
        %4280 = vset.pattern.permute.xlu0 0
        %4281 = vperm.xlu0 %4280, %v4215
        %v4282 = vpop.permute.xlu0 %4281
        %v4284 = vmul.f32 %v4247, %v4105
        %v4285 = vmul.f32 %v4252, %v4106
        %v4286 = vmul.f32 %v4257, %v4107
        %v4287 = vmul.f32 %v4262, %v4108
        %v4288 = vmul.f32 %v4267, %v4109
        %v4289 = vmul.f32 %v4272, %v4110
        %v4290 = vmul.f32 %v4277, %v4111
        %v4291 = vmul.f32 %v4282, %v4112
        %v4292 = vadd.f32 %v4284, %v4285
        %v4293 = vadd.f32 %v4292, %v4286
        %v4294 = vadd.f32 %v4293, %v4287
        %v4295 = vadd.f32 %v4294, %v4288
        %v4296 = vadd.f32 %v4295, %v4289
        %v4297 = vadd.f32 %v4296, %v4290
        %v4298 = vadd.f32 %v4297, %v4291
        %v4299 = vadd.f32 %v4243, %v4298
        %4300 = vst [vmem:[#allocation10] sm:$0xff] %v4299
        %p4301 = scmp.eq.s32.totalorder %s31, 1
        // Predicated region
        $region81: #{attention_lstm_forward.1} parent=63 // pred_check
          %p4302 = pneg %p4301
        $region82: #{attention_lstm_forward.1} parent=63 // pred_check_branch
          %4304 = sbr.rel (%p4302) target = $region84
        $region83: #{attention_lstm_forward.1} parent=63 // pred_region
          %v4305 = vld [vmem:[#allocation9] sm:$0xff]
          %v4306 = vrcp.pop %v4305
          %v4307 = vld [vmem:[#allocation10] sm:$0xff]
          %4309 = vset.pattern.permute.xlu0 0
          %4310 = vperm.xlu0 %4309, %v4306
          %v4311 = vpop.permute.xlu0 %4310
          %v4313 = vmul.f32 %v4307, %v4311
          %v4314 = vld [vmem:[%s9] sm:$0xff]
          %v4315 = vld [vmem:[%s9 + $0x8] sm:$0xff]
          %v4316 = vld [vmem:[%s9 + $0x10] sm:$0xff]
          %v4317 = vld [vmem:[%s9 + $0x18] sm:$0xff]
          %v4318 = vld [vmem:[%s9 + $0x20] sm:$0xff]
          %v4319 = vld [vmem:[%s9 + $0x28] sm:$0xff]
          %v4320 = vld [vmem:[%s9 + $0x30] sm:$0xff]
          %v4321 = vld [vmem:[%s9 + $0x38] sm:$0xff]
          %v4322 = vld [vmem:[%s9 + $0x40] sm:$0xff]
          %v4323 = vld [vmem:[%s9 + $0x48] sm:$0xff]
          %v4324 = vld [vmem:[%s9 + $0x50] sm:$0xff]
          %v4325 = vld [vmem:[%s9 + $0x58] sm:$0xff]
          %v4326 = vld [vmem:[%s9 + $0x60] sm:$0xff]
          %v4327 = vld [vmem:[%s9 + $0x68] sm:$0xff]
          %v4328 = vld [vmem:[%s9 + $0x70] sm:$0xff]
          %v4329 = vld [vmem:[%s9 + $0x78] sm:$0xff]
          %v4330 = vld [vmem:[%s10] sm:$0x1]
          %v4332 = vlaneseq
          %v4333 = vshrl.u32 %v4332, 7
          %v4334 = vsub.s32 0, %v4333
          %v4335 = vrot.slane %v4330, %v4334
          %4337 = vmatprep.subr.mxu0 0.0
          %4338 = vmatpush1.msra.mxu0 %v4314
          %4339 = vmatprep.subr.mxu0 0.0
          %4340 = vmatpush1.msra.mxu0 %v4315
          %4341 = vmatprep.subr.mxu0 0.0
          %4342 = vmatpush1.msra.mxu0 %v4316
          %4343 = vmatprep.subr.mxu0 0.0
          %4344 = vmatpush1.msra.mxu0 %v4317
          %4345 = vmatprep.subr.mxu0 0.0
          %4346 = vmatpush1.msra.mxu0 %v4318
          %4347 = vmatprep.subr.mxu0 0.0
          %4348 = vmatpush1.msra.mxu0 %v4319
          %4349 = vmatprep.subr.mxu0 0.0
          %4350 = vmatpush1.msra.mxu0 %v4320
          %4351 = vmatprep.subr.mxu0 0.0
          %4352 = vmatpush1.msra.mxu0 %v4321
          %4353 = vmatprep.subr.mxu0 0.0
          %4354 = vmatpush1.msra.mxu0 %v4322
          %4355 = vmatprep.subr.mxu0 0.0
          %4356 = vmatpush1.msra.mxu0 %v4323
          %4357 = vmatprep.subr.mxu0 0.0
          %4358 = vmatpush1.msra.mxu0 %v4324
          %4359 = vmatprep.subr.mxu0 0.0
          %4360 = vmatpush1.msra.mxu0 %v4325
          %4361 = vmatprep.subr.mxu0 0.0
          %4362 = vmatpush1.msra.mxu0 %v4326
          %4363 = vmatprep.subr.mxu0 0.0
          %4364 = vmatpush1.msra.mxu0 %v4327
          %4365 = vmatprep.subr.mxu0 0.0
          %4366 = vmatpush1.msra.mxu0 %v4328
          %4367 = vmatprep.subr.mxu0 0.0
          %4368 = vmatpush1.msra.mxu0 %v4329
          %4369 = vmatprep.subr.mxu0 0.0
          %4370 = vmatpush1.msra.mxu0 0.0
          %4371 = vmatprep.subr.mxu0 0.0
          %4372 = vmatpush1.msra.mxu0 0.0
          %4373 = vmatprep.subr.mxu0 0.0
          %4374 = vmatpush1.msra.mxu0 0.0
          %4375 = vmatprep.subr.mxu0 0.0
          %4376 = vmatpush1.msra.mxu0 0.0
          %4377 = vmatprep.subr.mxu0 0.0
          %4378 = vmatpush1.msra.mxu0 0.0
          %4379 = vmatprep.subr.mxu0 0.0
          %4380 = vmatpush1.msra.mxu0 0.0
          %4381 = vmatprep.subr.mxu0 0.0
          %4382 = vmatpush1.msra.mxu0 0.0
          %4383 = vmatprep.subr.mxu0 0.0
          %4384 = vmatpush1.msra.mxu0 0.0
          %4385 = vmatprep.subr.mxu0 0.0
          %4386 = vmatpush1.msra.mxu0 0.0
          %4387 = vmatprep.subr.mxu0 0.0
          %4388 = vmatpush1.msra.mxu0 0.0
          %4389 = vmatprep.subr.mxu0 0.0
          %4390 = vmatpush1.msra.mxu0 0.0
          %4391 = vmatprep.subr.mxu0 0.0
          %4392 = vmatpush1.msra.mxu0 0.0
          %4393 = vmatprep.subr.mxu0 0.0
          %4394 = vmatpush1.msra.mxu0 0.0
          %4395 = vmatprep.subr.mxu0 0.0
          %4396 = vmatpush1.msra.mxu0 0.0
          %4397 = vmatprep.subr.mxu0 0.0
          %4398 = vmatpush1.msra.mxu0 0.0
          %4399 = vmatprep.subr.mxu0 0.0
          %4400 = vmatpush1.msra.mxu0 0.0
          %4401 = vmatprep.mubr.f32.mxu0 0.0
          %4402 = vmatmul.mubr.f32.gmra.mrb[0].mxu0 %v4313
          %v4403 = vpop.f32.mrb[0].mxu0
          %v4404 = vadd.f32 %v4335, %v4403
          %v4405 = vpop.f32.mrb[0].mxu0
          %4406 = vdwg.mxu0
          %vm4407 = vcmask 23552
          %4408 = vst.msk [vmem:[%s456] sm:$0xff] %vm4407, %v4404
        $region84: #{attention_lstm_forward.1} parent=63 // pred_fallthru
          _
        %p4409 = scmp.lt.s32.totalorder %s30, 1
        %s4410 = scalar_select %p4409, %s30, 1
        %s4411 = smul.addr %s4410, 8
        %s4412 = scalar_lea.vmem %s11, %s4411
        // Predicated region
        $region85: #{attention_lstm_forward.1} parent=63 // pred_check
          %p4413 = pneg %p294
        $region86: #{attention_lstm_forward.1} parent=63 // pred_check_branch
          %4415 = sbr.rel (%p4413) target = $region88
        $region87: #{attention_lstm_forward.1} parent=63 // pred_region
          _
        $region88: #{attention_lstm_forward.1} parent=63 // pred_fallthru
          _
      $region64: #{attention_lstm_forward.1} parent=5 // pred_fallthru
        _
      %p4416 = scmp.le.s32.totalorder 2, %s21
      // Predicated region
      $region89: #{attention_lstm_forward.1} parent=5 // pred_check
        %p4417 = pneg %p4416
      $region90: #{attention_lstm_forward.1} parent=5 // pred_check_branch
        %4419 = sbr.rel (%p4417) target = $region92
      $region91: #{attention_lstm_forward.1} parent=5 // pred_region
        %s4420 = ssub.s32 %s21, 2
        // Predicated region
        $region93: #{attention_lstm_forward.1} parent=91 // pred_check
          %p4421 = pneg %p300
        $region94: #{attention_lstm_forward.1} parent=91 // pred_check_branch
          %4423 = sbr.rel (%p4421) target = $region96
        $region95: #{attention_lstm_forward.1} parent=91 // pred_region
          %p4424 = scmp.lt.s32.totalorder %s32, 1
          %s4425 = scalar_select %p4424, %s32, 1
          %s4426 = smul.addr %s4425, 8
          %s4427 = scalar_lea.vmem %s11, %s4426
        $region96: #{attention_lstm_forward.1} parent=91 // pred_fallthru
          _
      $region92: #{attention_lstm_forward.1} parent=5 // pred_fallthru
        _
    $region6: #{attention_lstm_forward.1} parent=1 // loop_footer
      %s25 = sadd.s32 1, %s21
    $region7: #{attention_lstm_forward.1} parent=1 // loop_footer_branch
      %20 = sbr.rel target = $region3
    $region8: #{attention_lstm_forward.1} parent=1 // loop_exit
      _
    %4428 = vsyncpa [#allocation13], 1
    %s4429 = scalar_lea.sflag [#allocation13], 1
    %4430 = vsyncpa %s4429, 1
    %4431 = vsyncpa [#allocation15], 1

</llo_original>
